<compile_context>
chip_gen: v7x
topology: tpu7x:2x2x1
jax: 0.10.0
libtpu: 0.0.40
codegen_flags: <defaults>
</compile_context>

<pallas_src>
import functools

import jax
import jax.numpy as jnp
from jax import lax
from jax.experimental import pallas as pl
from jax.experimental.pallas import tpu as pltpu


_MM_DTYPE = jnp.bfloat16  # MXU operand dtype (accumulation stays f32)


def _mm(a, w):
    """MXU matmul: bf16 operands, f32 accumulation."""
    return jnp.dot(a.astype(_MM_DTYPE), w.astype(_MM_DTYPE),
                   preferred_element_type=jnp.float32)


def _layernorm(x, w, b, eps=1e-5):
    mu = jnp.mean(x, axis=-1, keepdims=True)
    var = jnp.mean((x - mu) ** 2, axis=-1, keepdims=True)
    return (x - mu) * lax.rsqrt(var + eps) * w + b


# ----------------------------------------------------------------------------
# Fused kernel: all encoder layers + mean-pool + classifier for one batch tile
# ----------------------------------------------------------------------------
def fused_transformer_kernel(
    x_ref,
    in_w_ref, in_b_ref, out_w_ref, out_b_ref,
    ln1_w_ref, ln1_b_ref, ln2_w_ref, ln2_b_ref,
    ff1_w_ref, ff1_b_ref, ff2_w_ref, ff2_b_ref,
    cls_w1_ref, cls_b1_ref, cls_w2_ref, cls_b2_ref,
    o_ref,
    *, num_heads, num_layers,
):
    TB, S, E = x_ref.shape
    H = num_heads
    dh = E // H
    N = TB * S

    # Lane-dense 2D activations (rows, E) throughout.
    x = x_ref[...].astype(jnp.float32).reshape(N, E)

    for l in range(num_layers):
        # ---- fused QKV projection: single big MXU matmul -------------------
        # (1/sqrt(dh) is pre-folded into the Q columns/bias in the wrapper)
        qkv = _mm(x, in_w_ref[l]) + in_b_ref[l]            # (N, 3E) f32

        # ---- scaled dot-product attention (softmax per head) ---------------
        head_outs = []
        for h in range(H):
            q = qkv[:, h * dh:(h + 1) * dh].reshape(TB, S, dh)
            k = qkv[:, E + h * dh:E + (h + 1) * dh].reshape(TB, S, dh)
            v = qkv[:, 2 * E + h * dh:2 * E + (h + 1) * dh].reshape(TB, S, dh)
            s = jnp.einsum('bqd,bkd->bqk', q.astype(_MM_DTYPE),
                           k.astype(_MM_DTYPE),
                           preferred_element_type=jnp.float32)   # (TB, S, S)
            s = s - jnp.max(s, axis=-1, keepdims=True)
            p = jnp.exp(s)
            p = p * pl.reciprocal(jnp.sum(p, axis=-1, keepdims=True),
                                  approx=True)
            head_outs.append(
                jnp.einsum('bqk,bkd->bqd', p.astype(_MM_DTYPE),
                           v.astype(_MM_DTYPE),
                           preferred_element_type=jnp.float32))  # (TB, S, dh)
        attn = jnp.concatenate(head_outs, axis=-1).reshape(N, E)

        # ---- fused output projection: single (N,E)x(E,E) matmul ------------
        attn = _mm(attn, out_w_ref[l]) + out_b_ref[l]
        # TODO(synk): nn.TransformerEncoderLayer dropout (p=0.1) = eval-mode identity.

        # ---- residual + LayerNorm 1 (f32) -----------------------------------
        y = _layernorm(x + attn, ln1_w_ref[l], ln1_b_ref[l])

        # ---- feed-forward: two big MXU matmuls ------------------------------
        h1 = jnp.maximum(_mm(y, ff1_w_ref[l]) + ff1_b_ref[l], 0.0)  # (N, dff)
        h2 = _mm(h1, ff2_w_ref[l]) + ff2_b_ref[l]                   # (N, E)

        # ---- residual + LayerNorm 2 -----------------------------------------
        x = _layernorm(y + h2, ln2_w_ref[l], ln2_b_ref[l])

    # ---- mean pool over sequence + classifier MLP ---------------------------
    pooled = jnp.mean(x.reshape(TB, S, E), axis=1)                  # (TB, E)
    hcls = jnp.maximum(_mm(pooled, cls_w1_ref[...]) + cls_b1_ref[...], 0.0)
    # TODO(synk): nn.Dropout(0.3) = eval-mode identity.
    logits = _mm(hcls, cls_w2_ref[...]) + cls_b2_ref[...]           # (TB, C)
    o_ref[0] = logits.astype(o_ref.dtype)


# ----------------------------------------------------------------------------
# Wrapper
# ----------------------------------------------------------------------------
def transformer_classifier_forward(tokens, params, *, num_heads, num_classes,
                                    block_b=1):
    # Embedding lookup (glue) + positional encoding add.
    x = params['embedding'][tokens]                                 # (B, S, E)
    B, S = tokens.shape
    E = x.shape[-1]
    x = x + params['pe'][None, :S, :]

    layers = params['layers']
    L = len(layers)
    dh = E // num_heads
    scale = 1.0 / float(dh) ** 0.5

    def stack(idx):
        return jnp.stack([p[idx] for p in layers])

    # Pre-transpose / pre-scale / stack per-layer weights once (bf16 operands).
    in_w = stack(0)                                                 # (L, 3E, E)
    in_b = stack(1)                                                 # (L, 3E)
    q_scale = jnp.concatenate([jnp.full((E,), scale, jnp.float32),
                               jnp.ones((2 * E,), jnp.float32)])
    in_w_t = (in_w * q_scale[None, :, None]).transpose(0, 2, 1).astype(_MM_DTYPE)
    in_b = (in_b * q_scale[None, :]).reshape(L, 1, 3 * E)

    out_w_t = stack(2).transpose(0, 2, 1).astype(_MM_DTYPE)          # (L, E, E)
    out_b = stack(3).reshape(L, 1, E)
    ln1_w = stack(4).reshape(L, 1, E)
    ln1_b = stack(5).reshape(L, 1, E)
    ln2_w = stack(6).reshape(L, 1, E)
    ln2_b = stack(7).reshape(L, 1, E)
    ff1_w_t = stack(8).transpose(0, 2, 1).astype(_MM_DTYPE)          # (L, E, dff)
    ff1_b = stack(9).reshape(L, 1, -1)
    ff2_w_t = stack(10).transpose(0, 2, 1).astype(_MM_DTYPE)         # (L, dff, E)
    ff2_b = stack(11).reshape(L, 1, E)

    cls_w1_t = params['cls_w1'].T.astype(_MM_DTYPE)                  # (E, 64)
    cls_b1 = params['cls_b1'].reshape(1, -1)
    cls_w2_t = params['cls_w2'].T.astype(_MM_DTYPE)                  # (64, C)
    cls_b2 = params['cls_b2'].reshape(1, -1)

    TB = min(block_b, B)
    assert B % TB == 0, "batch size must be divisible by the batch tile"
    nb = B // TB

    def resident(a):
        nd = a.ndim
        return pl.BlockSpec(a.shape, lambda i, _nd=nd: (0,) * _nd)

    weights = (in_w_t, in_b, out_w_t, out_b, ln1_w, ln1_b, ln2_w, ln2_b,
               ff1_w_t, ff1_b, ff2_w_t, ff2_b,
               cls_w1_t, cls_b1, cls_w2_t, cls_b2)

    out = pl.pallas_call(
        functools.partial(fused_transformer_kernel,
                          num_heads=num_heads, num_layers=L),
        out_shape=jax.ShapeDtypeStruct((nb, TB, num_classes), x.dtype),
        grid=(nb,),
        in_specs=[pl.BlockSpec((TB, S, E), lambda i: (i, 0, 0))]
                 + [resident(w) for w in weights],
        out_specs=pl.BlockSpec((1, TB, num_classes), lambda i: (i, 0, 0)),
        compiler_params=pltpu.CompilerParams(
            dimension_semantics=("parallel",),
            vmem_limit_bytes=32 * 1024 * 1024,
        ),
    )(x, *weights)
    return out.reshape(B, num_classes)


# ----------------------------------------------------------------------------
# Positional encoding + deterministic parameter init + demo
# ----------------------------------------------------------------------------
def positional_encoding(dim, max_len):
    position = jnp.arange(max_len, dtype=jnp.float32)[:, None]
    scaling = jnp.exp(jnp.arange(0, dim, 2, dtype=jnp.float32)
                      * (-jnp.log(jnp.float32(10000.0)) / dim))
    pe = jnp.zeros((max_len, dim), dtype=jnp.float32)
    pe = pe.at[:, 0::2].set(jnp.sin(position * scaling))
    pe = pe.at[:, 1::2].set(jnp.cos(position * scaling))
    return pe


def init_params(key, vocab_size, embed_dim, num_heads, num_classes,
                num_layers, max_length, dim_feedforward=2048):
    keys = jax.random.split(key, 4 + 6 * num_layers)
    it = iter(keys)
    f32 = jnp.float32
    params = {
        'embedding': 0.02 * jax.random.normal(next(it), (vocab_size, embed_dim), f32),
        'pe': positional_encoding(embed_dim, max_length),
        'cls_w1': 0.05 * jax.random.normal(next(it), (64, embed_dim), f32),
        'cls_b1': jnp.zeros((64,), f32),
        'cls_w2': 0.05 * jax.random.normal(next(it), (num_classes, 64), f32),
        'cls_b2': jnp.zeros((num_classes,), f32),
        'layers': [],
    }
    _ = next(it)
    for _l in range(num_layers):
        in_w = 0.05 * jax.random.normal(next(it), (3 * embed_dim, embed_dim), f32)
        in_b = jnp.zeros((3 * embed_dim,), f32)
        out_w = 0.05 * jax.random.normal(next(it), (embed_dim, embed_dim), f32)
        out_b = jnp.zeros((embed_dim,), f32)
        ln1_w = jnp.ones((embed_dim,), f32)
        ln1_b = jnp.zeros((embed_dim,), f32)
        ln2_w = jnp.ones((embed_dim,), f32)
        ln2_b = jnp.zeros((embed_dim,), f32)
        ff1_w = 0.02 * jax.random.normal(next(it), (dim_feedforward, embed_dim), f32)
        ff1_b = jnp.zeros((dim_feedforward,), f32)
        ff2_w = 0.02 * jax.random.normal(next(it), (embed_dim, dim_feedforward), f32)
        ff2_b = jnp.zeros((embed_dim,), f32)
        _ = next(it)
        params['layers'].append((in_w, in_b, out_w, out_b, ln1_w, ln1_b,
                                 ln2_w, ln2_b, ff1_w, ff1_b, ff2_w, ff2_b))
    return params


if __name__ == "__main__":
    vocab_size = 32
    embed_dim = 32
    num_heads = 4
    num_classes = 5
    num_layers = 2
    max_length = 16
    batch = 2
    seq = 8

    key = jax.random.PRNGKey(0)
    k_tok, k_par = jax.random.split(key)
    tokens = jax.random.randint(k_tok, (batch, seq), 0, vocab_size, dtype=jnp.int32)
    params = init_params(k_par, vocab_size, embed_dim, num_heads,
                         num_classes, num_layers, max_length)

    logits = transformer_classifier_forward(
        tokens, params, num_heads=num_heads, num_classes=num_classes, block_b=1)
    logits = jax.block_until_ready(logits)
    assert logits.shape == (batch, num_classes)
    print("KERNEL_OK")
</pallas_src>

<mosaic_0001>
module attributes {stable_mosaic.version = 11 : i64} {
  func.func @fused_transformer_kernel(%arg0: i32, %arg1: memref<1x8x32xf32, #tpu.memory_space<vmem>>, %arg2: memref<2x32x96xbf16, #tpu.memory_space<vmem>>, %arg3: memref<2x1x96xf32, #tpu.memory_space<vmem>>, %arg4: memref<2x32x32xbf16, #tpu.memory_space<vmem>>, %arg5: memref<2x1x32xf32, #tpu.memory_space<vmem>>, %arg6: memref<2x1x32xf32, #tpu.memory_space<vmem>>, %arg7: memref<2x1x32xf32, #tpu.memory_space<vmem>>, %arg8: memref<2x1x32xf32, #tpu.memory_space<vmem>>, %arg9: memref<2x1x32xf32, #tpu.memory_space<vmem>>, %arg10: memref<2x32x2048xbf16, #tpu.memory_space<vmem>>, %arg11: memref<2x1x2048xf32, #tpu.memory_space<vmem>>, %arg12: memref<2x2048x32xbf16, #tpu.memory_space<vmem>>, %arg13: memref<2x1x32xf32, #tpu.memory_space<vmem>>, %arg14: memref<32x64xbf16, #tpu.memory_space<vmem>>, %arg15: memref<1x64xf32, #tpu.memory_space<vmem>>, %arg16: memref<64x5xbf16, #tpu.memory_space<vmem>>, %arg17: memref<1x5xf32, #tpu.memory_space<vmem>>, %arg18: memref<1x1x5xf32, #tpu.memory_space<vmem>>) attributes {dimension_semantics = [#tpu.dimension_semantics<parallel>], iteration_bounds = array<i64: 2>, scalar_prefetch = 0 : i64, scratch_operands = 0 : i64, tpu.core_type = #tpu.core_type<tc>, window_params = [{transform_indices = @transform_0, window_bounds = array<i64: 1, 8, 32>}, {pipeline_mode = #tpu.pipeline_mode<synchronous>, transform_indices = @transform_1, window_bounds = array<i64: 2, 32, 96>}, {pipeline_mode = #tpu.pipeline_mode<synchronous>, transform_indices = @transform_2, window_bounds = array<i64: 2, 1, 96>}, {pipeline_mode = #tpu.pipeline_mode<synchronous>, transform_indices = @transform_3, window_bounds = array<i64: 2, 32, 32>}, {pipeline_mode = #tpu.pipeline_mode<synchronous>, transform_indices = @transform_4, window_bounds = array<i64: 2, 1, 32>}, {pipeline_mode = #tpu.pipeline_mode<synchronous>, transform_indices = @transform_5, window_bounds = array<i64: 2, 1, 32>}, {pipeline_mode = #tpu.pipeline_mode<synchronous>, transform_indices = @transform_6, window_bounds = array<i64: 2, 1, 32>}, {pipeline_mode = #tpu.pipeline_mode<synchronous>, transform_indices = @transform_7, window_bounds = array<i64: 2, 1, 32>}, {pipeline_mode = #tpu.pipeline_mode<synchronous>, transform_indices = @transform_8, window_bounds = array<i64: 2, 1, 32>}, {pipeline_mode = #tpu.pipeline_mode<synchronous>, transform_indices = @transform_9, window_bounds = array<i64: 2, 32, 2048>}, {pipeline_mode = #tpu.pipeline_mode<synchronous>, transform_indices = @transform_10, window_bounds = array<i64: 2, 1, 2048>}, {pipeline_mode = #tpu.pipeline_mode<synchronous>, transform_indices = @transform_11, window_bounds = array<i64: 2, 2048, 32>}, {pipeline_mode = #tpu.pipeline_mode<synchronous>, transform_indices = @transform_12, window_bounds = array<i64: 2, 1, 32>}, {pipeline_mode = #tpu.pipeline_mode<synchronous>, transform_indices = @transform_13, window_bounds = array<i64: 32, 64>}, {pipeline_mode = #tpu.pipeline_mode<synchronous>, transform_indices = @transform_14, window_bounds = array<i64: 1, 64>}, {pipeline_mode = #tpu.pipeline_mode<synchronous>, transform_indices = @transform_15, window_bounds = array<i64: 64, 5>}, {pipeline_mode = #tpu.pipeline_mode<synchronous>, transform_indices = @transform_16, window_bounds = array<i64: 1, 5>}, {transform_indices = @transform_17, window_bounds = array<i64: 1, 1, 5>}]} {
    %c0 = arith.constant 0 : index
    %c0_0 = arith.constant 0 : index
    %c0_1 = arith.constant 0 : index
    %0 = vector.load %arg1[%c0, %c0_0, %c0_1] : memref<1x8x32xf32, #tpu.memory_space<vmem>>, vector<1x8x32xf32>
    %1 = vector.shape_cast %0 : vector<1x8x32xf32> to vector<8x32xf32>
    %c0_2 = arith.constant 0 : index
    %c0_3 = arith.constant 0 : index
    %c0_4 = arith.constant 0 : index
    %2 = vector.load %arg2[%c0_2, %c0_3, %c0_4] : memref<2x32x96xbf16, #tpu.memory_space<vmem>>, vector<1x32x96xbf16>
    %3 = vector.shape_cast %2 : vector<1x32x96xbf16> to vector<32x96xbf16>
    %4 = arith.truncf %1 : vector<8x32xf32> to vector<8x32xbf16>
    %cst = arith.constant dense<0.000000e+00> : vector<8x96xf32>
    %5 = tpu.matmul %4, %3, %cst {dimension_numbers = #tpu.dot_dimension_numbers<[1], [0], [0], [1], [0, 0, 1, 1], [], []>} : vector<8x32xbf16>, vector<32x96xbf16>, vector<8x96xf32> -> vector<8x96xf32>
    %c0_5 = arith.constant 0 : index
    %c0_6 = arith.constant 0 : index
    %c0_7 = arith.constant 0 : index
    %6 = vector.load %arg3[%c0_5, %c0_6, %c0_7] : memref<2x1x96xf32, #tpu.memory_space<vmem>>, vector<1x1x96xf32>
    %7 = vector.shape_cast %6 : vector<1x1x96xf32> to vector<1x96xf32>
    %8 = vector.broadcast %7 : vector<1x96xf32> to vector<8x96xf32>
    %9 = arith.addf %5, %8 : vector<8x96xf32>
    %10 = vector.extract_strided_slice %9 {offsets = [0, 0], sizes = [8, 8], strides = [1, 1]} : vector<8x96xf32> to vector<8x8xf32>
    %11 = vector.shape_cast %10 : vector<8x8xf32> to vector<1x8x8xf32>
    %12 = vector.extract_strided_slice %9 {offsets = [0, 32], sizes = [8, 8], strides = [1, 1]} : vector<8x96xf32> to vector<8x8xf32>
    %13 = vector.shape_cast %12 : vector<8x8xf32> to vector<1x8x8xf32>
    %14 = vector.extract_strided_slice %9 {offsets = [0, 64], sizes = [8, 8], strides = [1, 1]} : vector<8x96xf32> to vector<8x8xf32>
    %15 = vector.shape_cast %14 : vector<8x8xf32> to vector<1x8x8xf32>
    %16 = arith.truncf %11 : vector<1x8x8xf32> to vector<1x8x8xbf16>
    %17 = arith.truncf %13 : vector<1x8x8xf32> to vector<1x8x8xbf16>
    "tpu.trace_start"() <{level = 10 : i32, message = "bqd,bkd->bqk"}> : () -> ()
    %cst_8 = arith.constant dense<0.000000e+00> : vector<1x8x8xf32>
    %18 = tpu.matmul %16, %17, %cst_8 {dimension_numbers = #tpu.dot_dimension_numbers<[2], [2], [1], [1], [0, 0, 0, 1, 1, 1], [0], [0]>} : vector<1x8x8xbf16>, vector<1x8x8xbf16>, vector<1x8x8xf32> -> vector<1x8x8xf32>
    "tpu.trace_stop"() : () -> ()
    %cst_9 = arith.constant dense<0xFF800000> : vector<1x8xf32>
    %19 = vector.multi_reduction <maximumf>, %18, %cst_9 [2] : vector<1x8x8xf32> to vector<1x8xf32>
    %20 = vector.shape_cast %19 : vector<1x8xf32> to vector<1x8x1xf32>
    %21 = vector.broadcast %20 : vector<1x8x1xf32> to vector<1x8x8xf32>
    %22 = arith.subf %18, %21 : vector<1x8x8xf32>
    %23 = math.exp %22 : vector<1x8x8xf32>
    %cst_10 = arith.constant dense<0.000000e+00> : vector<1x8xf32>
    %24 = vector.multi_reduction <add>, %23, %cst_10 [2] : vector<1x8x8xf32> to vector<1x8xf32>
    %25 = vector.shape_cast %24 : vector<1x8xf32> to vector<1x8x1xf32>
    %26 = tpu.reciprocal %25 {approx = true} : vector<1x8x1xf32> -> vector<1x8x1xf32>
    %27 = vector.broadcast %26 : vector<1x8x1xf32> to vector<1x8x8xf32>
    %28 = arith.mulf %23, %27 : vector<1x8x8xf32>
    %29 = arith.truncf %28 : vector<1x8x8xf32> to vector<1x8x8xbf16>
    %30 = arith.truncf %15 : vector<1x8x8xf32> to vector<1x8x8xbf16>
    "tpu.trace_start"() <{level = 10 : i32, message = "bqk,bkd->bqd"}> : () -> ()
    %cst_11 = arith.constant dense<0.000000e+00> : vector<1x8x8xf32>
    %31 = tpu.matmul %29, %30, %cst_11 {dimension_numbers = #tpu.dot_dimension_numbers<[2], [1], [1], [2], [0, 0, 0, 1, 1, 2], [0], [0]>} : vector<1x8x8xbf16>, vector<1x8x8xbf16>, vector<1x8x8xf32> -> vector<1x8x8xf32>
    "tpu.trace_stop"() : () -> ()
    %32 = vector.extract_strided_slice %9 {offsets = [0, 8], sizes = [8, 8], strides = [1, 1]} : vector<8x96xf32> to vector<8x8xf32>
    %33 = vector.shape_cast %32 : vector<8x8xf32> to vector<1x8x8xf32>
    %34 = vector.extract_strided_slice %9 {offsets = [0, 40], sizes = [8, 8], strides = [1, 1]} : vector<8x96xf32> to vector<8x8xf32>
    %35 = vector.shape_cast %34 : vector<8x8xf32> to vector<1x8x8xf32>
    %36 = vector.extract_strided_slice %9 {offsets = [0, 72], sizes = [8, 8], strides = [1, 1]} : vector<8x96xf32> to vector<8x8xf32>
    %37 = vector.shape_cast %36 : vector<8x8xf32> to vector<1x8x8xf32>
    %38 = arith.truncf %33 : vector<1x8x8xf32> to vector<1x8x8xbf16>
    %39 = arith.truncf %35 : vector<1x8x8xf32> to vector<1x8x8xbf16>
    "tpu.trace_start"() <{level = 10 : i32, message = "bqd,bkd->bqk"}> : () -> ()
    %cst_12 = arith.constant dense<0.000000e+00> : vector<1x8x8xf32>
    %40 = tpu.matmul %38, %39, %cst_12 {dimension_numbers = #tpu.dot_dimension_numbers<[2], [2], [1], [1], [0, 0, 0, 1, 1, 1], [0], [0]>} : vector<1x8x8xbf16>, vector<1x8x8xbf16>, vector<1x8x8xf32> -> vector<1x8x8xf32>
    "tpu.trace_stop"() : () -> ()
    %cst_13 = arith.constant dense<0xFF800000> : vector<1x8xf32>
    %41 = vector.multi_reduction <maximumf>, %40, %cst_13 [2] : vector<1x8x8xf32> to vector<1x8xf32>
    %42 = vector.shape_cast %41 : vector<1x8xf32> to vector<1x8x1xf32>
    %43 = vector.broadcast %42 : vector<1x8x1xf32> to vector<1x8x8xf32>
    %44 = arith.subf %40, %43 : vector<1x8x8xf32>
    %45 = math.exp %44 : vector<1x8x8xf32>
    %cst_14 = arith.constant dense<0.000000e+00> : vector<1x8xf32>
    %46 = vector.multi_reduction <add>, %45, %cst_14 [2] : vector<1x8x8xf32> to vector<1x8xf32>
    %47 = vector.shape_cast %46 : vector<1x8xf32> to vector<1x8x1xf32>
    %48 = tpu.reciprocal %47 {approx = true} : vector<1x8x1xf32> -> vector<1x8x1xf32>
    %49 = vector.broadcast %48 : vector<1x8x1xf32> to vector<1x8x8xf32>
    %50 = arith.mulf %45, %49 : vector<1x8x8xf32>
    %51 = arith.truncf %50 : vector<1x8x8xf32> to vector<1x8x8xbf16>
    %52 = arith.truncf %37 : vector<1x8x8xf32> to vector<1x8x8xbf16>
    "tpu.trace_start"() <{level = 10 : i32, message = "bqk,bkd->bqd"}> : () -> ()
    %cst_15 = arith.constant dense<0.000000e+00> : vector<1x8x8xf32>
    %53 = tpu.matmul %51, %52, %cst_15 {dimension_numbers = #tpu.dot_dimension_numbers<[2], [1], [1], [2], [0, 0, 0, 1, 1, 2], [0], [0]>} : vector<1x8x8xbf16>, vector<1x8x8xbf16>, vector<1x8x8xf32> -> vector<1x8x8xf32>
    "tpu.trace_stop"() : () -> ()
    %54 = vector.extract_strided_slice %9 {offsets = [0, 16], sizes = [8, 8], strides = [1, 1]} : vector<8x96xf32> to vector<8x8xf32>
    %55 = vector.shape_cast %54 : vector<8x8xf32> to vector<1x8x8xf32>
    %56 = vector.extract_strided_slice %9 {offsets = [0, 48], sizes = [8, 8], strides = [1, 1]} : vector<8x96xf32> to vector<8x8xf32>
    %57 = vector.shape_cast %56 : vector<8x8xf32> to vector<1x8x8xf32>
    %58 = vector.extract_strided_slice %9 {offsets = [0, 80], sizes = [8, 8], strides = [1, 1]} : vector<8x96xf32> to vector<8x8xf32>
    %59 = vector.shape_cast %58 : vector<8x8xf32> to vector<1x8x8xf32>
    %60 = arith.truncf %55 : vector<1x8x8xf32> to vector<1x8x8xbf16>
    %61 = arith.truncf %57 : vector<1x8x8xf32> to vector<1x8x8xbf16>
    "tpu.trace_start"() <{level = 10 : i32, message = "bqd,bkd->bqk"}> : () -> ()
    %cst_16 = arith.constant dense<0.000000e+00> : vector<1x8x8xf32>
    %62 = tpu.matmul %60, %61, %cst_16 {dimension_numbers = #tpu.dot_dimension_numbers<[2], [2], [1], [1], [0, 0, 0, 1, 1, 1], [0], [0]>} : vector<1x8x8xbf16>, vector<1x8x8xbf16>, vector<1x8x8xf32> -> vector<1x8x8xf32>
    "tpu.trace_stop"() : () -> ()
    %cst_17 = arith.constant dense<0xFF800000> : vector<1x8xf32>
    %63 = vector.multi_reduction <maximumf>, %62, %cst_17 [2] : vector<1x8x8xf32> to vector<1x8xf32>
    %64 = vector.shape_cast %63 : vector<1x8xf32> to vector<1x8x1xf32>
    %65 = vector.broadcast %64 : vector<1x8x1xf32> to vector<1x8x8xf32>
    %66 = arith.subf %62, %65 : vector<1x8x8xf32>
    %67 = math.exp %66 : vector<1x8x8xf32>
    %cst_18 = arith.constant dense<0.000000e+00> : vector<1x8xf32>
    %68 = vector.multi_reduction <add>, %67, %cst_18 [2] : vector<1x8x8xf32> to vector<1x8xf32>
    %69 = vector.shape_cast %68 : vector<1x8xf32> to vector<1x8x1xf32>
    %70 = tpu.reciprocal %69 {approx = true} : vector<1x8x1xf32> -> vector<1x8x1xf32>
    %71 = vector.broadcast %70 : vector<1x8x1xf32> to vector<1x8x8xf32>
    %72 = arith.mulf %67, %71 : vector<1x8x8xf32>
    %73 = arith.truncf %72 : vector<1x8x8xf32> to vector<1x8x8xbf16>
    %74 = arith.truncf %59 : vector<1x8x8xf32> to vector<1x8x8xbf16>
    "tpu.trace_start"() <{level = 10 : i32, message = "bqk,bkd->bqd"}> : () -> ()
    %cst_19 = arith.constant dense<0.000000e+00> : vector<1x8x8xf32>
    %75 = tpu.matmul %73, %74, %cst_19 {dimension_numbers = #tpu.dot_dimension_numbers<[2], [1], [1], [2], [0, 0, 0, 1, 1, 2], [0], [0]>} : vector<1x8x8xbf16>, vector<1x8x8xbf16>, vector<1x8x8xf32> -> vector<1x8x8xf32>
    "tpu.trace_stop"() : () -> ()
    %76 = vector.extract_strided_slice %9 {offsets = [0, 24], sizes = [8, 8], strides = [1, 1]} : vector<8x96xf32> to vector<8x8xf32>
    %77 = vector.shape_cast %76 : vector<8x8xf32> to vector<1x8x8xf32>
    %78 = vector.extract_strided_slice %9 {offsets = [0, 56], sizes = [8, 8], strides = [1, 1]} : vector<8x96xf32> to vector<8x8xf32>
    %79 = vector.shape_cast %78 : vector<8x8xf32> to vector<1x8x8xf32>
    %80 = vector.extract_strided_slice %9 {offsets = [0, 88], sizes = [8, 8], strides = [1, 1]} : vector<8x96xf32> to vector<8x8xf32>
    %81 = vector.shape_cast %80 : vector<8x8xf32> to vector<1x8x8xf32>
    %82 = arith.truncf %77 : vector<1x8x8xf32> to vector<1x8x8xbf16>
    %83 = arith.truncf %79 : vector<1x8x8xf32> to vector<1x8x8xbf16>
    "tpu.trace_start"() <{level = 10 : i32, message = "bqd,bkd->bqk"}> : () -> ()
    %cst_20 = arith.constant dense<0.000000e+00> : vector<1x8x8xf32>
    %84 = tpu.matmul %82, %83, %cst_20 {dimension_numbers = #tpu.dot_dimension_numbers<[2], [2], [1], [1], [0, 0, 0, 1, 1, 1], [0], [0]>} : vector<1x8x8xbf16>, vector<1x8x8xbf16>, vector<1x8x8xf32> -> vector<1x8x8xf32>
    "tpu.trace_stop"() : () -> ()
    %cst_21 = arith.constant dense<0xFF800000> : vector<1x8xf32>
    %85 = vector.multi_reduction <maximumf>, %84, %cst_21 [2] : vector<1x8x8xf32> to vector<1x8xf32>
    %86 = vector.shape_cast %85 : vector<1x8xf32> to vector<1x8x1xf32>
    %87 = vector.broadcast %86 : vector<1x8x1xf32> to vector<1x8x8xf32>
    %88 = arith.subf %84, %87 : vector<1x8x8xf32>
    %89 = math.exp %88 : vector<1x8x8xf32>
    %cst_22 = arith.constant dense<0.000000e+00> : vector<1x8xf32>
    %90 = vector.multi_reduction <add>, %89, %cst_22 [2] : vector<1x8x8xf32> to vector<1x8xf32>
    %91 = vector.shape_cast %90 : vector<1x8xf32> to vector<1x8x1xf32>
    %92 = tpu.reciprocal %91 {approx = true} : vector<1x8x1xf32> -> vector<1x8x1xf32>
    %93 = vector.broadcast %92 : vector<1x8x1xf32> to vector<1x8x8xf32>
    %94 = arith.mulf %89, %93 : vector<1x8x8xf32>
    %95 = arith.truncf %94 : vector<1x8x8xf32> to vector<1x8x8xbf16>
    %96 = arith.truncf %81 : vector<1x8x8xf32> to vector<1x8x8xbf16>
    "tpu.trace_start"() <{level = 10 : i32, message = "bqk,bkd->bqd"}> : () -> ()
    %cst_23 = arith.constant dense<0.000000e+00> : vector<1x8x8xf32>
    %97 = tpu.matmul %95, %96, %cst_23 {dimension_numbers = #tpu.dot_dimension_numbers<[2], [1], [1], [2], [0, 0, 0, 1, 1, 2], [0], [0]>} : vector<1x8x8xbf16>, vector<1x8x8xbf16>, vector<1x8x8xf32> -> vector<1x8x8xf32>
    "tpu.trace_stop"() : () -> ()
    %98 = tpu.concatenate %31, %53, %75, %97 in 2 : vector<1x8x8xf32>, vector<1x8x8xf32>, vector<1x8x8xf32>, vector<1x8x8xf32> -> vector<1x8x32xf32>
    %99 = vector.shape_cast %98 : vector<1x8x32xf32> to vector<8x32xf32>
    %c0_24 = arith.constant 0 : index
    %c0_25 = arith.constant 0 : index
    %c0_26 = arith.constant 0 : index
    %100 = vector.load %arg4[%c0_24, %c0_25, %c0_26] : memref<2x32x32xbf16, #tpu.memory_space<vmem>>, vector<1x32x32xbf16>
    %101 = vector.shape_cast %100 : vector<1x32x32xbf16> to vector<32x32xbf16>
    %102 = arith.truncf %99 : vector<8x32xf32> to vector<8x32xbf16>
    %cst_27 = arith.constant dense<0.000000e+00> : vector<8x32xf32>
    %103 = tpu.matmul %102, %101, %cst_27 {dimension_numbers = #tpu.dot_dimension_numbers<[1], [0], [0], [1], [0, 0, 1, 1], [], []>} : vector<8x32xbf16>, vector<32x32xbf16>, vector<8x32xf32> -> vector<8x32xf32>
    %c0_28 = arith.constant 0 : index
    %c0_29 = arith.constant 0 : index
    %c0_30 = arith.constant 0 : index
    %104 = vector.load %arg5[%c0_28, %c0_29, %c0_30] : memref<2x1x32xf32, #tpu.memory_space<vmem>>, vector<1x1x32xf32>
    %105 = vector.shape_cast %104 : vector<1x1x32xf32> to vector<1x32xf32>
    %106 = vector.broadcast %105 : vector<1x32xf32> to vector<8x32xf32>
    %107 = arith.addf %103, %106 : vector<8x32xf32>
    %108 = arith.addf %1, %107 : vector<8x32xf32>
    %c0_31 = arith.constant 0 : index
    %c0_32 = arith.constant 0 : index
    %c0_33 = arith.constant 0 : index
    %109 = vector.load %arg6[%c0_31, %c0_32, %c0_33] : memref<2x1x32xf32, #tpu.memory_space<vmem>>, vector<1x1x32xf32>
    %110 = vector.shape_cast %109 : vector<1x1x32xf32> to vector<1x32xf32>
    %c0_34 = arith.constant 0 : index
    %c0_35 = arith.constant 0 : index
    %c0_36 = arith.constant 0 : index
    %111 = vector.load %arg7[%c0_34, %c0_35, %c0_36] : memref<2x1x32xf32, #tpu.memory_space<vmem>>, vector<1x1x32xf32>
    %112 = vector.shape_cast %111 : vector<1x1x32xf32> to vector<1x32xf32>
    %cst_37 = arith.constant dense<0.000000e+00> : vector<8xf32>
    %113 = vector.multi_reduction <add>, %108, %cst_37 [1] : vector<8x32xf32> to vector<8xf32>
    %114 = vector.shape_cast %113 : vector<8xf32> to vector<8x1xf32>
    %cst_38 = arith.constant 3.200000e+01 : f32
    %115 = vector.broadcast %cst_38 : f32 to vector<8x1xf32>
    %116 = arith.divf %114, %115 : vector<8x1xf32>
    %117 = vector.broadcast %116 : vector<8x1xf32> to vector<8x32xf32>
    %118 = arith.subf %108, %117 : vector<8x32xf32>
    %119 = arith.mulf %118, %118 : vector<8x32xf32>
    %cst_39 = arith.constant dense<0.000000e+00> : vector<8xf32>
    %120 = vector.multi_reduction <add>, %119, %cst_39 [1] : vector<8x32xf32> to vector<8xf32>
    %121 = vector.shape_cast %120 : vector<8xf32> to vector<8x1xf32>
    %cst_40 = arith.constant 3.200000e+01 : f32
    %122 = vector.broadcast %cst_40 : f32 to vector<8x1xf32>
    %123 = arith.divf %121, %122 : vector<8x1xf32>
    %124 = vector.broadcast %116 : vector<8x1xf32> to vector<8x32xf32>
    %125 = arith.subf %108, %124 : vector<8x32xf32>
    %cst_41 = arith.constant 9.99999974E-6 : f32
    %126 = vector.broadcast %cst_41 : f32 to vector<8x1xf32>
    %127 = arith.addf %123, %126 : vector<8x1xf32>
    %128 = math.rsqrt %127 : vector<8x1xf32>
    %129 = vector.broadcast %128 : vector<8x1xf32> to vector<8x32xf32>
    %130 = arith.mulf %125, %129 : vector<8x32xf32>
    %131 = vector.broadcast %110 : vector<1x32xf32> to vector<8x32xf32>
    %132 = arith.mulf %130, %131 : vector<8x32xf32>
    %133 = vector.broadcast %112 : vector<1x32xf32> to vector<8x32xf32>
    %134 = arith.addf %132, %133 : vector<8x32xf32>
    %c0_42 = arith.constant 0 : index
    %c0_43 = arith.constant 0 : index
    %c0_44 = arith.constant 0 : index
    %135 = vector.load %arg10[%c0_42, %c0_43, %c0_44] : memref<2x32x2048xbf16, #tpu.memory_space<vmem>>, vector<1x32x2048xbf16>
    %136 = vector.shape_cast %135 : vector<1x32x2048xbf16> to vector<32x2048xbf16>
    %137 = arith.truncf %134 : vector<8x32xf32> to vector<8x32xbf16>
    %cst_45 = arith.constant dense<0.000000e+00> : vector<8x2048xf32>
    %138 = tpu.matmul %137, %136, %cst_45 {dimension_numbers = #tpu.dot_dimension_numbers<[1], [0], [0], [1], [0, 0, 1, 1], [], []>} : vector<8x32xbf16>, vector<32x2048xbf16>, vector<8x2048xf32> -> vector<8x2048xf32>
    %c0_46 = arith.constant 0 : index
    %c0_47 = arith.constant 0 : index
    %c0_48 = arith.constant 0 : index
    %139 = vector.load %arg11[%c0_46, %c0_47, %c0_48] : memref<2x1x2048xf32, #tpu.memory_space<vmem>>, vector<1x1x2048xf32>
    %140 = vector.shape_cast %139 : vector<1x1x2048xf32> to vector<1x2048xf32>
    %141 = vector.broadcast %140 : vector<1x2048xf32> to vector<8x2048xf32>
    %142 = arith.addf %138, %141 : vector<8x2048xf32>
    %cst_49 = arith.constant 0.000000e+00 : f32
    %143 = vector.broadcast %cst_49 : f32 to vector<8x2048xf32>
    %144 = arith.maximumf %142, %143 : vector<8x2048xf32>
    %c0_50 = arith.constant 0 : index
    %c0_51 = arith.constant 0 : index
    %c0_52 = arith.constant 0 : index
    %145 = vector.load %arg12[%c0_50, %c0_51, %c0_52] : memref<2x2048x32xbf16, #tpu.memory_space<vmem>>, vector<1x2048x32xbf16>
    %146 = vector.shape_cast %145 : vector<1x2048x32xbf16> to vector<2048x32xbf16>
    %147 = arith.truncf %144 : vector<8x2048xf32> to vector<8x2048xbf16>
    %cst_53 = arith.constant dense<0.000000e+00> : vector<8x32xf32>
    %148 = tpu.matmul %147, %146, %cst_53 {dimension_numbers = #tpu.dot_dimension_numbers<[1], [0], [0], [1], [0, 0, 1, 1], [], []>} : vector<8x2048xbf16>, vector<2048x32xbf16>, vector<8x32xf32> -> vector<8x32xf32>
    %c0_54 = arith.constant 0 : index
    %c0_55 = arith.constant 0 : index
    %c0_56 = arith.constant 0 : index
    %149 = vector.load %arg13[%c0_54, %c0_55, %c0_56] : memref<2x1x32xf32, #tpu.memory_space<vmem>>, vector<1x1x32xf32>
    %150 = vector.shape_cast %149 : vector<1x1x32xf32> to vector<1x32xf32>
    %151 = vector.broadcast %150 : vector<1x32xf32> to vector<8x32xf32>
    %152 = arith.addf %148, %151 : vector<8x32xf32>
    %153 = arith.addf %134, %152 : vector<8x32xf32>
    %c0_57 = arith.constant 0 : index
    %c0_58 = arith.constant 0 : index
    %c0_59 = arith.constant 0 : index
    %154 = vector.load %arg8[%c0_57, %c0_58, %c0_59] : memref<2x1x32xf32, #tpu.memory_space<vmem>>, vector<1x1x32xf32>
    %155 = vector.shape_cast %154 : vector<1x1x32xf32> to vector<1x32xf32>
    %c0_60 = arith.constant 0 : index
    %c0_61 = arith.constant 0 : index
    %c0_62 = arith.constant 0 : index
    %156 = vector.load %arg9[%c0_60, %c0_61, %c0_62] : memref<2x1x32xf32, #tpu.memory_space<vmem>>, vector<1x1x32xf32>
    %157 = vector.shape_cast %156 : vector<1x1x32xf32> to vector<1x32xf32>
    %cst_63 = arith.constant dense<0.000000e+00> : vector<8xf32>
    %158 = vector.multi_reduction <add>, %153, %cst_63 [1] : vector<8x32xf32> to vector<8xf32>
    %159 = vector.shape_cast %158 : vector<8xf32> to vector<8x1xf32>
    %cst_64 = arith.constant 3.200000e+01 : f32
    %160 = vector.broadcast %cst_64 : f32 to vector<8x1xf32>
    %161 = arith.divf %159, %160 : vector<8x1xf32>
    %162 = vector.broadcast %161 : vector<8x1xf32> to vector<8x32xf32>
    %163 = arith.subf %153, %162 : vector<8x32xf32>
    %164 = arith.mulf %163, %163 : vector<8x32xf32>
    %cst_65 = arith.constant dense<0.000000e+00> : vector<8xf32>
    %165 = vector.multi_reduction <add>, %164, %cst_65 [1] : vector<8x32xf32> to vector<8xf32>
    %166 = vector.shape_cast %165 : vector<8xf32> to vector<8x1xf32>
    %cst_66 = arith.constant 3.200000e+01 : f32
    %167 = vector.broadcast %cst_66 : f32 to vector<8x1xf32>
    %168 = arith.divf %166, %167 : vector<8x1xf32>
    %169 = vector.broadcast %161 : vector<8x1xf32> to vector<8x32xf32>
    %170 = arith.subf %153, %169 : vector<8x32xf32>
    %cst_67 = arith.constant 9.99999974E-6 : f32
    %171 = vector.broadcast %cst_67 : f32 to vector<8x1xf32>
    %172 = arith.addf %168, %171 : vector<8x1xf32>
    %173 = math.rsqrt %172 : vector<8x1xf32>
    %174 = vector.broadcast %173 : vector<8x1xf32> to vector<8x32xf32>
    %175 = arith.mulf %170, %174 : vector<8x32xf32>
    %176 = vector.broadcast %155 : vector<1x32xf32> to vector<8x32xf32>
    %177 = arith.mulf %175, %176 : vector<8x32xf32>
    %178 = vector.broadcast %157 : vector<1x32xf32> to vector<8x32xf32>
    %179 = arith.addf %177, %178 : vector<8x32xf32>
    %c1 = arith.constant 1 : index
    %c0_68 = arith.constant 0 : index
    %c0_69 = arith.constant 0 : index
    %180 = vector.load %arg2[%c1, %c0_68, %c0_69] : memref<2x32x96xbf16, #tpu.memory_space<vmem>>, vector<1x32x96xbf16>
    %181 = vector.shape_cast %180 : vector<1x32x96xbf16> to vector<32x96xbf16>
    %182 = arith.truncf %179 : vector<8x32xf32> to vector<8x32xbf16>
    %cst_70 = arith.constant dense<0.000000e+00> : vector<8x96xf32>
    %183 = tpu.matmul %182, %181, %cst_70 {dimension_numbers = #tpu.dot_dimension_numbers<[1], [0], [0], [1], [0, 0, 1, 1], [], []>} : vector<8x32xbf16>, vector<32x96xbf16>, vector<8x96xf32> -> vector<8x96xf32>
    %c1_71 = arith.constant 1 : index
    %c0_72 = arith.constant 0 : index
    %c0_73 = arith.constant 0 : index
    %184 = vector.load %arg3[%c1_71, %c0_72, %c0_73] : memref<2x1x96xf32, #tpu.memory_space<vmem>>, vector<1x1x96xf32>
    %185 = vector.shape_cast %184 : vector<1x1x96xf32> to vector<1x96xf32>
    %186 = vector.broadcast %185 : vector<1x96xf32> to vector<8x96xf32>
    %187 = arith.addf %183, %186 : vector<8x96xf32>
    %188 = vector.extract_strided_slice %187 {offsets = [0, 0], sizes = [8, 8], strides = [1, 1]} : vector<8x96xf32> to vector<8x8xf32>
    %189 = vector.shape_cast %188 : vector<8x8xf32> to vector<1x8x8xf32>
    %190 = vector.extract_strided_slice %187 {offsets = [0, 32], sizes = [8, 8], strides = [1, 1]} : vector<8x96xf32> to vector<8x8xf32>
    %191 = vector.shape_cast %190 : vector<8x8xf32> to vector<1x8x8xf32>
    %192 = vector.extract_strided_slice %187 {offsets = [0, 64], sizes = [8, 8], strides = [1, 1]} : vector<8x96xf32> to vector<8x8xf32>
    %193 = vector.shape_cast %192 : vector<8x8xf32> to vector<1x8x8xf32>
    %194 = arith.truncf %189 : vector<1x8x8xf32> to vector<1x8x8xbf16>
    %195 = arith.truncf %191 : vector<1x8x8xf32> to vector<1x8x8xbf16>
    "tpu.trace_start"() <{level = 10 : i32, message = "bqd,bkd->bqk"}> : () -> ()
    %cst_74 = arith.constant dense<0.000000e+00> : vector<1x8x8xf32>
    %196 = tpu.matmul %194, %195, %cst_74 {dimension_numbers = #tpu.dot_dimension_numbers<[2], [2], [1], [1], [0, 0, 0, 1, 1, 1], [0], [0]>} : vector<1x8x8xbf16>, vector<1x8x8xbf16>, vector<1x8x8xf32> -> vector<1x8x8xf32>
    "tpu.trace_stop"() : () -> ()
    %cst_75 = arith.constant dense<0xFF800000> : vector<1x8xf32>
    %197 = vector.multi_reduction <maximumf>, %196, %cst_75 [2] : vector<1x8x8xf32> to vector<1x8xf32>
    %198 = vector.shape_cast %197 : vector<1x8xf32> to vector<1x8x1xf32>
    %199 = vector.broadcast %198 : vector<1x8x1xf32> to vector<1x8x8xf32>
    %200 = arith.subf %196, %199 : vector<1x8x8xf32>
    %201 = math.exp %200 : vector<1x8x8xf32>
    %cst_76 = arith.constant dense<0.000000e+00> : vector<1x8xf32>
    %202 = vector.multi_reduction <add>, %201, %cst_76 [2] : vector<1x8x8xf32> to vector<1x8xf32>
    %203 = vector.shape_cast %202 : vector<1x8xf32> to vector<1x8x1xf32>
    %204 = tpu.reciprocal %203 {approx = true} : vector<1x8x1xf32> -> vector<1x8x1xf32>
    %205 = vector.broadcast %204 : vector<1x8x1xf32> to vector<1x8x8xf32>
    %206 = arith.mulf %201, %205 : vector<1x8x8xf32>
    %207 = arith.truncf %206 : vector<1x8x8xf32> to vector<1x8x8xbf16>
    %208 = arith.truncf %193 : vector<1x8x8xf32> to vector<1x8x8xbf16>
    "tpu.trace_start"() <{level = 10 : i32, message = "bqk,bkd->bqd"}> : () -> ()
    %cst_77 = arith.constant dense<0.000000e+00> : vector<1x8x8xf32>
    %209 = tpu.matmul %207, %208, %cst_77 {dimension_numbers = #tpu.dot_dimension_numbers<[2], [1], [1], [2], [0, 0, 0, 1, 1, 2], [0], [0]>} : vector<1x8x8xbf16>, vector<1x8x8xbf16>, vector<1x8x8xf32> -> vector<1x8x8xf32>
    "tpu.trace_stop"() : () -> ()
    %210 = vector.extract_strided_slice %187 {offsets = [0, 8], sizes = [8, 8], strides = [1, 1]} : vector<8x96xf32> to vector<8x8xf32>
    %211 = vector.shape_cast %210 : vector<8x8xf32> to vector<1x8x8xf32>
    %212 = vector.extract_strided_slice %187 {offsets = [0, 40], sizes = [8, 8], strides = [1, 1]} : vector<8x96xf32> to vector<8x8xf32>
    %213 = vector.shape_cast %212 : vector<8x8xf32> to vector<1x8x8xf32>
    %214 = vector.extract_strided_slice %187 {offsets = [0, 72], sizes = [8, 8], strides = [1, 1]} : vector<8x96xf32> to vector<8x8xf32>
    %215 = vector.shape_cast %214 : vector<8x8xf32> to vector<1x8x8xf32>
    %216 = arith.truncf %211 : vector<1x8x8xf32> to vector<1x8x8xbf16>
    %217 = arith.truncf %213 : vector<1x8x8xf32> to vector<1x8x8xbf16>
    "tpu.trace_start"() <{level = 10 : i32, message = "bqd,bkd->bqk"}> : () -> ()
    %cst_78 = arith.constant dense<0.000000e+00> : vector<1x8x8xf32>
    %218 = tpu.matmul %216, %217, %cst_78 {dimension_numbers = #tpu.dot_dimension_numbers<[2], [2], [1], [1], [0, 0, 0, 1, 1, 1], [0], [0]>} : vector<1x8x8xbf16>, vector<1x8x8xbf16>, vector<1x8x8xf32> -> vector<1x8x8xf32>
    "tpu.trace_stop"() : () -> ()
    %cst_79 = arith.constant dense<0xFF800000> : vector<1x8xf32>
    %219 = vector.multi_reduction <maximumf>, %218, %cst_79 [2] : vector<1x8x8xf32> to vector<1x8xf32>
    %220 = vector.shape_cast %219 : vector<1x8xf32> to vector<1x8x1xf32>
    %221 = vector.broadcast %220 : vector<1x8x1xf32> to vector<1x8x8xf32>
    %222 = arith.subf %218, %221 : vector<1x8x8xf32>
    %223 = math.exp %222 : vector<1x8x8xf32>
    %cst_80 = arith.constant dense<0.000000e+00> : vector<1x8xf32>
    %224 = vector.multi_reduction <add>, %223, %cst_80 [2] : vector<1x8x8xf32> to vector<1x8xf32>
    %225 = vector.shape_cast %224 : vector<1x8xf32> to vector<1x8x1xf32>
    %226 = tpu.reciprocal %225 {approx = true} : vector<1x8x1xf32> -> vector<1x8x1xf32>
    %227 = vector.broadcast %226 : vector<1x8x1xf32> to vector<1x8x8xf32>
    %228 = arith.mulf %223, %227 : vector<1x8x8xf32>
    %229 = arith.truncf %228 : vector<1x8x8xf32> to vector<1x8x8xbf16>
    %230 = arith.truncf %215 : vector<1x8x8xf32> to vector<1x8x8xbf16>
    "tpu.trace_start"() <{level = 10 : i32, message = "bqk,bkd->bqd"}> : () -> ()
    %cst_81 = arith.constant dense<0.000000e+00> : vector<1x8x8xf32>
    %231 = tpu.matmul %229, %230, %cst_81 {dimension_numbers = #tpu.dot_dimension_numbers<[2], [1], [1], [2], [0, 0, 0, 1, 1, 2], [0], [0]>} : vector<1x8x8xbf16>, vector<1x8x8xbf16>, vector<1x8x8xf32> -> vector<1x8x8xf32>
    "tpu.trace_stop"() : () -> ()
    %232 = vector.extract_strided_slice %187 {offsets = [0, 16], sizes = [8, 8], strides = [1, 1]} : vector<8x96xf32> to vector<8x8xf32>
    %233 = vector.shape_cast %232 : vector<8x8xf32> to vector<1x8x8xf32>
    %234 = vector.extract_strided_slice %187 {offsets = [0, 48], sizes = [8, 8], strides = [1, 1]} : vector<8x96xf32> to vector<8x8xf32>
    %235 = vector.shape_cast %234 : vector<8x8xf32> to vector<1x8x8xf32>
    %236 = vector.extract_strided_slice %187 {offsets = [0, 80], sizes = [8, 8], strides = [1, 1]} : vector<8x96xf32> to vector<8x8xf32>
    %237 = vector.shape_cast %236 : vector<8x8xf32> to vector<1x8x8xf32>
    %238 = arith.truncf %233 : vector<1x8x8xf32> to vector<1x8x8xbf16>
    %239 = arith.truncf %235 : vector<1x8x8xf32> to vector<1x8x8xbf16>
    "tpu.trace_start"() <{level = 10 : i32, message = "bqd,bkd->bqk"}> : () -> ()
    %cst_82 = arith.constant dense<0.000000e+00> : vector<1x8x8xf32>
    %240 = tpu.matmul %238, %239, %cst_82 {dimension_numbers = #tpu.dot_dimension_numbers<[2], [2], [1], [1], [0, 0, 0, 1, 1, 1], [0], [0]>} : vector<1x8x8xbf16>, vector<1x8x8xbf16>, vector<1x8x8xf32> -> vector<1x8x8xf32>
    "tpu.trace_stop"() : () -> ()
    %cst_83 = arith.constant dense<0xFF800000> : vector<1x8xf32>
    %241 = vector.multi_reduction <maximumf>, %240, %cst_83 [2] : vector<1x8x8xf32> to vector<1x8xf32>
    %242 = vector.shape_cast %241 : vector<1x8xf32> to vector<1x8x1xf32>
    %243 = vector.broadcast %242 : vector<1x8x1xf32> to vector<1x8x8xf32>
    %244 = arith.subf %240, %243 : vector<1x8x8xf32>
    %245 = math.exp %244 : vector<1x8x8xf32>
    %cst_84 = arith.constant dense<0.000000e+00> : vector<1x8xf32>
    %246 = vector.multi_reduction <add>, %245, %cst_84 [2] : vector<1x8x8xf32> to vector<1x8xf32>
    %247 = vector.shape_cast %246 : vector<1x8xf32> to vector<1x8x1xf32>
    %248 = tpu.reciprocal %247 {approx = true} : vector<1x8x1xf32> -> vector<1x8x1xf32>
    %249 = vector.broadcast %248 : vector<1x8x1xf32> to vector<1x8x8xf32>
    %250 = arith.mulf %245, %249 : vector<1x8x8xf32>
    %251 = arith.truncf %250 : vector<1x8x8xf32> to vector<1x8x8xbf16>
    %252 = arith.truncf %237 : vector<1x8x8xf32> to vector<1x8x8xbf16>
    "tpu.trace_start"() <{level = 10 : i32, message = "bqk,bkd->bqd"}> : () -> ()
    %cst_85 = arith.constant dense<0.000000e+00> : vector<1x8x8xf32>
    %253 = tpu.matmul %251, %252, %cst_85 {dimension_numbers = #tpu.dot_dimension_numbers<[2], [1], [1], [2], [0, 0, 0, 1, 1, 2], [0], [0]>} : vector<1x8x8xbf16>, vector<1x8x8xbf16>, vector<1x8x8xf32> -> vector<1x8x8xf32>
    "tpu.trace_stop"() : () -> ()
    %254 = vector.extract_strided_slice %187 {offsets = [0, 24], sizes = [8, 8], strides = [1, 1]} : vector<8x96xf32> to vector<8x8xf32>
    %255 = vector.shape_cast %254 : vector<8x8xf32> to vector<1x8x8xf32>
    %256 = vector.extract_strided_slice %187 {offsets = [0, 56], sizes = [8, 8], strides = [1, 1]} : vector<8x96xf32> to vector<8x8xf32>
    %257 = vector.shape_cast %256 : vector<8x8xf32> to vector<1x8x8xf32>
    %258 = vector.extract_strided_slice %187 {offsets = [0, 88], sizes = [8, 8], strides = [1, 1]} : vector<8x96xf32> to vector<8x8xf32>
    %259 = vector.shape_cast %258 : vector<8x8xf32> to vector<1x8x8xf32>
    %260 = arith.truncf %255 : vector<1x8x8xf32> to vector<1x8x8xbf16>
    %261 = arith.truncf %257 : vector<1x8x8xf32> to vector<1x8x8xbf16>
    "tpu.trace_start"() <{level = 10 : i32, message = "bqd,bkd->bqk"}> : () -> ()
    %cst_86 = arith.constant dense<0.000000e+00> : vector<1x8x8xf32>
    %262 = tpu.matmul %260, %261, %cst_86 {dimension_numbers = #tpu.dot_dimension_numbers<[2], [2], [1], [1], [0, 0, 0, 1, 1, 1], [0], [0]>} : vector<1x8x8xbf16>, vector<1x8x8xbf16>, vector<1x8x8xf32> -> vector<1x8x8xf32>
    "tpu.trace_stop"() : () -> ()
    %cst_87 = arith.constant dense<0xFF800000> : vector<1x8xf32>
    %263 = vector.multi_reduction <maximumf>, %262, %cst_87 [2] : vector<1x8x8xf32> to vector<1x8xf32>
    %264 = vector.shape_cast %263 : vector<1x8xf32> to vector<1x8x1xf32>
    %265 = vector.broadcast %264 : vector<1x8x1xf32> to vector<1x8x8xf32>
    %266 = arith.subf %262, %265 : vector<1x8x8xf32>
    %267 = math.exp %266 : vector<1x8x8xf32>
    %cst_88 = arith.constant dense<0.000000e+00> : vector<1x8xf32>
    %268 = vector.multi_reduction <add>, %267, %cst_88 [2] : vector<1x8x8xf32> to vector<1x8xf32>
    %269 = vector.shape_cast %268 : vector<1x8xf32> to vector<1x8x1xf32>
    %270 = tpu.reciprocal %269 {approx = true} : vector<1x8x1xf32> -> vector<1x8x1xf32>
    %271 = vector.broadcast %270 : vector<1x8x1xf32> to vector<1x8x8xf32>
    %272 = arith.mulf %267, %271 : vector<1x8x8xf32>
    %273 = arith.truncf %272 : vector<1x8x8xf32> to vector<1x8x8xbf16>
    %274 = arith.truncf %259 : vector<1x8x8xf32> to vector<1x8x8xbf16>
    "tpu.trace_start"() <{level = 10 : i32, message = "bqk,bkd->bqd"}> : () -> ()
    %cst_89 = arith.constant dense<0.000000e+00> : vector<1x8x8xf32>
    %275 = tpu.matmul %273, %274, %cst_89 {dimension_numbers = #tpu.dot_dimension_numbers<[2], [1], [1], [2], [0, 0, 0, 1, 1, 2], [0], [0]>} : vector<1x8x8xbf16>, vector<1x8x8xbf16>, vector<1x8x8xf32> -> vector<1x8x8xf32>
    "tpu.trace_stop"() : () -> ()
    %276 = tpu.concatenate %209, %231, %253, %275 in 2 : vector<1x8x8xf32>, vector<1x8x8xf32>, vector<1x8x8xf32>, vector<1x8x8xf32> -> vector<1x8x32xf32>
    %277 = vector.shape_cast %276 : vector<1x8x32xf32> to vector<8x32xf32>
    %c1_90 = arith.constant 1 : index
    %c0_91 = arith.constant 0 : index
    %c0_92 = arith.constant 0 : index
    %278 = vector.load %arg4[%c1_90, %c0_91, %c0_92] : memref<2x32x32xbf16, #tpu.memory_space<vmem>>, vector<1x32x32xbf16>
    %279 = vector.shape_cast %278 : vector<1x32x32xbf16> to vector<32x32xbf16>
    %280 = arith.truncf %277 : vector<8x32xf32> to vector<8x32xbf16>
    %cst_93 = arith.constant dense<0.000000e+00> : vector<8x32xf32>
    %281 = tpu.matmul %280, %279, %cst_93 {dimension_numbers = #tpu.dot_dimension_numbers<[1], [0], [0], [1], [0, 0, 1, 1], [], []>} : vector<8x32xbf16>, vector<32x32xbf16>, vector<8x32xf32> -> vector<8x32xf32>
    %c1_94 = arith.constant 1 : index
    %c0_95 = arith.constant 0 : index
    %c0_96 = arith.constant 0 : index
    %282 = vector.load %arg5[%c1_94, %c0_95, %c0_96] : memref<2x1x32xf32, #tpu.memory_space<vmem>>, vector<1x1x32xf32>
    %283 = vector.shape_cast %282 : vector<1x1x32xf32> to vector<1x32xf32>
    %284 = vector.broadcast %283 : vector<1x32xf32> to vector<8x32xf32>
    %285 = arith.addf %281, %284 : vector<8x32xf32>
    %286 = arith.addf %179, %285 : vector<8x32xf32>
    %c1_97 = arith.constant 1 : index
    %c0_98 = arith.constant 0 : index
    %c0_99 = arith.constant 0 : index
    %287 = vector.load %arg6[%c1_97, %c0_98, %c0_99] : memref<2x1x32xf32, #tpu.memory_space<vmem>>, vector<1x1x32xf32>
    %288 = vector.shape_cast %287 : vector<1x1x32xf32> to vector<1x32xf32>
    %c1_100 = arith.constant 1 : index
    %c0_101 = arith.constant 0 : index
    %c0_102 = arith.constant 0 : index
    %289 = vector.load %arg7[%c1_100, %c0_101, %c0_102] : memref<2x1x32xf32, #tpu.memory_space<vmem>>, vector<1x1x32xf32>
    %290 = vector.shape_cast %289 : vector<1x1x32xf32> to vector<1x32xf32>
    %cst_103 = arith.constant dense<0.000000e+00> : vector<8xf32>
    %291 = vector.multi_reduction <add>, %286, %cst_103 [1] : vector<8x32xf32> to vector<8xf32>
    %292 = vector.shape_cast %291 : vector<8xf32> to vector<8x1xf32>
    %cst_104 = arith.constant 3.200000e+01 : f32
    %293 = vector.broadcast %cst_104 : f32 to vector<8x1xf32>
    %294 = arith.divf %292, %293 : vector<8x1xf32>
    %295 = vector.broadcast %294 : vector<8x1xf32> to vector<8x32xf32>
    %296 = arith.subf %286, %295 : vector<8x32xf32>
    %297 = arith.mulf %296, %296 : vector<8x32xf32>
    %cst_105 = arith.constant dense<0.000000e+00> : vector<8xf32>
    %298 = vector.multi_reduction <add>, %297, %cst_105 [1] : vector<8x32xf32> to vector<8xf32>
    %299 = vector.shape_cast %298 : vector<8xf32> to vector<8x1xf32>
    %cst_106 = arith.constant 3.200000e+01 : f32
    %300 = vector.broadcast %cst_106 : f32 to vector<8x1xf32>
    %301 = arith.divf %299, %300 : vector<8x1xf32>
    %302 = vector.broadcast %294 : vector<8x1xf32> to vector<8x32xf32>
    %303 = arith.subf %286, %302 : vector<8x32xf32>
    %cst_107 = arith.constant 9.99999974E-6 : f32
    %304 = vector.broadcast %cst_107 : f32 to vector<8x1xf32>
    %305 = arith.addf %301, %304 : vector<8x1xf32>
    %306 = math.rsqrt %305 : vector<8x1xf32>
    %307 = vector.broadcast %306 : vector<8x1xf32> to vector<8x32xf32>
    %308 = arith.mulf %303, %307 : vector<8x32xf32>
    %309 = vector.broadcast %288 : vector<1x32xf32> to vector<8x32xf32>
    %310 = arith.mulf %308, %309 : vector<8x32xf32>
    %311 = vector.broadcast %290 : vector<1x32xf32> to vector<8x32xf32>
    %312 = arith.addf %310, %311 : vector<8x32xf32>
    %c1_108 = arith.constant 1 : index
    %c0_109 = arith.constant 0 : index
    %c0_110 = arith.constant 0 : index
    %313 = vector.load %arg10[%c1_108, %c0_109, %c0_110] : memref<2x32x2048xbf16, #tpu.memory_space<vmem>>, vector<1x32x2048xbf16>
    %314 = vector.shape_cast %313 : vector<1x32x2048xbf16> to vector<32x2048xbf16>
    %315 = arith.truncf %312 : vector<8x32xf32> to vector<8x32xbf16>
    %cst_111 = arith.constant dense<0.000000e+00> : vector<8x2048xf32>
    %316 = tpu.matmul %315, %314, %cst_111 {dimension_numbers = #tpu.dot_dimension_numbers<[1], [0], [0], [1], [0, 0, 1, 1], [], []>} : vector<8x32xbf16>, vector<32x2048xbf16>, vector<8x2048xf32> -> vector<8x2048xf32>
    %c1_112 = arith.constant 1 : index
    %c0_113 = arith.constant 0 : index
    %c0_114 = arith.constant 0 : index
    %317 = vector.load %arg11[%c1_112, %c0_113, %c0_114] : memref<2x1x2048xf32, #tpu.memory_space<vmem>>, vector<1x1x2048xf32>
    %318 = vector.shape_cast %317 : vector<1x1x2048xf32> to vector<1x2048xf32>
    %319 = vector.broadcast %318 : vector<1x2048xf32> to vector<8x2048xf32>
    %320 = arith.addf %316, %319 : vector<8x2048xf32>
    %cst_115 = arith.constant 0.000000e+00 : f32
    %321 = vector.broadcast %cst_115 : f32 to vector<8x2048xf32>
    %322 = arith.maximumf %320, %321 : vector<8x2048xf32>
    %c1_116 = arith.constant 1 : index
    %c0_117 = arith.constant 0 : index
    %c0_118 = arith.constant 0 : index
    %323 = vector.load %arg12[%c1_116, %c0_117, %c0_118] : memref<2x2048x32xbf16, #tpu.memory_space<vmem>>, vector<1x2048x32xbf16>
    %324 = vector.shape_cast %323 : vector<1x2048x32xbf16> to vector<2048x32xbf16>
    %325 = arith.truncf %322 : vector<8x2048xf32> to vector<8x2048xbf16>
    %cst_119 = arith.constant dense<0.000000e+00> : vector<8x32xf32>
    %326 = tpu.matmul %325, %324, %cst_119 {dimension_numbers = #tpu.dot_dimension_numbers<[1], [0], [0], [1], [0, 0, 1, 1], [], []>} : vector<8x2048xbf16>, vector<2048x32xbf16>, vector<8x32xf32> -> vector<8x32xf32>
    %c1_120 = arith.constant 1 : index
    %c0_121 = arith.constant 0 : index
    %c0_122 = arith.constant 0 : index
    %327 = vector.load %arg13[%c1_120, %c0_121, %c0_122] : memref<2x1x32xf32, #tpu.memory_space<vmem>>, vector<1x1x32xf32>
    %328 = vector.shape_cast %327 : vector<1x1x32xf32> to vector<1x32xf32>
    %329 = vector.broadcast %328 : vector<1x32xf32> to vector<8x32xf32>
    %330 = arith.addf %326, %329 : vector<8x32xf32>
    %331 = arith.addf %312, %330 : vector<8x32xf32>
    %c1_123 = arith.constant 1 : index
    %c0_124 = arith.constant 0 : index
    %c0_125 = arith.constant 0 : index
    %332 = vector.load %arg8[%c1_123, %c0_124, %c0_125] : memref<2x1x32xf32, #tpu.memory_space<vmem>>, vector<1x1x32xf32>
    %333 = vector.shape_cast %332 : vector<1x1x32xf32> to vector<1x32xf32>
    %c1_126 = arith.constant 1 : index
    %c0_127 = arith.constant 0 : index
    %c0_128 = arith.constant 0 : index
    %334 = vector.load %arg9[%c1_126, %c0_127, %c0_128] : memref<2x1x32xf32, #tpu.memory_space<vmem>>, vector<1x1x32xf32>
    %335 = vector.shape_cast %334 : vector<1x1x32xf32> to vector<1x32xf32>
    %cst_129 = arith.constant dense<0.000000e+00> : vector<8xf32>
    %336 = vector.multi_reduction <add>, %331, %cst_129 [1] : vector<8x32xf32> to vector<8xf32>
    %337 = vector.shape_cast %336 : vector<8xf32> to vector<8x1xf32>
    %cst_130 = arith.constant 3.200000e+01 : f32
    %338 = vector.broadcast %cst_130 : f32 to vector<8x1xf32>
    %339 = arith.divf %337, %338 : vector<8x1xf32>
    %340 = vector.broadcast %339 : vector<8x1xf32> to vector<8x32xf32>
    %341 = arith.subf %331, %340 : vector<8x32xf32>
    %342 = arith.mulf %341, %341 : vector<8x32xf32>
    %cst_131 = arith.constant dense<0.000000e+00> : vector<8xf32>
    %343 = vector.multi_reduction <add>, %342, %cst_131 [1] : vector<8x32xf32> to vector<8xf32>
    %344 = vector.shape_cast %343 : vector<8xf32> to vector<8x1xf32>
    %cst_132 = arith.constant 3.200000e+01 : f32
    %345 = vector.broadcast %cst_132 : f32 to vector<8x1xf32>
    %346 = arith.divf %344, %345 : vector<8x1xf32>
    %347 = vector.broadcast %339 : vector<8x1xf32> to vector<8x32xf32>
    %348 = arith.subf %331, %347 : vector<8x32xf32>
    %cst_133 = arith.constant 9.99999974E-6 : f32
    %349 = vector.broadcast %cst_133 : f32 to vector<8x1xf32>
    %350 = arith.addf %346, %349 : vector<8x1xf32>
    %351 = math.rsqrt %350 : vector<8x1xf32>
    %352 = vector.broadcast %351 : vector<8x1xf32> to vector<8x32xf32>
    %353 = arith.mulf %348, %352 : vector<8x32xf32>
    %354 = vector.broadcast %333 : vector<1x32xf32> to vector<8x32xf32>
    %355 = arith.mulf %353, %354 : vector<8x32xf32>
    %356 = vector.broadcast %335 : vector<1x32xf32> to vector<8x32xf32>
    %357 = arith.addf %355, %356 : vector<8x32xf32>
    %358 = vector.shape_cast %357 : vector<8x32xf32> to vector<1x8x32xf32>
    %cst_134 = arith.constant dense<0.000000e+00> : vector<1x32xf32>
    %359 = vector.multi_reduction <add>, %358, %cst_134 [1] : vector<1x8x32xf32> to vector<1x32xf32>
    %cst_135 = arith.constant 8.000000e+00 : f32
    %360 = vector.broadcast %cst_135 : f32 to vector<1x32xf32>
    %361 = arith.divf %359, %360 : vector<1x32xf32>
    %c0_136 = arith.constant 0 : index
    %c0_137 = arith.constant 0 : index
    %362 = vector.load %arg14[%c0_136, %c0_137] : memref<32x64xbf16, #tpu.memory_space<vmem>>, vector<32x64xbf16>
    %363 = arith.truncf %361 : vector<1x32xf32> to vector<1x32xbf16>
    %cst_138 = arith.constant dense<0.000000e+00> : vector<1x64xf32>
    %364 = tpu.matmul %363, %362, %cst_138 {dimension_numbers = #tpu.dot_dimension_numbers<[1], [0], [0], [1], [0, 0, 1, 1], [], []>} : vector<1x32xbf16>, vector<32x64xbf16>, vector<1x64xf32> -> vector<1x64xf32>
    %c0_139 = arith.constant 0 : index
    %c0_140 = arith.constant 0 : index
    %365 = vector.load %arg15[%c0_139, %c0_140] : memref<1x64xf32, #tpu.memory_space<vmem>>, vector<1x64xf32>
    %366 = arith.addf %364, %365 : vector<1x64xf32>
    %cst_141 = arith.constant 0.000000e+00 : f32
    %367 = vector.broadcast %cst_141 : f32 to vector<1x64xf32>
    %368 = arith.maximumf %366, %367 : vector<1x64xf32>
    %c0_142 = arith.constant 0 : index
    %c0_143 = arith.constant 0 : index
    %369 = vector.load %arg16[%c0_142, %c0_143] : memref<64x5xbf16, #tpu.memory_space<vmem>>, vector<64x5xbf16>
    %370 = arith.truncf %368 : vector<1x64xf32> to vector<1x64xbf16>
    %cst_144 = arith.constant dense<0.000000e+00> : vector<1x5xf32>
    %371 = tpu.matmul %370, %369, %cst_144 {dimension_numbers = #tpu.dot_dimension_numbers<[1], [0], [0], [1], [0, 0, 1, 1], [], []>} : vector<1x64xbf16>, vector<64x5xbf16>, vector<1x5xf32> -> vector<1x5xf32>
    %c0_145 = arith.constant 0 : index
    %c0_146 = arith.constant 0 : index
    %372 = vector.load %arg17[%c0_145, %c0_146] : memref<1x5xf32, #tpu.memory_space<vmem>>, vector<1x5xf32>
    %373 = arith.addf %371, %372 : vector<1x5xf32>
    %c0_147 = arith.constant 0 : index
    %c0_148 = arith.constant 0 : index
    %c0_149 = arith.constant 0 : index
    %374 = vector.load %arg18[%c0_147, %c0_148, %c0_149] : memref<1x1x5xf32, #tpu.memory_space<vmem>>, vector<1x1x5xf32>
    %375 = vector.shape_cast %374 : vector<1x1x5xf32> to vector<1x5xf32>
    %376 = vector.shape_cast %373 : vector<1x5xf32> to vector<1x1x5xf32>
    tpu.vector_store %arg18[%c0_147, %c0_148, %c0_149], %376 {strides = array<i32>} : memref<1x1x5xf32, #tpu.memory_space<vmem>>, vector<1x1x5xf32>,
    return
  }
  func.func @transform_0(%arg0: i32) -> (i32, i32, i32) {
    %c0_i32 = arith.constant 0 : i32
    %c0_i32_0 = arith.constant 0 : i32
    %c0_i32_1 = arith.constant 0 : i32
    return %arg0, %c0_i32, %c0_i32_0 : i32, i32, i32
  }
  func.func @transform_1(%arg0: i32) -> (i32, i32, i32) {
    %c0_i32 = arith.constant 0 : i32
    %c0_i32_0 = arith.constant 0 : i32
    %c0_i32_1 = arith.constant 0 : i32
    %c0_i32_2 = arith.constant 0 : i32
    return %c0_i32, %c0_i32_0, %c0_i32_1 : i32, i32, i32
  }
  func.func @transform_2(%arg0: i32) -> (i32, i32, i32) {
    %c0_i32 = arith.constant 0 : i32
    %c0_i32_0 = arith.constant 0 : i32
    %c0_i32_1 = arith.constant 0 : i32
    %c0_i32_2 = arith.constant 0 : i32
    return %c0_i32, %c0_i32_0, %c0_i32_1 : i32, i32, i32
  }
  func.func @transform_3(%arg0: i32) -> (i32, i32, i32) {
    %c0_i32 = arith.constant 0 : i32
    %c0_i32_0 = arith.constant 0 : i32
    %c0_i32_1 = arith.constant 0 : i32
    %c0_i32_2 = arith.constant 0 : i32
    return %c0_i32, %c0_i32_0, %c0_i32_1 : i32, i32, i32
  }
  func.func @transform_4(%arg0: i32) -> (i32, i32, i32) {
    %c0_i32 = arith.constant 0 : i32
    %c0_i32_0 = arith.constant 0 : i32
    %c0_i32_1 = arith.constant 0 : i32
    %c0_i32_2 = arith.constant 0 : i32
    return %c0_i32, %c0_i32_0, %c0_i32_1 : i32, i32, i32
  }
  func.func @transform_5(%arg0: i32) -> (i32, i32, i32) {
    %c0_i32 = arith.constant 0 : i32
    %c0_i32_0 = arith.constant 0 : i32
    %c0_i32_1 = arith.constant 0 : i32
    %c0_i32_2 = arith.constant 0 : i32
    return %c0_i32, %c0_i32_0, %c0_i32_1 : i32, i32, i32
  }
  func.func @transform_6(%arg0: i32) -> (i32, i32, i32) {
    %c0_i32 = arith.constant 0 : i32
    %c0_i32_0 = arith.constant 0 : i32
    %c0_i32_1 = arith.constant 0 : i32
    %c0_i32_2 = arith.constant 0 : i32
    return %c0_i32, %c0_i32_0, %c0_i32_1 : i32, i32, i32
  }
  func.func @transform_7(%arg0: i32) -> (i32, i32, i32) {
    %c0_i32 = arith.constant 0 : i32
    %c0_i32_0 = arith.constant 0 : i32
    %c0_i32_1 = arith.constant 0 : i32
    %c0_i32_2 = arith.constant 0 : i32
    return %c0_i32, %c0_i32_0, %c0_i32_1 : i32, i32, i32
  }
  func.func @transform_8(%arg0: i32) -> (i32, i32, i32) {
    %c0_i32 = arith.constant 0 : i32
    %c0_i32_0 = arith.constant 0 : i32
    %c0_i32_1 = arith.constant 0 : i32
    %c0_i32_2 = arith.constant 0 : i32
    return %c0_i32, %c0_i32_0, %c0_i32_1 : i32, i32, i32
  }
  func.func @transform_9(%arg0: i32) -> (i32, i32, i32) {
    %c0_i32 = arith.constant 0 : i32
    %c0_i32_0 = arith.constant 0 : i32
    %c0_i32_1 = arith.constant 0 : i32
    %c0_i32_2 = arith.constant 0 : i32
    return %c0_i32, %c0_i32_0, %c0_i32_1 : i32, i32, i32
  }
  func.func @transform_10(%arg0: i32) -> (i32, i32, i32) {
    %c0_i32 = arith.constant 0 : i32
    %c0_i32_0 = arith.constant 0 : i32
    %c0_i32_1 = arith.constant 0 : i32
    %c0_i32_2 = arith.constant 0 : i32
    return %c0_i32, %c0_i32_0, %c0_i32_1 : i32, i32, i32
  }
  func.func @transform_11(%arg0: i32) -> (i32, i32, i32) {
    %c0_i32 = arith.constant 0 : i32
    %c0_i32_0 = arith.constant 0 : i32
    %c0_i32_1 = arith.constant 0 : i32
    %c0_i32_2 = arith.constant 0 : i32
    return %c0_i32, %c0_i32_0, %c0_i32_1 : i32, i32, i32
  }
  func.func @transform_12(%arg0: i32) -> (i32, i32, i32) {
    %c0_i32 = arith.constant 0 : i32
    %c0_i32_0 = arith.constant 0 : i32
    %c0_i32_1 = arith.constant 0 : i32
    %c0_i32_2 = arith.constant 0 : i32
    return %c0_i32, %c0_i32_0, %c0_i32_1 : i32, i32, i32
  }
  func.func @transform_13(%arg0: i32) -> (i32, i32) {
    %c0_i32 = arith.constant 0 : i32
    %c0_i32_0 = arith.constant 0 : i32
    %c0_i32_1 = arith.constant 0 : i32
    return %c0_i32, %c0_i32_0 : i32, i32
  }
  func.func @transform_14(%arg0: i32) -> (i32, i32) {
    %c0_i32 = arith.constant 0 : i32
    %c0_i32_0 = arith.constant 0 : i32
    %c0_i32_1 = arith.constant 0 : i32
    return %c0_i32, %c0_i32_0 : i32, i32
  }
  func.func @transform_15(%arg0: i32) -> (i32, i32) {
    %c0_i32 = arith.constant 0 : i32
    %c0_i32_0 = arith.constant 0 : i32
    %c0_i32_1 = arith.constant 0 : i32
    return %c0_i32, %c0_i32_0 : i32, i32
  }
  func.func @transform_16(%arg0: i32) -> (i32, i32) {
    %c0_i32 = arith.constant 0 : i32
    %c0_i32_0 = arith.constant 0 : i32
    %c0_i32_1 = arith.constant 0 : i32
    return %c0_i32, %c0_i32_0 : i32, i32
  }
  func.func @transform_17(%arg0: i32) -> (i32, i32, i32) {
    %c0_i32 = arith.constant 0 : i32
    %c0_i32_0 = arith.constant 0 : i32
    %c0_i32_1 = arith.constant 0 : i32
    return %arg0, %c0_i32, %c0_i32_0 : i32, i32, i32
  }
}

</mosaic_0001>

<llo_original>
// kernel: tpu_custom_call.1
$region0: #{tpu_custom_call.1}
  #allocation0 [shape = 'u32[]', space=smem, size = 0x4, offset = 0x4, fixed_abs, tag = 'smem constant byte address 0x4 - core index']
  #allocation1 [shape = 'u32[144,128]{1,0:T(1,128)}', space=vmem, size = 0x12000, scoped, tag = 'internal scratch']
  %s0 = inlined_call_operand.vmem [shape: f32[2,8,32], index: 0, kind: input, shape index: {}]
  %s1 = inlined_call_operand.vmem [shape: bf16[2,32,96], index: 1, kind: input, shape index: {}]
  %s2 = inlined_call_operand.vmem [shape: f32[2,1,96], index: 2, kind: input, shape index: {}]
  %s3 = inlined_call_operand.vmem [shape: bf16[2,32,32], index: 3, kind: input, shape index: {}]
  %s4 = inlined_call_operand.vmem [shape: f32[2,1,32], index: 4, kind: input, shape index: {}]
  %s5 = inlined_call_operand.vmem [shape: f32[2,1,32], index: 5, kind: input, shape index: {}]
  %s6 = inlined_call_operand.vmem [shape: f32[2,1,32], index: 6, kind: input, shape index: {}]
  %s7 = inlined_call_operand.vmem [shape: f32[2,1,32], index: 7, kind: input, shape index: {}]
  %s8 = inlined_call_operand.vmem [shape: f32[2,1,32], index: 8, kind: input, shape index: {}]
  %s9 = inlined_call_operand.vmem [shape: bf16[2,32,2048], index: 9, kind: input, shape index: {}]
  %s10 = inlined_call_operand.vmem [shape: f32[2,1,2048], index: 10, kind: input, shape index: {}]
  %s11 = inlined_call_operand.vmem [shape: bf16[2,2048,32], index: 11, kind: input, shape index: {}]
  %s12 = inlined_call_operand.vmem [shape: f32[2,1,32], index: 12, kind: input, shape index: {}]
  %s13 = inlined_call_operand.vmem [shape: bf16[32,64], index: 13, kind: input, shape index: {}]
  %s14 = inlined_call_operand.vmem [shape: f32[1,64], index: 14, kind: input, shape index: {}]
  %s15 = inlined_call_operand.vmem [shape: bf16[64,5], index: 15, kind: input, shape index: {}]
  %s16 = inlined_call_operand.vmem [shape: f32[1,5], index: 16, kind: input, shape index: {}]
  %s17 = inlined_call_operand.hbm [shape: f32[2,1,5], index: 17, kind: output, shape index: {}]
  %s18 = sld [smem:[#allocation0]]
  $region101: #{tpu_custom_call.1} parent=0
    _
  %s20 = ssub.s32 1, %s18
  %s21 = scalar_select 0, %s20, %s18
  $region1: #{tpu_custom_call.1} parent=0
    #allocation2 [shape = 'u8[1024]{0}', space=vmem, size = 0x400, scoped, tag = 'output window, operand 0']
    #allocation3 [shape = 's32[2]{0}', space=sflag, size = 0x8, scoped, tag = 'scoped memory for tpu_custom_call.1']
    %22 = vsyncpa [#allocation3], 0
    %s23 = scalar_lea.sflag [#allocation3], 1
    %24 = vsyncpa %s23, 0
    loop: start=0, step=1, limit=4
    $region2: #{tpu_custom_call.1} parent=1 // loop_pre_header
      _
    $region3: #{tpu_custom_call.1} parent=1 // loop_header
      %s26 = sphi 0, %s30
      %p27 = scmp.ge.s32.totalorder %s26, 4
      %s36 = sphi 0, %s38
      %s39 = sphi 0, %s36
      %s40 = sphi 0, %s39
      %s56 = sphi 0, %s40
      %s60 = sphi 0, %s60
      %s62 = sphi 0, %s60
      %s63 = sphi 0, %s62
      %s77 = sphi 0, %s63
      %s81 = sphi 0, %s81
      %s83 = sphi 0, %s81
      %s84 = sphi 0, %s83
      %s98 = sphi 0, %s84
      %s102 = sphi 0, %s102
      %s104 = sphi 0, %s102
      %s105 = sphi 0, %s104
      %s119 = sphi 0, %s105
      %s123 = sphi 0, %s123
      %s125 = sphi 0, %s123
      %s126 = sphi 0, %s125
      %s140 = sphi 0, %s126
      %s144 = sphi 0, %s144
      %s146 = sphi 0, %s144
      %s147 = sphi 0, %s146
      %s161 = sphi 0, %s147
      %s165 = sphi 0, %s165
      %s167 = sphi 0, %s165
      %s168 = sphi 0, %s167
      %s182 = sphi 0, %s168
      %s186 = sphi 0, %s186
      %s188 = sphi 0, %s186
      %s189 = sphi 0, %s188
      %s203 = sphi 0, %s189
      %s207 = sphi 0, %s207
      %s209 = sphi 0, %s207
      %s210 = sphi 0, %s209
      %s224 = sphi 0, %s210
      %s228 = sphi 0, %s228
      %s230 = sphi 0, %s228
      %s231 = sphi 0, %s230
      %s245 = sphi 0, %s231
      %s249 = sphi 0, %s249
      %s251 = sphi 0, %s249
      %s252 = sphi 0, %s251
      %s266 = sphi 0, %s252
      %s270 = sphi 0, %s270
      %s272 = sphi 0, %s270
      %s273 = sphi 0, %s272
      %s287 = sphi 0, %s273
      %s291 = sphi 0, %s291
      %s293 = sphi 0, %s291
      %s294 = sphi 0, %s293
      %s308 = sphi 0, %s294
      %s312 = sphi 0, %s312
      %s314 = sphi 0, %s312
      %s315 = sphi 0, %s314
      %s329 = sphi 0, %s315
      %s333 = sphi 0, %s333
      %s335 = sphi 0, %s333
      %s336 = sphi 0, %s335
      %s350 = sphi 0, %s336
      %s354 = sphi 0, %s354
      %s356 = sphi 0, %s354
      %s357 = sphi 0, %s356
      %s371 = sphi 0, %s357
      %s375 = sphi 0, %s375
      %s377 = sphi 0, %s375
      %s378 = sphi 0, %s377
      %s392 = sphi 0, %s378
      %s398 = sphi 0, %s400
      %s401 = sphi 0, %s398
      %s402 = sphi 0, %s401
      %s418 = sphi 0, %s402
    $region4: #{tpu_custom_call.1} parent=1 // loop_header_branch
      %29 = sbr.rel (%p27) target = $region8
    $region5: #{tpu_custom_call.1} parent=1 // loop_body
      %s31 = ssub.s32 %s26, 1
      %s32 = ssub.s32 %s26, 2
      %s33 = sadd.s32 %s26, 1
      %s34 = ssub.s32 %s26, %s33
      %p35 = scmp.eq.s32.totalorder %s34, 0
      %s37 = sadd.s32 %s36, 1
      %s38 = scalar_select %p35, %s36, %s37
      %p41 = pneg %p35
      %p42 = scmp.eq.s32.totalorder %s26, 1
      %p43 = por %p41, %p42
      %p44 = scmp.ne.s32.totalorder %s36, %s39
      %p45 = scmp.eq.s32.totalorder %s26, 0
      %p46 = por %p44, %p45
      %p47 = scmp.ne.s32.totalorder %s36, %s39
      %p48 = scmp.eq.s32.totalorder %s31, 1
      %p49 = por %p47, %p48
      %p50 = scmp.ne.s32.totalorder %s39, %s40
      %p51 = scmp.eq.s32.totalorder %s31, 0
      %p52 = por %p50, %p51
      %p53 = scmp.ne.s32.totalorder %s39, %s40
      %p54 = scmp.eq.s32.totalorder %s32, 1
      %p55 = por %p53, %p54
      %p57 = scmp.ne.s32.totalorder %s40, %s56
      %p58 = scmp.eq.s32.totalorder %s32, 0
      %p59 = por %p57, %p58
      %s61 = sadd.s32 %s60, 1
      %p64 = scmp.eq.s32.totalorder %s26, 1
      %p65 = scmp.ne.s32.totalorder %s60, %s62
      %p66 = scmp.eq.s32.totalorder %s26, 0
      %p67 = por %p65, %p66
      %p68 = scmp.ne.s32.totalorder %s60, %s62
      %p69 = scmp.eq.s32.totalorder %s31, 1
      %p70 = por %p68, %p69
      %p71 = scmp.ne.s32.totalorder %s62, %s63
      %p72 = scmp.eq.s32.totalorder %s31, 0
      %p73 = por %p71, %p72
      %p74 = scmp.ne.s32.totalorder %s62, %s63
      %p75 = scmp.eq.s32.totalorder %s32, 1
      %p76 = por %p74, %p75
      %p78 = scmp.ne.s32.totalorder %s63, %s77
      %p79 = scmp.eq.s32.totalorder %s32, 0
      %p80 = por %p78, %p79
      %s82 = sadd.s32 %s81, 1
      %p85 = scmp.eq.s32.totalorder %s26, 1
      %p86 = scmp.ne.s32.totalorder %s81, %s83
      %p87 = scmp.eq.s32.totalorder %s26, 0
      %p88 = por %p86, %p87
      %p89 = scmp.ne.s32.totalorder %s81, %s83
      %p90 = scmp.eq.s32.totalorder %s31, 1
      %p91 = por %p89, %p90
      %p92 = scmp.ne.s32.totalorder %s83, %s84
      %p93 = scmp.eq.s32.totalorder %s31, 0
      %p94 = por %p92, %p93
      %p95 = scmp.ne.s32.totalorder %s83, %s84
      %p96 = scmp.eq.s32.totalorder %s32, 1
      %p97 = por %p95, %p96
      %p99 = scmp.ne.s32.totalorder %s84, %s98
      %p100 = scmp.eq.s32.totalorder %s32, 0
      %p101 = por %p99, %p100
      %s103 = sadd.s32 %s102, 1
      %p106 = scmp.eq.s32.totalorder %s26, 1
      %p107 = scmp.ne.s32.totalorder %s102, %s104
      %p108 = scmp.eq.s32.totalorder %s26, 0
      %p109 = por %p107, %p108
      %p110 = scmp.ne.s32.totalorder %s102, %s104
      %p111 = scmp.eq.s32.totalorder %s31, 1
      %p112 = por %p110, %p111
      %p113 = scmp.ne.s32.totalorder %s104, %s105
      %p114 = scmp.eq.s32.totalorder %s31, 0
      %p115 = por %p113, %p114
      %p116 = scmp.ne.s32.totalorder %s104, %s105
      %p117 = scmp.eq.s32.totalorder %s32, 1
      %p118 = por %p116, %p117
      %p120 = scmp.ne.s32.totalorder %s105, %s119
      %p121 = scmp.eq.s32.totalorder %s32, 0
      %p122 = por %p120, %p121
      %s124 = sadd.s32 %s123, 1
      %p127 = scmp.eq.s32.totalorder %s26, 1
      %p128 = scmp.ne.s32.totalorder %s123, %s125
      %p129 = scmp.eq.s32.totalorder %s26, 0
      %p130 = por %p128, %p129
      %p131 = scmp.ne.s32.totalorder %s123, %s125
      %p132 = scmp.eq.s32.totalorder %s31, 1
      %p133 = por %p131, %p132
      %p134 = scmp.ne.s32.totalorder %s125, %s126
      %p135 = scmp.eq.s32.totalorder %s31, 0
      %p136 = por %p134, %p135
      %p137 = scmp.ne.s32.totalorder %s125, %s126
      %p138 = scmp.eq.s32.totalorder %s32, 1
      %p139 = por %p137, %p138
      %p141 = scmp.ne.s32.totalorder %s126, %s140
      %p142 = scmp.eq.s32.totalorder %s32, 0
      %p143 = por %p141, %p142
      %s145 = sadd.s32 %s144, 1
      %p148 = scmp.eq.s32.totalorder %s26, 1
      %p149 = scmp.ne.s32.totalorder %s144, %s146
      %p150 = scmp.eq.s32.totalorder %s26, 0
      %p151 = por %p149, %p150
      %p152 = scmp.ne.s32.totalorder %s144, %s146
      %p153 = scmp.eq.s32.totalorder %s31, 1
      %p154 = por %p152, %p153
      %p155 = scmp.ne.s32.totalorder %s146, %s147
      %p156 = scmp.eq.s32.totalorder %s31, 0
      %p157 = por %p155, %p156
      %p158 = scmp.ne.s32.totalorder %s146, %s147
      %p159 = scmp.eq.s32.totalorder %s32, 1
      %p160 = por %p158, %p159
      %p162 = scmp.ne.s32.totalorder %s147, %s161
      %p163 = scmp.eq.s32.totalorder %s32, 0
      %p164 = por %p162, %p163
      %s166 = sadd.s32 %s165, 1
      %p169 = scmp.eq.s32.totalorder %s26, 1
      %p170 = scmp.ne.s32.totalorder %s165, %s167
      %p171 = scmp.eq.s32.totalorder %s26, 0
      %p172 = por %p170, %p171
      %p173 = scmp.ne.s32.totalorder %s165, %s167
      %p174 = scmp.eq.s32.totalorder %s31, 1
      %p175 = por %p173, %p174
      %p176 = scmp.ne.s32.totalorder %s167, %s168
      %p177 = scmp.eq.s32.totalorder %s31, 0
      %p178 = por %p176, %p177
      %p179 = scmp.ne.s32.totalorder %s167, %s168
      %p180 = scmp.eq.s32.totalorder %s32, 1
      %p181 = por %p179, %p180
      %p183 = scmp.ne.s32.totalorder %s168, %s182
      %p184 = scmp.eq.s32.totalorder %s32, 0
      %p185 = por %p183, %p184
      %s187 = sadd.s32 %s186, 1
      %p190 = scmp.eq.s32.totalorder %s26, 1
      %p191 = scmp.ne.s32.totalorder %s186, %s188
      %p192 = scmp.eq.s32.totalorder %s26, 0
      %p193 = por %p191, %p192
      %p194 = scmp.ne.s32.totalorder %s186, %s188
      %p195 = scmp.eq.s32.totalorder %s31, 1
      %p196 = por %p194, %p195
      %p197 = scmp.ne.s32.totalorder %s188, %s189
      %p198 = scmp.eq.s32.totalorder %s31, 0
      %p199 = por %p197, %p198
      %p200 = scmp.ne.s32.totalorder %s188, %s189
      %p201 = scmp.eq.s32.totalorder %s32, 1
      %p202 = por %p200, %p201
      %p204 = scmp.ne.s32.totalorder %s189, %s203
      %p205 = scmp.eq.s32.totalorder %s32, 0
      %p206 = por %p204, %p205
      %s208 = sadd.s32 %s207, 1
      %p211 = scmp.eq.s32.totalorder %s26, 1
      %p212 = scmp.ne.s32.totalorder %s207, %s209
      %p213 = scmp.eq.s32.totalorder %s26, 0
      %p214 = por %p212, %p213
      %p215 = scmp.ne.s32.totalorder %s207, %s209
      %p216 = scmp.eq.s32.totalorder %s31, 1
      %p217 = por %p215, %p216
      %p218 = scmp.ne.s32.totalorder %s209, %s210
      %p219 = scmp.eq.s32.totalorder %s31, 0
      %p220 = por %p218, %p219
      %p221 = scmp.ne.s32.totalorder %s209, %s210
      %p222 = scmp.eq.s32.totalorder %s32, 1
      %p223 = por %p221, %p222
      %p225 = scmp.ne.s32.totalorder %s210, %s224
      %p226 = scmp.eq.s32.totalorder %s32, 0
      %p227 = por %p225, %p226
      %s229 = sadd.s32 %s228, 1
      %p232 = scmp.eq.s32.totalorder %s26, 1
      %p233 = scmp.ne.s32.totalorder %s228, %s230
      %p234 = scmp.eq.s32.totalorder %s26, 0
      %p235 = por %p233, %p234
      %p236 = scmp.ne.s32.totalorder %s228, %s230
      %p237 = scmp.eq.s32.totalorder %s31, 1
      %p238 = por %p236, %p237
      %p239 = scmp.ne.s32.totalorder %s230, %s231
      %p240 = scmp.eq.s32.totalorder %s31, 0
      %p241 = por %p239, %p240
      %p242 = scmp.ne.s32.totalorder %s230, %s231
      %p243 = scmp.eq.s32.totalorder %s32, 1
      %p244 = por %p242, %p243
      %p246 = scmp.ne.s32.totalorder %s231, %s245
      %p247 = scmp.eq.s32.totalorder %s32, 0
      %p248 = por %p246, %p247
      %s250 = sadd.s32 %s249, 1
      %p253 = scmp.eq.s32.totalorder %s26, 1
      %p254 = scmp.ne.s32.totalorder %s249, %s251
      %p255 = scmp.eq.s32.totalorder %s26, 0
      %p256 = por %p254, %p255
      %p257 = scmp.ne.s32.totalorder %s249, %s251
      %p258 = scmp.eq.s32.totalorder %s31, 1
      %p259 = por %p257, %p258
      %p260 = scmp.ne.s32.totalorder %s251, %s252
      %p261 = scmp.eq.s32.totalorder %s31, 0
      %p262 = por %p260, %p261
      %p263 = scmp.ne.s32.totalorder %s251, %s252
      %p264 = scmp.eq.s32.totalorder %s32, 1
      %p265 = por %p263, %p264
      %p267 = scmp.ne.s32.totalorder %s252, %s266
      %p268 = scmp.eq.s32.totalorder %s32, 0
      %p269 = por %p267, %p268
      %s271 = sadd.s32 %s270, 1
      %p274 = scmp.eq.s32.totalorder %s26, 1
      %p275 = scmp.ne.s32.totalorder %s270, %s272
      %p276 = scmp.eq.s32.totalorder %s26, 0
      %p277 = por %p275, %p276
      %p278 = scmp.ne.s32.totalorder %s270, %s272
      %p279 = scmp.eq.s32.totalorder %s31, 1
      %p280 = por %p278, %p279
      %p281 = scmp.ne.s32.totalorder %s272, %s273
      %p282 = scmp.eq.s32.totalorder %s31, 0
      %p283 = por %p281, %p282
      %p284 = scmp.ne.s32.totalorder %s272, %s273
      %p285 = scmp.eq.s32.totalorder %s32, 1
      %p286 = por %p284, %p285
      %p288 = scmp.ne.s32.totalorder %s273, %s287
      %p289 = scmp.eq.s32.totalorder %s32, 0
      %p290 = por %p288, %p289
      %s292 = sadd.s32 %s291, 1
      %p295 = scmp.eq.s32.totalorder %s26, 1
      %p296 = scmp.ne.s32.totalorder %s291, %s293
      %p297 = scmp.eq.s32.totalorder %s26, 0
      %p298 = por %p296, %p297
      %p299 = scmp.ne.s32.totalorder %s291, %s293
      %p300 = scmp.eq.s32.totalorder %s31, 1
      %p301 = por %p299, %p300
      %p302 = scmp.ne.s32.totalorder %s293, %s294
      %p303 = scmp.eq.s32.totalorder %s31, 0
      %p304 = por %p302, %p303
      %p305 = scmp.ne.s32.totalorder %s293, %s294
      %p306 = scmp.eq.s32.totalorder %s32, 1
      %p307 = por %p305, %p306
      %p309 = scmp.ne.s32.totalorder %s294, %s308
      %p310 = scmp.eq.s32.totalorder %s32, 0
      %p311 = por %p309, %p310
      %s313 = sadd.s32 %s312, 1
      %p316 = scmp.eq.s32.totalorder %s26, 1
      %p317 = scmp.ne.s32.totalorder %s312, %s314
      %p318 = scmp.eq.s32.totalorder %s26, 0
      %p319 = por %p317, %p318
      %p320 = scmp.ne.s32.totalorder %s312, %s314
      %p321 = scmp.eq.s32.totalorder %s31, 1
      %p322 = por %p320, %p321
      %p323 = scmp.ne.s32.totalorder %s314, %s315
      %p324 = scmp.eq.s32.totalorder %s31, 0
      %p325 = por %p323, %p324
      %p326 = scmp.ne.s32.totalorder %s314, %s315
      %p327 = scmp.eq.s32.totalorder %s32, 1
      %p328 = por %p326, %p327
      %p330 = scmp.ne.s32.totalorder %s315, %s329
      %p331 = scmp.eq.s32.totalorder %s32, 0
      %p332 = por %p330, %p331
      %s334 = sadd.s32 %s333, 1
      %p337 = scmp.eq.s32.totalorder %s26, 1
      %p338 = scmp.ne.s32.totalorder %s333, %s335
      %p339 = scmp.eq.s32.totalorder %s26, 0
      %p340 = por %p338, %p339
      %p341 = scmp.ne.s32.totalorder %s333, %s335
      %p342 = scmp.eq.s32.totalorder %s31, 1
      %p343 = por %p341, %p342
      %p344 = scmp.ne.s32.totalorder %s335, %s336
      %p345 = scmp.eq.s32.totalorder %s31, 0
      %p346 = por %p344, %p345
      %p347 = scmp.ne.s32.totalorder %s335, %s336
      %p348 = scmp.eq.s32.totalorder %s32, 1
      %p349 = por %p347, %p348
      %p351 = scmp.ne.s32.totalorder %s336, %s350
      %p352 = scmp.eq.s32.totalorder %s32, 0
      %p353 = por %p351, %p352
      %s355 = sadd.s32 %s354, 1
      %p358 = scmp.eq.s32.totalorder %s26, 1
      %p359 = scmp.ne.s32.totalorder %s354, %s356
      %p360 = scmp.eq.s32.totalorder %s26, 0
      %p361 = por %p359, %p360
      %p362 = scmp.ne.s32.totalorder %s354, %s356
      %p363 = scmp.eq.s32.totalorder %s31, 1
      %p364 = por %p362, %p363
      %p365 = scmp.ne.s32.totalorder %s356, %s357
      %p366 = scmp.eq.s32.totalorder %s31, 0
      %p367 = por %p365, %p366
      %p368 = scmp.ne.s32.totalorder %s356, %s357
      %p369 = scmp.eq.s32.totalorder %s32, 1
      %p370 = por %p368, %p369
      %p372 = scmp.ne.s32.totalorder %s357, %s371
      %p373 = scmp.eq.s32.totalorder %s32, 0
      %p374 = por %p372, %p373
      %s376 = sadd.s32 %s375, 1
      %p379 = scmp.eq.s32.totalorder %s26, 1
      %p380 = scmp.ne.s32.totalorder %s375, %s377
      %p381 = scmp.eq.s32.totalorder %s26, 0
      %p382 = por %p380, %p381
      %p383 = scmp.ne.s32.totalorder %s375, %s377
      %p384 = scmp.eq.s32.totalorder %s31, 1
      %p385 = por %p383, %p384
      %p386 = scmp.ne.s32.totalorder %s377, %s378
      %p387 = scmp.eq.s32.totalorder %s31, 0
      %p388 = por %p386, %p387
      %p389 = scmp.ne.s32.totalorder %s377, %s378
      %p390 = scmp.eq.s32.totalorder %s32, 1
      %p391 = por %p389, %p390
      %p393 = scmp.ne.s32.totalorder %s378, %s392
      %p394 = scmp.eq.s32.totalorder %s32, 0
      %p395 = por %p393, %p394
      %s396 = ssub.s32 %s26, %s33
      %p397 = scmp.eq.s32.totalorder %s396, 0
      %s399 = sadd.s32 %s398, 1
      %s400 = scalar_select %p397, %s398, %s399
      %p403 = pneg %p397
      %p404 = scmp.eq.s32.totalorder %s26, 1
      %p405 = por %p403, %p404
      %p406 = scmp.ne.s32.totalorder %s398, %s401
      %p407 = scmp.eq.s32.totalorder %s26, 0
      %p408 = por %p406, %p407
      %p409 = scmp.ne.s32.totalorder %s398, %s401
      %p410 = scmp.eq.s32.totalorder %s31, 1
      %p411 = por %p409, %p410
      %p412 = scmp.ne.s32.totalorder %s401, %s402
      %p413 = scmp.eq.s32.totalorder %s31, 0
      %p414 = por %p412, %p413
      %p415 = scmp.ne.s32.totalorder %s401, %s402
      %p416 = scmp.eq.s32.totalorder %s32, 1
      %p417 = por %p415, %p416
      %p419 = scmp.ne.s32.totalorder %s402, %s418
      %p420 = scmp.eq.s32.totalorder %s32, 0
      %p421 = por %p419, %p420
      %p422 = scmp.le.s32.totalorder 1, %s26
      %p423 = scmp.lt.s32.totalorder %s26, 3
      %p424 = pnand %p422, %p423
      %p425 = pneg %p424
      // Predicated region
      $region9: #{tpu_custom_call.1} parent=5 // pred_check
        _
      $region10: #{tpu_custom_call.1} parent=5 // pred_check_branch
        %427 = sbr.rel (%p424) target = $region12
      $region11: #{tpu_custom_call.1} parent=5 // pred_region
        %s428 = ssub.s32 %s26, 1
        // Predicated region
        $region13: #{tpu_custom_call.1} parent=11 // pred_check
          %p429 = pneg %p73
        $region14: #{tpu_custom_call.1} parent=11 // pred_check_branch
          %431 = sbr.rel (%p429) target = $region16
        $region15: #{tpu_custom_call.1} parent=11 // pred_region
          _
        $region16: #{tpu_custom_call.1} parent=11 // pred_fallthru
          _
        // Predicated region
        $region17: #{tpu_custom_call.1} parent=11 // pred_check
          %p432 = pneg %p94
        $region18: #{tpu_custom_call.1} parent=11 // pred_check_branch
          %434 = sbr.rel (%p432) target = $region20
        $region19: #{tpu_custom_call.1} parent=11 // pred_region
          _
        $region20: #{tpu_custom_call.1} parent=11 // pred_fallthru
          _
        // Predicated region
        $region21: #{tpu_custom_call.1} parent=11 // pred_check
          %p435 = pneg %p115
        $region22: #{tpu_custom_call.1} parent=11 // pred_check_branch
          %437 = sbr.rel (%p435) target = $region24
        $region23: #{tpu_custom_call.1} parent=11 // pred_region
          _
        $region24: #{tpu_custom_call.1} parent=11 // pred_fallthru
          _
        // Predicated region
        $region25: #{tpu_custom_call.1} parent=11 // pred_check
          %p438 = pneg %p136
        $region26: #{tpu_custom_call.1} parent=11 // pred_check_branch
          %440 = sbr.rel (%p438) target = $region28
        $region27: #{tpu_custom_call.1} parent=11 // pred_region
          _
        $region28: #{tpu_custom_call.1} parent=11 // pred_fallthru
          _
        // Predicated region
        $region29: #{tpu_custom_call.1} parent=11 // pred_check
          %p441 = pneg %p157
        $region30: #{tpu_custom_call.1} parent=11 // pred_check_branch
          %443 = sbr.rel (%p441) target = $region32
        $region31: #{tpu_custom_call.1} parent=11 // pred_region
          _
        $region32: #{tpu_custom_call.1} parent=11 // pred_fallthru
          _
        // Predicated region
        $region33: #{tpu_custom_call.1} parent=11 // pred_check
          %p444 = pneg %p178
        $region34: #{tpu_custom_call.1} parent=11 // pred_check_branch
          %446 = sbr.rel (%p444) target = $region36
        $region35: #{tpu_custom_call.1} parent=11 // pred_region
          _
        $region36: #{tpu_custom_call.1} parent=11 // pred_fallthru
          _
        // Predicated region
        $region37: #{tpu_custom_call.1} parent=11 // pred_check
          %p447 = pneg %p199
        $region38: #{tpu_custom_call.1} parent=11 // pred_check_branch
          %449 = sbr.rel (%p447) target = $region40
        $region39: #{tpu_custom_call.1} parent=11 // pred_region
          _
        $region40: #{tpu_custom_call.1} parent=11 // pred_fallthru
          _
        // Predicated region
        $region41: #{tpu_custom_call.1} parent=11 // pred_check
          %p450 = pneg %p220
        $region42: #{tpu_custom_call.1} parent=11 // pred_check_branch
          %452 = sbr.rel (%p450) target = $region44
        $region43: #{tpu_custom_call.1} parent=11 // pred_region
          _
        $region44: #{tpu_custom_call.1} parent=11 // pred_fallthru
          _
        // Predicated region
        $region45: #{tpu_custom_call.1} parent=11 // pred_check
          %p453 = pneg %p241
        $region46: #{tpu_custom_call.1} parent=11 // pred_check_branch
          %455 = sbr.rel (%p453) target = $region48
        $region47: #{tpu_custom_call.1} parent=11 // pred_region
          _
        $region48: #{tpu_custom_call.1} parent=11 // pred_fallthru
          _
        // Predicated region
        $region49: #{tpu_custom_call.1} parent=11 // pred_check
          %p456 = pneg %p262
        $region50: #{tpu_custom_call.1} parent=11 // pred_check_branch
          %458 = sbr.rel (%p456) target = $region52
        $region51: #{tpu_custom_call.1} parent=11 // pred_region
          _
        $region52: #{tpu_custom_call.1} parent=11 // pred_fallthru
          _
        // Predicated region
        $region53: #{tpu_custom_call.1} parent=11 // pred_check
          %p459 = pneg %p283
        $region54: #{tpu_custom_call.1} parent=11 // pred_check_branch
          %461 = sbr.rel (%p459) target = $region56
        $region55: #{tpu_custom_call.1} parent=11 // pred_region
          _
        $region56: #{tpu_custom_call.1} parent=11 // pred_fallthru
          _
        // Predicated region
        $region57: #{tpu_custom_call.1} parent=11 // pred_check
          %p462 = pneg %p304
        $region58: #{tpu_custom_call.1} parent=11 // pred_check_branch
          %464 = sbr.rel (%p462) target = $region60
        $region59: #{tpu_custom_call.1} parent=11 // pred_region
          _
        $region60: #{tpu_custom_call.1} parent=11 // pred_fallthru
          _
        // Predicated region
        $region61: #{tpu_custom_call.1} parent=11 // pred_check
          %p465 = pneg %p325
        $region62: #{tpu_custom_call.1} parent=11 // pred_check_branch
          %467 = sbr.rel (%p465) target = $region64
        $region63: #{tpu_custom_call.1} parent=11 // pred_region
          _
        $region64: #{tpu_custom_call.1} parent=11 // pred_fallthru
          _
        // Predicated region
        $region65: #{tpu_custom_call.1} parent=11 // pred_check
          %p468 = pneg %p346
        $region66: #{tpu_custom_call.1} parent=11 // pred_check_branch
          %470 = sbr.rel (%p468) target = $region68
        $region67: #{tpu_custom_call.1} parent=11 // pred_region
          _
        $region68: #{tpu_custom_call.1} parent=11 // pred_fallthru
          _
        // Predicated region
        $region69: #{tpu_custom_call.1} parent=11 // pred_check
          %p471 = pneg %p367
        $region70: #{tpu_custom_call.1} parent=11 // pred_check_branch
          %473 = sbr.rel (%p471) target = $region72
        $region71: #{tpu_custom_call.1} parent=11 // pred_region
          _
        $region72: #{tpu_custom_call.1} parent=11 // pred_fallthru
          _
        // Predicated region
        $region73: #{tpu_custom_call.1} parent=11 // pred_check
          %p474 = pneg %p388
        $region74: #{tpu_custom_call.1} parent=11 // pred_check_branch
          %476 = sbr.rel (%p474) target = $region76
        $region75: #{tpu_custom_call.1} parent=11 // pred_region
          _
        $region76: #{tpu_custom_call.1} parent=11 // pred_fallthru
          _
      $region12: #{tpu_custom_call.1} parent=5 // pred_fallthru
        _
      %p477 = scmp.lt.s32.totalorder %s26, 2
      // Predicated region
      $region77: #{tpu_custom_call.1} parent=5 // pred_check
        %p478 = pneg %p477
      $region78: #{tpu_custom_call.1} parent=5 // pred_check_branch
        %480 = sbr.rel (%p478) target = $region80
      $region79: #{tpu_custom_call.1} parent=5 // pred_region
        // Predicated region
        $region81: #{tpu_custom_call.1} parent=79 // pred_check
          %p481 = pneg %p46
        $region82: #{tpu_custom_call.1} parent=79 // pred_check_branch
          %483 = sbr.rel (%p481) target = $region84
        $region83: #{tpu_custom_call.1} parent=79 // pred_region
          %p484 = scmp.lt.s32.totalorder %s26, 1
          %s485 = scalar_select %p484, %s26, 1
          %s486 = smul.addr %s485, 8
          %s487 = scalar_lea.vmem %s0, %s486
        $region84: #{tpu_custom_call.1} parent=79 // pred_fallthru
          _
      $region80: #{tpu_custom_call.1} parent=5 // pred_fallthru
        _
      %p488 = scmp.le.s32.totalorder 1, %s26
      %p489 = scmp.lt.s32.totalorder %s26, 3
      %p490 = pnand %p488, %p489
      %p491 = pneg %p490
      // Predicated region
      $region85: #{tpu_custom_call.1} parent=5 // pred_check
        _
      $region86: #{tpu_custom_call.1} parent=5 // pred_check_branch
        %493 = sbr.rel (%p490) target = $region88
      $region87: #{tpu_custom_call.1} parent=5 // pred_region
        %s494 = ssub.s32 %s26, 1
        %p495 = scmp.lt.s32.totalorder %s31, 1
        %s496 = scalar_select %p495, %s31, 1
        %s497 = smul.addr %s496, 8
        %s498 = scalar_lea.vmem %s0, %s497
        %p499 = pneg %p52
        %p500 = pneg %p49
        %p501 = pneg %p73
        %p502 = pneg %p70
        %p503 = pneg %p94
        %p504 = pneg %p91
        %p505 = pneg %p115
        %p506 = pneg %p112
        %p507 = pneg %p136
        %p508 = pneg %p133
        %p509 = pneg %p157
        %p510 = pneg %p154
        %p511 = pneg %p178
        %p512 = pneg %p175
        %p513 = pneg %p199
        %p514 = pneg %p196
        %p515 = pneg %p220
        %p516 = pneg %p217
        %p517 = pneg %p241
        %p518 = pneg %p238
        %p519 = pneg %p262
        %p520 = pneg %p259
        %p521 = pneg %p283
        %p522 = pneg %p280
        %p523 = pneg %p304
        %p524 = pneg %p301
        %p525 = pneg %p325
        %p526 = pneg %p322
        %p527 = pneg %p346
        %p528 = pneg %p343
        %p529 = pneg %p367
        %p530 = pneg %p364
        %p531 = pneg %p388
        %p532 = pneg %p385
        %p533 = pneg %p414
        %p534 = pneg %p411
        %s535 = sand.u32 %s401, 1
        %s536 = scalar_lea.sflag [#allocation3], %s535
        %s537 = sand.u32 %s401, 1
        %s538 = scalar_lea.vmem [#allocation2], %s537
        %p539 = scmp.lt.s32.totalorder %s31, 1
        %s540 = scalar_select %p539, %s31, 1
        %s541 = smul.addr %s540, 8
        %s542 = scalar_lea.vmem %s0, %s541
        %v544 = vld [vmem:[%s542] sm:$0xff]
        %v545 = vld [vmem:[%s1] sm:$0xf]
        %v546 = vld [vmem:[%s1 + $0x4] sm:$0xf]
        %v547 = vld [vmem:[%s1 + $0x8] sm:$0xf]
        %v548 = vld [vmem:[%s1 + $0xc] sm:$0xf]
        %v549 = vpack.c.bf16 %v544, %v544
        %v550 = vld [vmem:[%s2] sm:$0x1]
        %v552 = vlaneseq
        %v553 = vshrl.u32 %v552, 7
        %v554 = vsub.s32 0, %v553
        %v555 = vrot.slane %v550, %v554
        %v561 = vunpack.c.l.b16 %v545
        %v562 = vunpack.c.l.b16 %v546
        %v563 = vunpack.c.l.b16 %v547
        %v564 = vunpack.c.l.b16 %v548
        %v565 = vpack.c.b16 %v562, %v561
        %v566 = vpack.c.b16 %v564, %v563
        %vm569 = vcmask 261120
        %v571 = vsel %vm569, %v549, 0
        %573 = vmatprep.subr.bf16.mxu0 0
        %574 = vmatpush1.bf16.msra.mxu0 %v565
        %575 = vmatprep.subr.bf16.mxu0 0
        %576 = vmatpush1.bf16.msra.mxu0 %v566
        %577 = vmatprep.subr.bf16.mxu0 0
        %578 = vmatpush1.bf16.msra.mxu0 0
        %579 = vmatprep.subr.bf16.mxu0 0
        %580 = vmatpush1.bf16.msra.mxu0 0
        %581 = vmatprep.subr.bf16.mxu0 0
        %582 = vmatpush1.bf16.msra.mxu0 0
        %583 = vmatprep.subr.bf16.mxu0 0
        %584 = vmatpush1.bf16.msra.mxu0 0
        %585 = vmatprep.subr.bf16.mxu0 0
        %586 = vmatpush1.bf16.msra.mxu0 0
        %587 = vmatprep.subr.bf16.mxu0 0
        %588 = vmatpush1.bf16.msra.mxu0 0
        %589 = vmatprep.subr.bf16.mxu0 0
        %590 = vmatpush1.bf16.msra.mxu0 0
        %591 = vmatprep.subr.bf16.mxu0 0
        %592 = vmatpush1.bf16.msra.mxu0 0
        %593 = vmatprep.subr.bf16.mxu0 0
        %594 = vmatpush1.bf16.msra.mxu0 0
        %595 = vmatprep.subr.bf16.mxu0 0
        %596 = vmatpush1.bf16.msra.mxu0 0
        %597 = vmatprep.subr.bf16.mxu0 0
        %598 = vmatpush1.bf16.msra.mxu0 0
        %599 = vmatprep.subr.bf16.mxu0 0
        %600 = vmatpush1.bf16.msra.mxu0 0
        %601 = vmatprep.subr.bf16.mxu0 0
        %602 = vmatpush1.bf16.msra.mxu0 0
        %603 = vmatprep.subr.bf16.mxu0 0
        %604 = vmatpush1.bf16.msra.mxu0 0
        %605 = vmatprep.mubr.bf16.mxu0 0
        %606 = vmatmul.mubr.bf16.gmra.mrb[0].mxu0 %v571
        %v607 = vpop.f32.mrb[0].mxu0
        %v608 = vadd.f32 %v555, %v607
        %v609 = vpop.f32.mrb[0].mxu0
        %v610 = vpop.f32.mrb[0].mxu0
        %v611 = vpop.f32.mrb[0].mxu0
        %612 = vdwg.mxu0
        %v613 = vpack.c.bf16 %v608, %v608
        %615 = vrot.lane.b32.xlu0 %v613, 96
        %v616 = vpop.permute.xlu0 %615
        %vm617 = vcmask 64512
        %v619 = vsel %vm617, %v613, 0
        %v622 = vsel %vm617, %v616, 0
        %624 = vmatprep.subr.bf16.mxu0 0
        %625 = vmatpush1.bf16.xpose.msra.mxu0 %v622
        %626 = vmatprep.subr.bf16.mxu0 0
        %627 = vmatpush1.bf16.xpose.msra.mxu0 0
        %628 = vmatprep.subr.bf16.mxu0 0
        %629 = vmatpush1.bf16.xpose.msra.mxu0 0
        %630 = vmatprep.subr.bf16.mxu0 0
        %631 = vmatpush1.bf16.xpose.msra.mxu0 0
        %632 = vmatprep.subr.bf16.mxu0 0
        %633 = vmatpush1.bf16.xpose.msra.mxu0 0
        %634 = vmatprep.subr.bf16.mxu0 0
        %635 = vmatpush1.bf16.xpose.msra.mxu0 0
        %636 = vmatprep.subr.bf16.mxu0 0
        %637 = vmatpush1.bf16.xpose.msra.mxu0 0
        %638 = vmatprep.subr.bf16.mxu0 0
        %639 = vmatpush1.bf16.xpose.msra.mxu0 0
        %640 = vmatprep.subr.bf16.mxu0 0
        %641 = vmatpush1.bf16.xpose.msra.mxu0 0
        %642 = vmatprep.subr.bf16.mxu0 0
        %643 = vmatpush1.bf16.xpose.msra.mxu0 0
        %644 = vmatprep.subr.bf16.mxu0 0
        %645 = vmatpush1.bf16.xpose.msra.mxu0 0
        %646 = vmatprep.subr.bf16.mxu0 0
        %647 = vmatpush1.bf16.xpose.msra.mxu0 0
        %648 = vmatprep.subr.bf16.mxu0 0
        %649 = vmatpush1.bf16.xpose.msra.mxu0 0
        %650 = vmatprep.subr.bf16.mxu0 0
        %651 = vmatpush1.bf16.xpose.msra.mxu0 0
        %652 = vmatprep.subr.bf16.mxu0 0
        %653 = vmatpush1.bf16.xpose.msra.mxu0 0
        %654 = vmatprep.subr.bf16.mxu0 0
        %655 = vmatpush1.bf16.xpose.msra.mxu0 0
        %656 = vmatprep.mubr.bf16.mxu0 0
        %657 = vmatmul.mubr.bf16.gmra.mrb[0].mxu0 %v619
        %v658 = vpop.f32.mrb[0].mxu0
        %v659 = vadd.f32 0.0, %v658
        %v660 = vpop.f32.mrb[0].mxu0
        %v661 = vpop.f32.mrb[0].mxu0
        %v662 = vpop.f32.mrb[0].mxu0
        %663 = vdwg.mxu0
        %v664 = vsel %vm617, %v659, -inf
        %665 = vmax.xlane.f32.xlu0 %v664
        %v666 = vpop.xlane.xlu0 %665
        %v667 = vsub.f32 %v659, %v666
        %v668 = vmul.f32 %v667, 1.442695
        %v669 = vpow.pop %v668
        %v670 = vsel %vm617, %v669, 0.0
        %671 = vadd.xlane.f32.xlu0 %v670
        %v672 = vpop.xlane.xlu0 %671
        %v673 = vrcp.pop %v672
        %v674 = vmul.f32 %v669, %v673
        %v675 = vpack.c.bf16 %v674, %v674
        %676 = vrot.lane.b32.xlu0 %v613, 64
        %v677 = vpop.permute.xlu0 %676
        %v679 = vsel %vm617, %v675, 0
        %vm681 = vcmask 1043456
        %v683 = vsel %vm681, %v677, 0
        %685 = vmatprep.subr.bf16.mxu0 0
        %686 = vmatpush1.bf16.msra.mxu0 %v683
        %687 = vmatprep.subr.bf16.mxu0 0
        %688 = vmatpush1.bf16.msra.mxu0 0
        %689 = vmatprep.subr.bf16.mxu0 0
        %690 = vmatpush1.bf16.msra.mxu0 0
        %691 = vmatprep.subr.bf16.mxu0 0
        %692 = vmatpush1.bf16.msra.mxu0 0
        %693 = vmatprep.subr.bf16.mxu0 0
        %694 = vmatpush1.bf16.msra.mxu0 0
        %695 = vmatprep.subr.bf16.mxu0 0
        %696 = vmatpush1.bf16.msra.mxu0 0
        %697 = vmatprep.subr.bf16.mxu0 0
        %698 = vmatpush1.bf16.msra.mxu0 0
        %699 = vmatprep.subr.bf16.mxu0 0
        %700 = vmatpush1.bf16.msra.mxu0 0
        %701 = vmatprep.subr.bf16.mxu0 0
        %702 = vmatpush1.bf16.msra.mxu0 0
        %703 = vmatprep.subr.bf16.mxu0 0
        %704 = vmatpush1.bf16.msra.mxu0 0
        %705 = vmatprep.subr.bf16.mxu0 0
        %706 = vmatpush1.bf16.msra.mxu0 0
        %707 = vmatprep.subr.bf16.mxu0 0
        %708 = vmatpush1.bf16.msra.mxu0 0
        %709 = vmatprep.subr.bf16.mxu0 0
        %710 = vmatpush1.bf16.msra.mxu0 0
        %711 = vmatprep.subr.bf16.mxu0 0
        %712 = vmatpush1.bf16.msra.mxu0 0
        %713 = vmatprep.subr.bf16.mxu0 0
        %714 = vmatpush1.bf16.msra.mxu0 0
        %715 = vmatprep.subr.bf16.mxu0 0
        %716 = vmatpush1.bf16.msra.mxu0 0
        %717 = vmatprep.mubr.bf16.mxu0 0
        %718 = vmatmul.mubr.bf16.gmra.mrb[0].mxu0 %v679
        %v719 = vpop.f32.mrb[0].mxu0
        %v720 = vadd.f32 0.0, %v719
        %v721 = vpop.f32.mrb[0].mxu0
        %v722 = vpop.f32.mrb[0].mxu0
        %v723 = vpop.f32.mrb[0].mxu0
        %724 = vdwg.mxu0
        %725 = vrot.lane.b32.xlu0 %v613, 120
        %v726 = vpop.permute.xlu0 %725
        %727 = vrot.lane.b32.xlu0 %v613, 88
        %v728 = vpop.permute.xlu0 %727
        %v730 = vsel %vm617, %v726, 0
        %v733 = vsel %vm617, %v728, 0
        %735 = vmatprep.subr.bf16.mxu0 0
        %736 = vmatpush1.bf16.xpose.msra.mxu0 %v733
        %737 = vmatprep.subr.bf16.mxu0 0
        %738 = vmatpush1.bf16.xpose.msra.mxu0 0
        %739 = vmatprep.subr.bf16.mxu0 0
        %740 = vmatpush1.bf16.xpose.msra.mxu0 0
        %741 = vmatprep.subr.bf16.mxu0 0
        %742 = vmatpush1.bf16.xpose.msra.mxu0 0
        %743 = vmatprep.subr.bf16.mxu0 0
        %744 = vmatpush1.bf16.xpose.msra.mxu0 0
        %745 = vmatprep.subr.bf16.mxu0 0
        %746 = vmatpush1.bf16.xpose.msra.mxu0 0
        %747 = vmatprep.subr.bf16.mxu0 0
        %748 = vmatpush1.bf16.xpose.msra.mxu0 0
        %749 = vmatprep.subr.bf16.mxu0 0
        %750 = vmatpush1.bf16.xpose.msra.mxu0 0
        %751 = vmatprep.subr.bf16.mxu0 0
        %752 = vmatpush1.bf16.xpose.msra.mxu0 0
        %753 = vmatprep.subr.bf16.mxu0 0
        %754 = vmatpush1.bf16.xpose.msra.mxu0 0
        %755 = vmatprep.subr.bf16.mxu0 0
        %756 = vmatpush1.bf16.xpose.msra.mxu0 0
        %757 = vmatprep.subr.bf16.mxu0 0
        %758 = vmatpush1.bf16.xpose.msra.mxu0 0
        %759 = vmatprep.subr.bf16.mxu0 0
        %760 = vmatpush1.bf16.xpose.msra.mxu0 0
        %761 = vmatprep.subr.bf16.mxu0 0
        %762 = vmatpush1.bf16.xpose.msra.mxu0 0
        %763 = vmatprep.subr.bf16.mxu0 0
        %764 = vmatpush1.bf16.xpose.msra.mxu0 0
        %765 = vmatprep.subr.bf16.mxu0 0
        %766 = vmatpush1.bf16.xpose.msra.mxu0 0
        %767 = vmatprep.mubr.bf16.mxu0 0
        %768 = vmatmul.mubr.bf16.gmra.mrb[0].mxu0 %v730
        %v769 = vpop.f32.mrb[0].mxu0
        %v770 = vadd.f32 0.0, %v769
        %v771 = vpop.f32.mrb[0].mxu0
        %v772 = vpop.f32.mrb[0].mxu0
        %v773 = vpop.f32.mrb[0].mxu0
        %774 = vdwg.mxu0
        %v775 = vsel %vm617, %v770, -inf
        %776 = vmax.xlane.f32.xlu0 %v775
        %v777 = vpop.xlane.xlu0 %776
        %v778 = vsub.f32 %v770, %v777
        %v779 = vmul.f32 %v778, 1.442695
        %v780 = vpow.pop %v779
        %v781 = vsel %vm617, %v780, 0.0
        %782 = vadd.xlane.f32.xlu0 %v781
        %v783 = vpop.xlane.xlu0 %782
        %v784 = vrcp.pop %v783
        %v785 = vmul.f32 %v780, %v784
        %v786 = vpack.c.bf16 %v785, %v785
        %787 = vrot.lane.b32.xlu0 %v613, 56
        %v788 = vpop.permute.xlu0 %787
        %v790 = vsel %vm617, %v786, 0
        %v793 = vsel %vm681, %v788, 0
        %795 = vmatprep.subr.bf16.mxu0 0
        %796 = vmatpush1.bf16.msra.mxu0 %v793
        %797 = vmatprep.subr.bf16.mxu0 0
        %798 = vmatpush1.bf16.msra.mxu0 0
        %799 = vmatprep.subr.bf16.mxu0 0
        %800 = vmatpush1.bf16.msra.mxu0 0
        %801 = vmatprep.subr.bf16.mxu0 0
        %802 = vmatpush1.bf16.msra.mxu0 0
        %803 = vmatprep.subr.bf16.mxu0 0
        %804 = vmatpush1.bf16.msra.mxu0 0
        %805 = vmatprep.subr.bf16.mxu0 0
        %806 = vmatpush1.bf16.msra.mxu0 0
        %807 = vmatprep.subr.bf16.mxu0 0
        %808 = vmatpush1.bf16.msra.mxu0 0
        %809 = vmatprep.subr.bf16.mxu0 0
        %810 = vmatpush1.bf16.msra.mxu0 0
        %811 = vmatprep.subr.bf16.mxu0 0
        %812 = vmatpush1.bf16.msra.mxu0 0
        %813 = vmatprep.subr.bf16.mxu0 0
        %814 = vmatpush1.bf16.msra.mxu0 0
        %815 = vmatprep.subr.bf16.mxu0 0
        %816 = vmatpush1.bf16.msra.mxu0 0
        %817 = vmatprep.subr.bf16.mxu0 0
        %818 = vmatpush1.bf16.msra.mxu0 0
        %819 = vmatprep.subr.bf16.mxu0 0
        %820 = vmatpush1.bf16.msra.mxu0 0
        %821 = vmatprep.subr.bf16.mxu0 0
        %822 = vmatpush1.bf16.msra.mxu0 0
        %823 = vmatprep.subr.bf16.mxu0 0
        %824 = vmatpush1.bf16.msra.mxu0 0
        %825 = vmatprep.subr.bf16.mxu0 0
        %826 = vmatpush1.bf16.msra.mxu0 0
        %827 = vmatprep.mubr.bf16.mxu0 0
        %828 = vmatmul.mubr.bf16.gmra.mrb[0].mxu0 %v790
        %v829 = vpop.f32.mrb[0].mxu0
        %v830 = vadd.f32 0.0, %v829
        %v831 = vpop.f32.mrb[0].mxu0
        %v832 = vpop.f32.mrb[0].mxu0
        %v833 = vpop.f32.mrb[0].mxu0
        %834 = vdwg.mxu0
        %835 = vrot.lane.b32.xlu0 %v613, 112
        %v836 = vpop.permute.xlu0 %835
        %837 = vrot.lane.b32.xlu0 %v613, 80
        %v838 = vpop.permute.xlu0 %837
        %v840 = vsel %vm617, %v836, 0
        %v843 = vsel %vm617, %v838, 0
        %845 = vmatprep.subr.bf16.mxu0 0
        %846 = vmatpush1.bf16.xpose.msra.mxu0 %v843
        %847 = vmatprep.subr.bf16.mxu0 0
        %848 = vmatpush1.bf16.xpose.msra.mxu0 0
        %849 = vmatprep.subr.bf16.mxu0 0
        %850 = vmatpush1.bf16.xpose.msra.mxu0 0
        %851 = vmatprep.subr.bf16.mxu0 0
        %852 = vmatpush1.bf16.xpose.msra.mxu0 0
        %853 = vmatprep.subr.bf16.mxu0 0
        %854 = vmatpush1.bf16.xpose.msra.mxu0 0
        %855 = vmatprep.subr.bf16.mxu0 0
        %856 = vmatpush1.bf16.xpose.msra.mxu0 0
        %857 = vmatprep.subr.bf16.mxu0 0
        %858 = vmatpush1.bf16.xpose.msra.mxu0 0
        %859 = vmatprep.subr.bf16.mxu0 0
        %860 = vmatpush1.bf16.xpose.msra.mxu0 0
        %861 = vmatprep.subr.bf16.mxu0 0
        %862 = vmatpush1.bf16.xpose.msra.mxu0 0
        %863 = vmatprep.subr.bf16.mxu0 0
        %864 = vmatpush1.bf16.xpose.msra.mxu0 0
        %865 = vmatprep.subr.bf16.mxu0 0
        %866 = vmatpush1.bf16.xpose.msra.mxu0 0
        %867 = vmatprep.subr.bf16.mxu0 0
        %868 = vmatpush1.bf16.xpose.msra.mxu0 0
        %869 = vmatprep.subr.bf16.mxu0 0
        %870 = vmatpush1.bf16.xpose.msra.mxu0 0
        %871 = vmatprep.subr.bf16.mxu0 0
        %872 = vmatpush1.bf16.xpose.msra.mxu0 0
        %873 = vmatprep.subr.bf16.mxu0 0
        %874 = vmatpush1.bf16.xpose.msra.mxu0 0
        %875 = vmatprep.subr.bf16.mxu0 0
        %876 = vmatpush1.bf16.xpose.msra.mxu0 0
        %877 = vmatprep.mubr.bf16.mxu0 0
        %878 = vmatmul.mubr.bf16.gmra.mrb[0].mxu0 %v840
        %v879 = vpop.f32.mrb[0].mxu0
        %v880 = vadd.f32 0.0, %v879
        %v881 = vpop.f32.mrb[0].mxu0
        %v882 = vpop.f32.mrb[0].mxu0
        %v883 = vpop.f32.mrb[0].mxu0
        %884 = vdwg.mxu0
        %v885 = vsel %vm617, %v880, -inf
        %886 = vmax.xlane.f32.xlu0 %v885
        %v887 = vpop.xlane.xlu0 %886
        %v888 = vsub.f32 %v880, %v887
        %v889 = vmul.f32 %v888, 1.442695
        %v890 = vpow.pop %v889
        %v891 = vsel %vm617, %v890, 0.0
        %892 = vadd.xlane.f32.xlu0 %v891
        %v893 = vpop.xlane.xlu0 %892
        %v894 = vrcp.pop %v893
        %v895 = vmul.f32 %v890, %v894
        %v896 = vpack.c.bf16 %v895, %v895
        %897 = vrot.lane.b32.xlu0 %v613, 48
        %v898 = vpop.permute.xlu0 %897
        %v900 = vsel %vm617, %v896, 0
        %v903 = vsel %vm681, %v898, 0
        %905 = vmatprep.subr.bf16.mxu0 0
        %906 = vmatpush1.bf16.msra.mxu0 %v903
        %907 = vmatprep.subr.bf16.mxu0 0
        %908 = vmatpush1.bf16.msra.mxu0 0
        %909 = vmatprep.subr.bf16.mxu0 0
        %910 = vmatpush1.bf16.msra.mxu0 0
        %911 = vmatprep.subr.bf16.mxu0 0
        %912 = vmatpush1.bf16.msra.mxu0 0
        %913 = vmatprep.subr.bf16.mxu0 0
        %914 = vmatpush1.bf16.msra.mxu0 0
        %915 = vmatprep.subr.bf16.mxu0 0
        %916 = vmatpush1.bf16.msra.mxu0 0
        %917 = vmatprep.subr.bf16.mxu0 0
        %918 = vmatpush1.bf16.msra.mxu0 0
        %919 = vmatprep.subr.bf16.mxu0 0
        %920 = vmatpush1.bf16.msra.mxu0 0
        %921 = vmatprep.subr.bf16.mxu0 0
        %922 = vmatpush1.bf16.msra.mxu0 0
        %923 = vmatprep.subr.bf16.mxu0 0
        %924 = vmatpush1.bf16.msra.mxu0 0
        %925 = vmatprep.subr.bf16.mxu0 0
        %926 = vmatpush1.bf16.msra.mxu0 0
        %927 = vmatprep.subr.bf16.mxu0 0
        %928 = vmatpush1.bf16.msra.mxu0 0
        %929 = vmatprep.subr.bf16.mxu0 0
        %930 = vmatpush1.bf16.msra.mxu0 0
        %931 = vmatprep.subr.bf16.mxu0 0
        %932 = vmatpush1.bf16.msra.mxu0 0
        %933 = vmatprep.subr.bf16.mxu0 0
        %934 = vmatpush1.bf16.msra.mxu0 0
        %935 = vmatprep.subr.bf16.mxu0 0
        %936 = vmatpush1.bf16.msra.mxu0 0
        %937 = vmatprep.mubr.bf16.mxu0 0
        %938 = vmatmul.mubr.bf16.gmra.mrb[0].mxu0 %v900
        %v939 = vpop.f32.mrb[0].mxu0
        %v940 = vadd.f32 0.0, %v939
        %v941 = vpop.f32.mrb[0].mxu0
        %v942 = vpop.f32.mrb[0].mxu0
        %v943 = vpop.f32.mrb[0].mxu0
        %944 = vdwg.mxu0
        %945 = vrot.lane.b32.xlu0 %v613, 104
        %v946 = vpop.permute.xlu0 %945
        %947 = vrot.lane.b32.xlu0 %v613, 72
        %v948 = vpop.permute.xlu0 %947
        %v950 = vsel %vm617, %v946, 0
        %v953 = vsel %vm617, %v948, 0
        %955 = vmatprep.subr.bf16.mxu0 0
        %956 = vmatpush1.bf16.xpose.msra.mxu0 %v953
        %957 = vmatprep.subr.bf16.mxu0 0
        %958 = vmatpush1.bf16.xpose.msra.mxu0 0
        %959 = vmatprep.subr.bf16.mxu0 0
        %960 = vmatpush1.bf16.xpose.msra.mxu0 0
        %961 = vmatprep.subr.bf16.mxu0 0
        %962 = vmatpush1.bf16.xpose.msra.mxu0 0
        %963 = vmatprep.subr.bf16.mxu0 0
        %964 = vmatpush1.bf16.xpose.msra.mxu0 0
        %965 = vmatprep.subr.bf16.mxu0 0
        %966 = vmatpush1.bf16.xpose.msra.mxu0 0
        %967 = vmatprep.subr.bf16.mxu0 0
        %968 = vmatpush1.bf16.xpose.msra.mxu0 0
        %969 = vmatprep.subr.bf16.mxu0 0
        %970 = vmatpush1.bf16.xpose.msra.mxu0 0
        %971 = vmatprep.subr.bf16.mxu0 0
        %972 = vmatpush1.bf16.xpose.msra.mxu0 0
        %973 = vmatprep.subr.bf16.mxu0 0
        %974 = vmatpush1.bf16.xpose.msra.mxu0 0
        %975 = vmatprep.subr.bf16.mxu0 0
        %976 = vmatpush1.bf16.xpose.msra.mxu0 0
        %977 = vmatprep.subr.bf16.mxu0 0
        %978 = vmatpush1.bf16.xpose.msra.mxu0 0
        %979 = vmatprep.subr.bf16.mxu0 0
        %980 = vmatpush1.bf16.xpose.msra.mxu0 0
        %981 = vmatprep.subr.bf16.mxu0 0
        %982 = vmatpush1.bf16.xpose.msra.mxu0 0
        %983 = vmatprep.subr.bf16.mxu0 0
        %984 = vmatpush1.bf16.xpose.msra.mxu0 0
        %985 = vmatprep.subr.bf16.mxu0 0
        %986 = vmatpush1.bf16.xpose.msra.mxu0 0
        %987 = vmatprep.mubr.bf16.mxu0 0
        %988 = vmatmul.mubr.bf16.gmra.mrb[0].mxu0 %v950
        %v989 = vpop.f32.mrb[0].mxu0
        %v990 = vadd.f32 0.0, %v989
        %v991 = vpop.f32.mrb[0].mxu0
        %v992 = vpop.f32.mrb[0].mxu0
        %v993 = vpop.f32.mrb[0].mxu0
        %994 = vdwg.mxu0
        %v995 = vsel %vm617, %v990, -inf
        %996 = vmax.xlane.f32.xlu0 %v995
        %v997 = vpop.xlane.xlu0 %996
        %v998 = vsub.f32 %v990, %v997
        %v999 = vmul.f32 %v998, 1.442695
        %v1000 = vpow.pop %v999
        %v1001 = vsel %vm617, %v1000, 0.0
        %1002 = vadd.xlane.f32.xlu0 %v1001
        %v1003 = vpop.xlane.xlu0 %1002
        %v1004 = vrcp.pop %v1003
        %v1005 = vmul.f32 %v1000, %v1004
        %v1006 = vpack.c.bf16 %v1005, %v1005
        %1007 = vrot.lane.b32.xlu0 %v613, 40
        %v1008 = vpop.permute.xlu0 %1007
        %v1010 = vsel %vm617, %v1006, 0
        %v1013 = vsel %vm681, %v1008, 0
        %1015 = vmatprep.subr.bf16.mxu0 0
        %1016 = vmatpush1.bf16.msra.mxu0 %v1013
        %1017 = vmatprep.subr.bf16.mxu0 0
        %1018 = vmatpush1.bf16.msra.mxu0 0
        %1019 = vmatprep.subr.bf16.mxu0 0
        %1020 = vmatpush1.bf16.msra.mxu0 0
        %1021 = vmatprep.subr.bf16.mxu0 0
        %1022 = vmatpush1.bf16.msra.mxu0 0
        %1023 = vmatprep.subr.bf16.mxu0 0
        %1024 = vmatpush1.bf16.msra.mxu0 0
        %1025 = vmatprep.subr.bf16.mxu0 0
        %1026 = vmatpush1.bf16.msra.mxu0 0
        %1027 = vmatprep.subr.bf16.mxu0 0
        %1028 = vmatpush1.bf16.msra.mxu0 0
        %1029 = vmatprep.subr.bf16.mxu0 0
        %1030 = vmatpush1.bf16.msra.mxu0 0
        %1031 = vmatprep.subr.bf16.mxu0 0
        %1032 = vmatpush1.bf16.msra.mxu0 0
        %1033 = vmatprep.subr.bf16.mxu0 0
        %1034 = vmatpush1.bf16.msra.mxu0 0
        %1035 = vmatprep.subr.bf16.mxu0 0
        %1036 = vmatpush1.bf16.msra.mxu0 0
        %1037 = vmatprep.subr.bf16.mxu0 0
        %1038 = vmatpush1.bf16.msra.mxu0 0
        %1039 = vmatprep.subr.bf16.mxu0 0
        %1040 = vmatpush1.bf16.msra.mxu0 0
        %1041 = vmatprep.subr.bf16.mxu0 0
        %1042 = vmatpush1.bf16.msra.mxu0 0
        %1043 = vmatprep.subr.bf16.mxu0 0
        %1044 = vmatpush1.bf16.msra.mxu0 0
        %1045 = vmatprep.subr.bf16.mxu0 0
        %1046 = vmatpush1.bf16.msra.mxu0 0
        %1047 = vmatprep.mubr.bf16.mxu0 0
        %1048 = vmatmul.mubr.bf16.gmra.mrb[0].mxu0 %v1010
        %v1049 = vpop.f32.mrb[0].mxu0
        %v1050 = vadd.f32 0.0, %v1049
        %v1051 = vpop.f32.mrb[0].mxu0
        %v1052 = vpop.f32.mrb[0].mxu0
        %v1053 = vpop.f32.mrb[0].mxu0
        %1054 = vdwg.mxu0
        %1056 = vrot.lane.b32.xlu0 %v830, 8
        %v1057 = vpop.permute.xlu0 %1056
        %1060 = vrot.lane.b32.xlu0 %v940, 16
        %v1061 = vpop.permute.xlu0 %1060
        %1064 = vrot.lane.b32.xlu0 %v1050, 24
        %v1065 = vpop.permute.xlu0 %1064
        %v1067 = vsel %vm617, %v720, %v1057
        %vm1068 = vcmask 130048
        %v1069 = vsel %vm1068, %v1067, %v1061
        %vm1070 = vcmask 195584
        %v1071 = vsel %vm1070, %v1069, %v1065
        %v1072 = vld [vmem:[%s3] sm:$0xf]
        %v1073 = vld [vmem:[%s3 + $0x4] sm:$0xf]
        %v1074 = vld [vmem:[%s3 + $0x8] sm:$0xf]
        %v1075 = vld [vmem:[%s3 + $0xc] sm:$0xf]
        %v1076 = vpack.c.bf16 %v1071, %v1071
        %v1077 = vld [vmem:[%s4] sm:$0x1]
        %v1079 = vlaneseq
        %v1080 = vshrl.u32 %v1079, 7
        %v1081 = vsub.s32 0, %v1080
        %v1082 = vrot.slane %v1077, %v1081
        %v1088 = vunpack.c.l.b16 %v1072
        %v1089 = vunpack.c.l.b16 %v1073
        %v1090 = vunpack.c.l.b16 %v1074
        %v1091 = vunpack.c.l.b16 %v1075
        %v1092 = vpack.c.b16 %v1089, %v1088
        %v1093 = vpack.c.b16 %v1091, %v1090
        %v1097 = vsel %vm569, %v1076, 0
        %1099 = vmatprep.subr.bf16.mxu0 0
        %1100 = vmatpush1.bf16.msra.mxu0 %v1092
        %1101 = vmatprep.subr.bf16.mxu0 0
        %1102 = vmatpush1.bf16.msra.mxu0 %v1093
        %1103 = vmatprep.subr.bf16.mxu0 0
        %1104 = vmatpush1.bf16.msra.mxu0 0
        %1105 = vmatprep.subr.bf16.mxu0 0
        %1106 = vmatpush1.bf16.msra.mxu0 0
        %1107 = vmatprep.subr.bf16.mxu0 0
        %1108 = vmatpush1.bf16.msra.mxu0 0
        %1109 = vmatprep.subr.bf16.mxu0 0
        %1110 = vmatpush1.bf16.msra.mxu0 0
        %1111 = vmatprep.subr.bf16.mxu0 0
        %1112 = vmatpush1.bf16.msra.mxu0 0
        %1113 = vmatprep.subr.bf16.mxu0 0
        %1114 = vmatpush1.bf16.msra.mxu0 0
        %1115 = vmatprep.subr.bf16.mxu0 0
        %1116 = vmatpush1.bf16.msra.mxu0 0
        %1117 = vmatprep.subr.bf16.mxu0 0
        %1118 = vmatpush1.bf16.msra.mxu0 0
        %1119 = vmatprep.subr.bf16.mxu0 0
        %1120 = vmatpush1.bf16.msra.mxu0 0
        %1121 = vmatprep.subr.bf16.mxu0 0
        %1122 = vmatpush1.bf16.msra.mxu0 0
        %1123 = vmatprep.subr.bf16.mxu0 0
        %1124 = vmatpush1.bf16.msra.mxu0 0
        %1125 = vmatprep.subr.bf16.mxu0 0
        %1126 = vmatpush1.bf16.msra.mxu0 0
        %1127 = vmatprep.subr.bf16.mxu0 0
        %1128 = vmatpush1.bf16.msra.mxu0 0
        %1129 = vmatprep.subr.bf16.mxu0 0
        %1130 = vmatpush1.bf16.msra.mxu0 0
        %1131 = vmatprep.mubr.bf16.mxu0 0
        %1132 = vmatmul.mubr.bf16.gmra.mrb[0].mxu0 %v1097
        %v1133 = vpop.f32.mrb[0].mxu0
        %v1134 = vadd.f32 %v1082, %v1133
        %v1135 = vpop.f32.mrb[0].mxu0
        %v1136 = vpop.f32.mrb[0].mxu0
        %v1137 = vpop.f32.mrb[0].mxu0
        %1138 = vdwg.mxu0
        %v1139 = vadd.f32 %v544, %v1134
        %v1140 = vld [vmem:[%s5] sm:$0x1]
        %v1141 = vld [vmem:[%s6] sm:$0x1]
        %v1142 = vsel %vm569, %v1139, 0.0
        %1143 = vadd.xlane.f32.xlu0 %v1142
        %v1144 = vpop.xlane.xlu0 %1143
        %v1145 = vrcp.pop 32.0
        %v1146 = vmul.f32 %v1144, %v1145
        %v1147 = vsub.f32 %v1139, %v1146
        %v1148 = vmul.f32 %v1147, %v1147
        %v1149 = vsel %vm569, %v1148, 0.0
        %1150 = vadd.xlane.f32.xlu0 %v1149
        %v1151 = vpop.xlane.xlu0 %1150
        %v1152 = vmul.f32 %v1151, %v1145
        %v1153 = vadd.f32 %v1152, 1e-05
        %v1154 = vrsqrt.pop %v1153
        %v1155 = vmul.f32 %v1147, %v1154
        %v1157 = vlaneseq
        %v1158 = vshrl.u32 %v1157, 7
        %v1159 = vsub.s32 0, %v1158
        %v1160 = vrot.slane %v1140, %v1159
        %v1162 = vmul.f32 %v1155, %v1160
        %v1164 = vlaneseq
        %v1165 = vshrl.u32 %v1164, 7
        %v1166 = vsub.s32 0, %v1165
        %v1167 = vrot.slane %v1141, %v1166
        %v1169 = vadd.f32 %v1162, %v1167
        %v1170 = vld [vmem:[%s9] sm:$0xff]
        %v1171 = vld [vmem:[%s9 + $0x8] sm:$0xff]
        %v1172 = vld [vmem:[%s9 + $0x10] sm:$0xff]
        %v1173 = vld [vmem:[%s9 + $0x18] sm:$0xff]
        %v1174 = vld [vmem:[%s9 + $0x20] sm:$0xff]
        %v1175 = vld [vmem:[%s9 + $0x28] sm:$0xff]
        %v1176 = vld [vmem:[%s9 + $0x30] sm:$0xff]
        %v1177 = vld [vmem:[%s9 + $0x38] sm:$0xff]
        %v1178 = vld [vmem:[%s9 + $0x40] sm:$0xff]
        %v1179 = vld [vmem:[%s9 + $0x48] sm:$0xff]
        %v1180 = vld [vmem:[%s9 + $0x50] sm:$0xff]
        %v1181 = vld [vmem:[%s9 + $0x58] sm:$0xff]
        %v1182 = vld [vmem:[%s9 + $0x60] sm:$0xff]
        %v1183 = vld [vmem:[%s9 + $0x68] sm:$0xff]
        %v1184 = vld [vmem:[%s9 + $0x70] sm:$0xff]
        %v1185 = vld [vmem:[%s9 + $0x78] sm:$0xff]
        %v1186 = vld [vmem:[%s9 + $0x80] sm:$0xff]
        %v1187 = vld [vmem:[%s9 + $0x88] sm:$0xff]
        %v1188 = vld [vmem:[%s9 + $0x90] sm:$0xff]
        %v1189 = vld [vmem:[%s9 + $0x98] sm:$0xff]
        %v1190 = vld [vmem:[%s9 + $0xa0] sm:$0xff]
        %v1191 = vld [vmem:[%s9 + $0xa8] sm:$0xff]
        %v1192 = vld [vmem:[%s9 + $0xb0] sm:$0xff]
        %v1193 = vld [vmem:[%s9 + $0xb8] sm:$0xff]
        %v1194 = vld [vmem:[%s9 + $0xc0] sm:$0xff]
        %v1195 = vld [vmem:[%s9 + $0xc8] sm:$0xff]
        %v1196 = vld [vmem:[%s9 + $0xd0] sm:$0xff]
        %v1197 = vld [vmem:[%s9 + $0xd8] sm:$0xff]
        %v1198 = vld [vmem:[%s9 + $0xe0] sm:$0xff]
        %v1199 = vld [vmem:[%s9 + $0xe8] sm:$0xff]
        %v1200 = vld [vmem:[%s9 + $0xf0] sm:$0xff]
        %v1201 = vld [vmem:[%s9 + $0xf8] sm:$0xff]
        %v1202 = vpack.c.bf16 %v1169, %v1169
        %v1203 = vld [vmem:[%s10] sm:$0xff]
        %v1204 = vld [vmem:[%s10 + $0x8] sm:$0xff]
        %v1207 = vlaneseq
        %v1208 = vshrl.u32 %v1207, 7
        %v1209 = vsub.s32 0, %v1208
        %v1210 = vrot.slane %v1203, %v1209
        %v1211 = vlaneseq
        %v1212 = vshrl.u32 %v1211, 7
        %v1213 = vsub.s32 1, %v1212
        %v1214 = vrot.slane %v1203, %v1213
        %v1215 = vlaneseq
        %v1216 = vshrl.u32 %v1215, 7
        %v1217 = vsub.s32 2, %v1216
        %v1218 = vrot.slane %v1203, %v1217
        %v1219 = vlaneseq
        %v1220 = vshrl.u32 %v1219, 7
        %v1221 = vsub.s32 3, %v1220
        %v1222 = vrot.slane %v1203, %v1221
        %v1223 = vlaneseq
        %v1224 = vshrl.u32 %v1223, 7
        %v1225 = vsub.s32 4, %v1224
        %v1226 = vrot.slane %v1203, %v1225
        %v1227 = vlaneseq
        %v1228 = vshrl.u32 %v1227, 7
        %v1229 = vsub.s32 5, %v1228
        %v1230 = vrot.slane %v1203, %v1229
        %v1231 = vlaneseq
        %v1232 = vshrl.u32 %v1231, 7
        %v1233 = vsub.s32 6, %v1232
        %v1234 = vrot.slane %v1203, %v1233
        %v1235 = vlaneseq
        %v1236 = vshrl.u32 %v1235, 7
        %v1237 = vsub.s32 7, %v1236
        %v1238 = vrot.slane %v1203, %v1237
        %v1239 = vlaneseq
        %v1240 = vshrl.u32 %v1239, 7
        %v1241 = vsub.s32 0, %v1240
        %v1242 = vrot.slane %v1204, %v1241
        %v1243 = vlaneseq
        %v1244 = vshrl.u32 %v1243, 7
        %v1245 = vsub.s32 1, %v1244
        %v1246 = vrot.slane %v1204, %v1245
        %v1247 = vlaneseq
        %v1248 = vshrl.u32 %v1247, 7
        %v1249 = vsub.s32 2, %v1248
        %v1250 = vrot.slane %v1204, %v1249
        %v1251 = vlaneseq
        %v1252 = vshrl.u32 %v1251, 7
        %v1253 = vsub.s32 3, %v1252
        %v1254 = vrot.slane %v1204, %v1253
        %v1255 = vlaneseq
        %v1256 = vshrl.u32 %v1255, 7
        %v1257 = vsub.s32 4, %v1256
        %v1258 = vrot.slane %v1204, %v1257
        %v1259 = vlaneseq
        %v1260 = vshrl.u32 %v1259, 7
        %v1261 = vsub.s32 5, %v1260
        %v1262 = vrot.slane %v1204, %v1261
        %v1263 = vlaneseq
        %v1264 = vshrl.u32 %v1263, 7
        %v1265 = vsub.s32 6, %v1264
        %v1266 = vrot.slane %v1204, %v1265
        %v1267 = vlaneseq
        %v1268 = vshrl.u32 %v1267, 7
        %v1269 = vsub.s32 7, %v1268
        %v1270 = vrot.slane %v1204, %v1269
        %v1319 = vunpack.c.l.b16 %v1170
        %v1320 = vunpack.c.h.b16 %v1170
        %v1321 = vunpack.c.l.b16 %v1171
        %v1322 = vunpack.c.h.b16 %v1171
        %v1323 = vunpack.c.l.b16 %v1172
        %v1324 = vunpack.c.h.b16 %v1172
        %v1325 = vunpack.c.l.b16 %v1173
        %v1326 = vunpack.c.h.b16 %v1173
        %v1327 = vunpack.c.l.b16 %v1174
        %v1328 = vunpack.c.h.b16 %v1174
        %v1329 = vunpack.c.l.b16 %v1175
        %v1330 = vunpack.c.h.b16 %v1175
        %v1331 = vunpack.c.l.b16 %v1176
        %v1332 = vunpack.c.h.b16 %v1176
        %v1333 = vunpack.c.l.b16 %v1177
        %v1334 = vunpack.c.h.b16 %v1177
        %v1335 = vunpack.c.l.b16 %v1178
        %v1336 = vunpack.c.h.b16 %v1178
        %v1337 = vunpack.c.l.b16 %v1179
        %v1338 = vunpack.c.h.b16 %v1179
        %v1339 = vunpack.c.l.b16 %v1180
        %v1340 = vunpack.c.h.b16 %v1180
        %v1341 = vunpack.c.l.b16 %v1181
        %v1342 = vunpack.c.h.b16 %v1181
        %v1343 = vunpack.c.l.b16 %v1182
        %v1344 = vunpack.c.h.b16 %v1182
        %v1345 = vunpack.c.l.b16 %v1183
        %v1346 = vunpack.c.h.b16 %v1183
        %v1347 = vunpack.c.l.b16 %v1184
        %v1348 = vunpack.c.h.b16 %v1184
        %v1349 = vunpack.c.l.b16 %v1185
        %v1350 = vunpack.c.h.b16 %v1185
        %v1351 = vunpack.c.l.b16 %v1186
        %v1352 = vunpack.c.h.b16 %v1186
        %v1353 = vunpack.c.l.b16 %v1187
        %v1354 = vunpack.c.h.b16 %v1187
        %v1355 = vunpack.c.l.b16 %v1188
        %v1356 = vunpack.c.h.b16 %v1188
        %v1357 = vunpack.c.l.b16 %v1189
        %v1358 = vunpack.c.h.b16 %v1189
        %v1359 = vunpack.c.l.b16 %v1190
        %v1360 = vunpack.c.h.b16 %v1190
        %v1361 = vunpack.c.l.b16 %v1191
        %v1362 = vunpack.c.h.b16 %v1191
        %v1363 = vunpack.c.l.b16 %v1192
        %v1364 = vunpack.c.h.b16 %v1192
        %v1365 = vunpack.c.l.b16 %v1193
        %v1366 = vunpack.c.h.b16 %v1193
        %v1367 = vunpack.c.l.b16 %v1194
        %v1368 = vunpack.c.h.b16 %v1194
        %v1369 = vunpack.c.l.b16 %v1195
        %v1370 = vunpack.c.h.b16 %v1195
        %v1371 = vunpack.c.l.b16 %v1196
        %v1372 = vunpack.c.h.b16 %v1196
        %v1373 = vunpack.c.l.b16 %v1197
        %v1374 = vunpack.c.h.b16 %v1197
        %v1375 = vunpack.c.l.b16 %v1198
        %v1376 = vunpack.c.h.b16 %v1198
        %v1377 = vunpack.c.l.b16 %v1199
        %v1378 = vunpack.c.h.b16 %v1199
        %v1379 = vunpack.c.l.b16 %v1200
        %v1380 = vunpack.c.h.b16 %v1200
        %v1381 = vunpack.c.l.b16 %v1201
        %v1382 = vunpack.c.h.b16 %v1201
        %v1383 = vpack.c.b16 %v1335, %v1319
        %v1384 = vpack.c.b16 %v1336, %v1320
        %v1385 = vpack.c.b16 %v1337, %v1321
        %v1386 = vpack.c.b16 %v1338, %v1322
        %v1387 = vpack.c.b16 %v1339, %v1323
        %v1388 = vpack.c.b16 %v1340, %v1324
        %v1389 = vpack.c.b16 %v1341, %v1325
        %v1390 = vpack.c.b16 %v1342, %v1326
        %v1391 = vpack.c.b16 %v1343, %v1327
        %v1392 = vpack.c.b16 %v1344, %v1328
        %v1393 = vpack.c.b16 %v1345, %v1329
        %v1394 = vpack.c.b16 %v1346, %v1330
        %v1395 = vpack.c.b16 %v1347, %v1331
        %v1396 = vpack.c.b16 %v1348, %v1332
        %v1397 = vpack.c.b16 %v1349, %v1333
        %v1398 = vpack.c.b16 %v1350, %v1334
        %v1399 = vpack.c.b16 %v1367, %v1351
        %v1400 = vpack.c.b16 %v1368, %v1352
        %v1401 = vpack.c.b16 %v1369, %v1353
        %v1402 = vpack.c.b16 %v1370, %v1354
        %v1403 = vpack.c.b16 %v1371, %v1355
        %v1404 = vpack.c.b16 %v1372, %v1356
        %v1405 = vpack.c.b16 %v1373, %v1357
        %v1406 = vpack.c.b16 %v1374, %v1358
        %v1407 = vpack.c.b16 %v1375, %v1359
        %v1408 = vpack.c.b16 %v1376, %v1360
        %v1409 = vpack.c.b16 %v1377, %v1361
        %v1410 = vpack.c.b16 %v1378, %v1362
        %v1411 = vpack.c.b16 %v1379, %v1363
        %v1412 = vpack.c.b16 %v1380, %v1364
        %v1413 = vpack.c.b16 %v1381, %v1365
        %v1414 = vpack.c.b16 %v1382, %v1366
        %v1448 = vsel %vm569, %v1202, 0
        %1450 = vmatprep.subr.bf16.mxu0 %v1384
        %1451 = vmatpush1.bf16.msra.mxu0 %v1383
        %1452 = vmatprep.subr.bf16.mxu0 %v1400
        %1453 = vmatpush1.bf16.msra.mxu0 %v1399
        %1454 = vmatprep.subr.bf16.mxu0 0
        %1455 = vmatpush1.bf16.msra.mxu0 0
        %1456 = vmatprep.subr.bf16.mxu0 0
        %1457 = vmatpush1.bf16.msra.mxu0 0
        %1458 = vmatprep.subr.bf16.mxu0 0
        %1459 = vmatpush1.bf16.msra.mxu0 0
        %1460 = vmatprep.subr.bf16.mxu0 0
        %1461 = vmatpush1.bf16.msra.mxu0 0
        %1462 = vmatprep.subr.bf16.mxu0 0
        %1463 = vmatpush1.bf16.msra.mxu0 0
        %1464 = vmatprep.subr.bf16.mxu0 0
        %1465 = vmatpush1.bf16.msra.mxu0 0
        %1466 = vmatprep.subr.bf16.mxu0 0
        %1467 = vmatpush1.bf16.msra.mxu0 0
        %1468 = vmatprep.subr.bf16.mxu0 0
        %1469 = vmatpush1.bf16.msra.mxu0 0
        %1470 = vmatprep.subr.bf16.mxu0 0
        %1471 = vmatpush1.bf16.msra.mxu0 0
        %1472 = vmatprep.subr.bf16.mxu0 0
        %1473 = vmatpush1.bf16.msra.mxu0 0
        %1474 = vmatprep.subr.bf16.mxu0 0
        %1475 = vmatpush1.bf16.msra.mxu0 0
        %1476 = vmatprep.subr.bf16.mxu0 0
        %1477 = vmatpush1.bf16.msra.mxu0 0
        %1478 = vmatprep.subr.bf16.mxu0 0
        %1479 = vmatpush1.bf16.msra.mxu0 0
        %1480 = vmatprep.subr.bf16.mxu0 0
        %1481 = vmatpush1.bf16.msra.mxu0 0
        %1482 = vmatprep.mubr.bf16.mxu0 0
        %1483 = vmatmul.mubr.bf16.gmra.mrb[0].mxu0 %v1448
        %v1484 = vpop.f32.mrb[0].mxu0
        %v1485 = vadd.f32 %v1210, %v1484
        %v1486 = vpop.f32.mrb[0].mxu0
        %v1487 = vadd.f32 %v1214, %v1486
        %v1488 = vpop.f32.mrb[0].mxu0
        %v1489 = vpop.f32.mrb[0].mxu0
        %1490 = vdwg.mxu0
        %1491 = vmatprep.subr.bf16.mxu0 %v1386
        %1492 = vmatpush1.bf16.msra.mxu0 %v1385
        %1493 = vmatprep.subr.bf16.mxu0 %v1402
        %1494 = vmatpush1.bf16.msra.mxu0 %v1401
        %1495 = vmatprep.subr.bf16.mxu0 0
        %1496 = vmatpush1.bf16.msra.mxu0 0
        %1497 = vmatprep.subr.bf16.mxu0 0
        %1498 = vmatpush1.bf16.msra.mxu0 0
        %1499 = vmatprep.subr.bf16.mxu0 0
        %1500 = vmatpush1.bf16.msra.mxu0 0
        %1501 = vmatprep.subr.bf16.mxu0 0
        %1502 = vmatpush1.bf16.msra.mxu0 0
        %1503 = vmatprep.subr.bf16.mxu0 0
        %1504 = vmatpush1.bf16.msra.mxu0 0
        %1505 = vmatprep.subr.bf16.mxu0 0
        %1506 = vmatpush1.bf16.msra.mxu0 0
        %1507 = vmatprep.subr.bf16.mxu0 0
        %1508 = vmatpush1.bf16.msra.mxu0 0
        %1509 = vmatprep.subr.bf16.mxu0 0
        %1510 = vmatpush1.bf16.msra.mxu0 0
        %1511 = vmatprep.subr.bf16.mxu0 0
        %1512 = vmatpush1.bf16.msra.mxu0 0
        %1513 = vmatprep.subr.bf16.mxu0 0
        %1514 = vmatpush1.bf16.msra.mxu0 0
        %1515 = vmatprep.subr.bf16.mxu0 0
        %1516 = vmatpush1.bf16.msra.mxu0 0
        %1517 = vmatprep.subr.bf16.mxu0 0
        %1518 = vmatpush1.bf16.msra.mxu0 0
        %1519 = vmatprep.subr.bf16.mxu0 0
        %1520 = vmatpush1.bf16.msra.mxu0 0
        %1521 = vmatprep.subr.bf16.mxu0 0
        %1522 = vmatpush1.bf16.msra.mxu0 0
        %1523 = vmatprep.mubr.bf16.mxu0 0
        %1524 = vmatmul.mubr.bf16.gmra.mrb[0].mxu0 %v1448
        %v1525 = vpop.f32.mrb[0].mxu0
        %v1526 = vadd.f32 %v1218, %v1525
        %v1527 = vpop.f32.mrb[0].mxu0
        %v1528 = vadd.f32 %v1222, %v1527
        %v1529 = vpop.f32.mrb[0].mxu0
        %v1530 = vpop.f32.mrb[0].mxu0
        %1531 = vdwg.mxu0
        %1532 = vmatprep.subr.bf16.mxu0 %v1388
        %1533 = vmatpush1.bf16.msra.mxu0 %v1387
        %1534 = vmatprep.subr.bf16.mxu0 %v1404
        %1535 = vmatpush1.bf16.msra.mxu0 %v1403
        %1536 = vmatprep.subr.bf16.mxu0 0
        %1537 = vmatpush1.bf16.msra.mxu0 0
        %1538 = vmatprep.subr.bf16.mxu0 0
        %1539 = vmatpush1.bf16.msra.mxu0 0
        %1540 = vmatprep.subr.bf16.mxu0 0
        %1541 = vmatpush1.bf16.msra.mxu0 0
        %1542 = vmatprep.subr.bf16.mxu0 0
        %1543 = vmatpush1.bf16.msra.mxu0 0
        %1544 = vmatprep.subr.bf16.mxu0 0
        %1545 = vmatpush1.bf16.msra.mxu0 0
        %1546 = vmatprep.subr.bf16.mxu0 0
        %1547 = vmatpush1.bf16.msra.mxu0 0
        %1548 = vmatprep.subr.bf16.mxu0 0
        %1549 = vmatpush1.bf16.msra.mxu0 0
        %1550 = vmatprep.subr.bf16.mxu0 0
        %1551 = vmatpush1.bf16.msra.mxu0 0
        %1552 = vmatprep.subr.bf16.mxu0 0
        %1553 = vmatpush1.bf16.msra.mxu0 0
        %1554 = vmatprep.subr.bf16.mxu0 0
        %1555 = vmatpush1.bf16.msra.mxu0 0
        %1556 = vmatprep.subr.bf16.mxu0 0
        %1557 = vmatpush1.bf16.msra.mxu0 0
        %1558 = vmatprep.subr.bf16.mxu0 0
        %1559 = vmatpush1.bf16.msra.mxu0 0
        %1560 = vmatprep.subr.bf16.mxu0 0
        %1561 = vmatpush1.bf16.msra.mxu0 0
        %1562 = vmatprep.subr.bf16.mxu0 0
        %1563 = vmatpush1.bf16.msra.mxu0 0
        %1564 = vmatprep.mubr.bf16.mxu0 0
        %1565 = vmatmul.mubr.bf16.gmra.mrb[0].mxu0 %v1448
        %v1566 = vpop.f32.mrb[0].mxu0
        %v1567 = vadd.f32 %v1226, %v1566
        %v1568 = vpop.f32.mrb[0].mxu0
        %v1569 = vadd.f32 %v1230, %v1568
        %v1570 = vpop.f32.mrb[0].mxu0
        %v1571 = vpop.f32.mrb[0].mxu0
        %1572 = vdwg.mxu0
        %1573 = vmatprep.subr.bf16.mxu0 %v1390
        %1574 = vmatpush1.bf16.msra.mxu0 %v1389
        %1575 = vmatprep.subr.bf16.mxu0 %v1406
        %1576 = vmatpush1.bf16.msra.mxu0 %v1405
        %1577 = vmatprep.subr.bf16.mxu0 0
        %1578 = vmatpush1.bf16.msra.mxu0 0
        %1579 = vmatprep.subr.bf16.mxu0 0
        %1580 = vmatpush1.bf16.msra.mxu0 0
        %1581 = vmatprep.subr.bf16.mxu0 0
        %1582 = vmatpush1.bf16.msra.mxu0 0
        %1583 = vmatprep.subr.bf16.mxu0 0
        %1584 = vmatpush1.bf16.msra.mxu0 0
        %1585 = vmatprep.subr.bf16.mxu0 0
        %1586 = vmatpush1.bf16.msra.mxu0 0
        %1587 = vmatprep.subr.bf16.mxu0 0
        %1588 = vmatpush1.bf16.msra.mxu0 0
        %1589 = vmatprep.subr.bf16.mxu0 0
        %1590 = vmatpush1.bf16.msra.mxu0 0
        %1591 = vmatprep.subr.bf16.mxu0 0
        %1592 = vmatpush1.bf16.msra.mxu0 0
        %1593 = vmatprep.subr.bf16.mxu0 0
        %1594 = vmatpush1.bf16.msra.mxu0 0
        %1595 = vmatprep.subr.bf16.mxu0 0
        %1596 = vmatpush1.bf16.msra.mxu0 0
        %1597 = vmatprep.subr.bf16.mxu0 0
        %1598 = vmatpush1.bf16.msra.mxu0 0
        %1599 = vmatprep.subr.bf16.mxu0 0
        %1600 = vmatpush1.bf16.msra.mxu0 0
        %1601 = vmatprep.subr.bf16.mxu0 0
        %1602 = vmatpush1.bf16.msra.mxu0 0
        %1603 = vmatprep.subr.bf16.mxu0 0
        %1604 = vmatpush1.bf16.msra.mxu0 0
        %1605 = vmatprep.mubr.bf16.mxu0 0
        %1606 = vmatmul.mubr.bf16.gmra.mrb[0].mxu0 %v1448
        %v1607 = vpop.f32.mrb[0].mxu0
        %v1608 = vadd.f32 %v1234, %v1607
        %v1609 = vpop.f32.mrb[0].mxu0
        %v1610 = vadd.f32 %v1238, %v1609
        %v1611 = vpop.f32.mrb[0].mxu0
        %v1612 = vpop.f32.mrb[0].mxu0
        %1613 = vdwg.mxu0
        %1614 = vmatprep.subr.bf16.mxu0 %v1392
        %1615 = vmatpush1.bf16.msra.mxu0 %v1391
        %1616 = vmatprep.subr.bf16.mxu0 %v1408
        %1617 = vmatpush1.bf16.msra.mxu0 %v1407
        %1618 = vmatprep.subr.bf16.mxu0 0
        %1619 = vmatpush1.bf16.msra.mxu0 0
        %1620 = vmatprep.subr.bf16.mxu0 0
        %1621 = vmatpush1.bf16.msra.mxu0 0
        %1622 = vmatprep.subr.bf16.mxu0 0
        %1623 = vmatpush1.bf16.msra.mxu0 0
        %1624 = vmatprep.subr.bf16.mxu0 0
        %1625 = vmatpush1.bf16.msra.mxu0 0
        %1626 = vmatprep.subr.bf16.mxu0 0
        %1627 = vmatpush1.bf16.msra.mxu0 0
        %1628 = vmatprep.subr.bf16.mxu0 0
        %1629 = vmatpush1.bf16.msra.mxu0 0
        %1630 = vmatprep.subr.bf16.mxu0 0
        %1631 = vmatpush1.bf16.msra.mxu0 0
        %1632 = vmatprep.subr.bf16.mxu0 0
        %1633 = vmatpush1.bf16.msra.mxu0 0
        %1634 = vmatprep.subr.bf16.mxu0 0
        %1635 = vmatpush1.bf16.msra.mxu0 0
        %1636 = vmatprep.subr.bf16.mxu0 0
        %1637 = vmatpush1.bf16.msra.mxu0 0
        %1638 = vmatprep.subr.bf16.mxu0 0
        %1639 = vmatpush1.bf16.msra.mxu0 0
        %1640 = vmatprep.subr.bf16.mxu0 0
        %1641 = vmatpush1.bf16.msra.mxu0 0
        %1642 = vmatprep.subr.bf16.mxu0 0
        %1643 = vmatpush1.bf16.msra.mxu0 0
        %1644 = vmatprep.subr.bf16.mxu0 0
        %1645 = vmatpush1.bf16.msra.mxu0 0
        %1646 = vmatprep.mubr.bf16.mxu0 0
        %1647 = vmatmul.mubr.bf16.gmra.mrb[0].mxu0 %v1448
        %v1648 = vpop.f32.mrb[0].mxu0
        %v1649 = vadd.f32 %v1242, %v1648
        %v1650 = vpop.f32.mrb[0].mxu0
        %v1651 = vadd.f32 %v1246, %v1650
        %v1652 = vpop.f32.mrb[0].mxu0
        %v1653 = vpop.f32.mrb[0].mxu0
        %1654 = vdwg.mxu0
        %1655 = vmatprep.subr.bf16.mxu0 %v1394
        %1656 = vmatpush1.bf16.msra.mxu0 %v1393
        %1657 = vmatprep.subr.bf16.mxu0 %v1410
        %1658 = vmatpush1.bf16.msra.mxu0 %v1409
        %1659 = vmatprep.subr.bf16.mxu0 0
        %1660 = vmatpush1.bf16.msra.mxu0 0
        %1661 = vmatprep.subr.bf16.mxu0 0
        %1662 = vmatpush1.bf16.msra.mxu0 0
        %1663 = vmatprep.subr.bf16.mxu0 0
        %1664 = vmatpush1.bf16.msra.mxu0 0
        %1665 = vmatprep.subr.bf16.mxu0 0
        %1666 = vmatpush1.bf16.msra.mxu0 0
        %1667 = vmatprep.subr.bf16.mxu0 0
        %1668 = vmatpush1.bf16.msra.mxu0 0
        %1669 = vmatprep.subr.bf16.mxu0 0
        %1670 = vmatpush1.bf16.msra.mxu0 0
        %1671 = vmatprep.subr.bf16.mxu0 0
        %1672 = vmatpush1.bf16.msra.mxu0 0
        %1673 = vmatprep.subr.bf16.mxu0 0
        %1674 = vmatpush1.bf16.msra.mxu0 0
        %1675 = vmatprep.subr.bf16.mxu0 0
        %1676 = vmatpush1.bf16.msra.mxu0 0
        %1677 = vmatprep.subr.bf16.mxu0 0
        %1678 = vmatpush1.bf16.msra.mxu0 0
        %1679 = vmatprep.subr.bf16.mxu0 0
        %1680 = vmatpush1.bf16.msra.mxu0 0
        %1681 = vmatprep.subr.bf16.mxu0 0
        %1682 = vmatpush1.bf16.msra.mxu0 0
        %1683 = vmatprep.subr.bf16.mxu0 0
        %1684 = vmatpush1.bf16.msra.mxu0 0
        %1685 = vmatprep.subr.bf16.mxu0 0
        %1686 = vmatpush1.bf16.msra.mxu0 0
        %1687 = vmatprep.mubr.bf16.mxu0 0
        %1688 = vmatmul.mubr.bf16.gmra.mrb[0].mxu0 %v1448
        %v1689 = vpop.f32.mrb[0].mxu0
        %v1690 = vadd.f32 %v1250, %v1689
        %v1691 = vpop.f32.mrb[0].mxu0
        %v1692 = vadd.f32 %v1254, %v1691
        %v1693 = vpop.f32.mrb[0].mxu0
        %v1694 = vpop.f32.mrb[0].mxu0
        %1695 = vdwg.mxu0
        %1696 = vmatprep.subr.bf16.mxu0 %v1396
        %1697 = vmatpush1.bf16.msra.mxu0 %v1395
        %1698 = vmatprep.subr.bf16.mxu0 %v1412
        %1699 = vmatpush1.bf16.msra.mxu0 %v1411
        %1700 = vmatprep.subr.bf16.mxu0 0
        %1701 = vmatpush1.bf16.msra.mxu0 0
        %1702 = vmatprep.subr.bf16.mxu0 0
        %1703 = vmatpush1.bf16.msra.mxu0 0
        %1704 = vmatprep.subr.bf16.mxu0 0
        %1705 = vmatpush1.bf16.msra.mxu0 0
        %1706 = vmatprep.subr.bf16.mxu0 0
        %1707 = vmatpush1.bf16.msra.mxu0 0
        %1708 = vmatprep.subr.bf16.mxu0 0
        %1709 = vmatpush1.bf16.msra.mxu0 0
        %1710 = vmatprep.subr.bf16.mxu0 0
        %1711 = vmatpush1.bf16.msra.mxu0 0
        %1712 = vmatprep.subr.bf16.mxu0 0
        %1713 = vmatpush1.bf16.msra.mxu0 0
        %1714 = vmatprep.subr.bf16.mxu0 0
        %1715 = vmatpush1.bf16.msra.mxu0 0
        %1716 = vmatprep.subr.bf16.mxu0 0
        %1717 = vmatpush1.bf16.msra.mxu0 0
        %1718 = vmatprep.subr.bf16.mxu0 0
        %1719 = vmatpush1.bf16.msra.mxu0 0
        %1720 = vmatprep.subr.bf16.mxu0 0
        %1721 = vmatpush1.bf16.msra.mxu0 0
        %1722 = vmatprep.subr.bf16.mxu0 0
        %1723 = vmatpush1.bf16.msra.mxu0 0
        %1724 = vmatprep.subr.bf16.mxu0 0
        %1725 = vmatpush1.bf16.msra.mxu0 0
        %1726 = vmatprep.subr.bf16.mxu0 0
        %1727 = vmatpush1.bf16.msra.mxu0 0
        %1728 = vmatprep.mubr.bf16.mxu0 0
        %1729 = vmatmul.mubr.bf16.gmra.mrb[0].mxu0 %v1448
        %v1730 = vpop.f32.mrb[0].mxu0
        %v1731 = vadd.f32 %v1258, %v1730
        %v1732 = vpop.f32.mrb[0].mxu0
        %v1733 = vadd.f32 %v1262, %v1732
        %v1734 = vpop.f32.mrb[0].mxu0
        %v1735 = vpop.f32.mrb[0].mxu0
        %1736 = vdwg.mxu0
        %1737 = vmatprep.subr.bf16.mxu0 %v1398
        %1738 = vmatpush1.bf16.msra.mxu0 %v1397
        %1739 = vmatprep.subr.bf16.mxu0 %v1414
        %1740 = vmatpush1.bf16.msra.mxu0 %v1413
        %1741 = vmatprep.subr.bf16.mxu0 0
        %1742 = vmatpush1.bf16.msra.mxu0 0
        %1743 = vmatprep.subr.bf16.mxu0 0
        %1744 = vmatpush1.bf16.msra.mxu0 0
        %1745 = vmatprep.subr.bf16.mxu0 0
        %1746 = vmatpush1.bf16.msra.mxu0 0
        %1747 = vmatprep.subr.bf16.mxu0 0
        %1748 = vmatpush1.bf16.msra.mxu0 0
        %1749 = vmatprep.subr.bf16.mxu0 0
        %1750 = vmatpush1.bf16.msra.mxu0 0
        %1751 = vmatprep.subr.bf16.mxu0 0
        %1752 = vmatpush1.bf16.msra.mxu0 0
        %1753 = vmatprep.subr.bf16.mxu0 0
        %1754 = vmatpush1.bf16.msra.mxu0 0
        %1755 = vmatprep.subr.bf16.mxu0 0
        %1756 = vmatpush1.bf16.msra.mxu0 0
        %1757 = vmatprep.subr.bf16.mxu0 0
        %1758 = vmatpush1.bf16.msra.mxu0 0
        %1759 = vmatprep.subr.bf16.mxu0 0
        %1760 = vmatpush1.bf16.msra.mxu0 0
        %1761 = vmatprep.subr.bf16.mxu0 0
        %1762 = vmatpush1.bf16.msra.mxu0 0
        %1763 = vmatprep.subr.bf16.mxu0 0
        %1764 = vmatpush1.bf16.msra.mxu0 0
        %1765 = vmatprep.subr.bf16.mxu0 0
        %1766 = vmatpush1.bf16.msra.mxu0 0
        %1767 = vmatprep.subr.bf16.mxu0 0
        %1768 = vmatpush1.bf16.msra.mxu0 0
        %1769 = vmatprep.mubr.bf16.mxu0 0
        %1770 = vmatmul.mubr.bf16.gmra.mrb[0].mxu0 %v1448
        %v1771 = vpop.f32.mrb[0].mxu0
        %v1772 = vadd.f32 %v1266, %v1771
        %v1773 = vpop.f32.mrb[0].mxu0
        %v1774 = vadd.f32 %v1270, %v1773
        %v1775 = vpop.f32.mrb[0].mxu0
        %v1776 = vpop.f32.mrb[0].mxu0
        %1777 = vdwg.mxu0
        %v1778 = vmax.f32 %v1485, 0.0
        %v1779 = vmax.f32 %v1487, 0.0
        %v1780 = vmax.f32 %v1526, 0.0
        %v1781 = vmax.f32 %v1528, 0.0
        %v1782 = vmax.f32 %v1567, 0.0
        %v1783 = vmax.f32 %v1569, 0.0
        %v1784 = vmax.f32 %v1608, 0.0
        %v1785 = vmax.f32 %v1610, 0.0
        %v1786 = vmax.f32 %v1649, 0.0
        %v1787 = vmax.f32 %v1651, 0.0
        %v1788 = vmax.f32 %v1690, 0.0
        %v1789 = vmax.f32 %v1692, 0.0
        %v1790 = vmax.f32 %v1731, 0.0
        %v1791 = vmax.f32 %v1733, 0.0
        %v1792 = vmax.f32 %v1772, 0.0
        %v1793 = vmax.f32 %v1774, 0.0
        %v1794 = vld [vmem:[%s11] sm:$0xf]
        %v1795 = vld [vmem:[%s11 + $0x4] sm:$0xf]
        %v1796 = vld [vmem:[%s11 + $0x8] sm:$0xf]
        %v1797 = vld [vmem:[%s11 + $0xc] sm:$0xf]
        %v1798 = vld [vmem:[%s11 + $0x10] sm:$0xf]
        %v1799 = vld [vmem:[%s11 + $0x14] sm:$0xf]
        %v1800 = vld [vmem:[%s11 + $0x18] sm:$0xf]
        %v1801 = vld [vmem:[%s11 + $0x1c] sm:$0xf]
        %v1802 = vld [vmem:[%s11 + $0x20] sm:$0xf]
        %v1803 = vld [vmem:[%s11 + $0x24] sm:$0xf]
        %v1804 = vld [vmem:[%s11 + $0x28] sm:$0xf]
        %v1805 = vld [vmem:[%s11 + $0x2c] sm:$0xf]
        %v1806 = vld [vmem:[%s11 + $0x30] sm:$0xf]
        %v1807 = vld [vmem:[%s11 + $0x34] sm:$0xf]
        %v1808 = vld [vmem:[%s11 + $0x38] sm:$0xf]
        %v1809 = vld [vmem:[%s11 + $0x3c] sm:$0xf]
        %v1810 = vld [vmem:[%s11 + $0x40] sm:$0xf]
        %v1811 = vld [vmem:[%s11 + $0x44] sm:$0xf]
        %v1812 = vld [vmem:[%s11 + $0x48] sm:$0xf]
        %v1813 = vld [vmem:[%s11 + $0x4c] sm:$0xf]
        %v1814 = vld [vmem:[%s11 + $0x50] sm:$0xf]
        %v1815 = vld [vmem:[%s11 + $0x54] sm:$0xf]
        %v1816 = vld [vmem:[%s11 + $0x58] sm:$0xf]
        %v1817 = vld [vmem:[%s11 + $0x5c] sm:$0xf]
        %v1818 = vld [vmem:[%s11 + $0x60] sm:$0xf]
        %v1819 = vld [vmem:[%s11 + $0x64] sm:$0xf]
        %v1820 = vld [vmem:[%s11 + $0x68] sm:$0xf]
        %v1821 = vld [vmem:[%s11 + $0x6c] sm:$0xf]
        %v1822 = vld [vmem:[%s11 + $0x70] sm:$0xf]
        %v1823 = vld [vmem:[%s11 + $0x74] sm:$0xf]
        %v1824 = vld [vmem:[%s11 + $0x78] sm:$0xf]
        %v1825 = vld [vmem:[%s11 + $0x7c] sm:$0xf]
        %v1826 = vld [vmem:[%s11 + $0x80] sm:$0xf]
        %v1827 = vld [vmem:[%s11 + $0x84] sm:$0xf]
        %v1828 = vld [vmem:[%s11 + $0x88] sm:$0xf]
        %v1829 = vld [vmem:[%s11 + $0x8c] sm:$0xf]
        %v1830 = vld [vmem:[%s11 + $0x90] sm:$0xf]
        %v1831 = vld [vmem:[%s11 + $0x94] sm:$0xf]
        %v1832 = vld [vmem:[%s11 + $0x98] sm:$0xf]
        %v1833 = vld [vmem:[%s11 + $0x9c] sm:$0xf]
        %v1834 = vld [vmem:[%s11 + $0xa0] sm:$0xf]
        %v1835 = vld [vmem:[%s11 + $0xa4] sm:$0xf]
        %v1836 = vld [vmem:[%s11 + $0xa8] sm:$0xf]
        %v1837 = vld [vmem:[%s11 + $0xac] sm:$0xf]
        %v1838 = vld [vmem:[%s11 + $0xb0] sm:$0xf]
        %v1839 = vld [vmem:[%s11 + $0xb4] sm:$0xf]
        %v1840 = vld [vmem:[%s11 + $0xb8] sm:$0xf]
        %v1841 = vld [vmem:[%s11 + $0xbc] sm:$0xf]
        %v1842 = vld [vmem:[%s11 + $0xc0] sm:$0xf]
        %v1843 = vld [vmem:[%s11 + $0xc4] sm:$0xf]
        %v1844 = vld [vmem:[%s11 + $0xc8] sm:$0xf]
        %v1845 = vld [vmem:[%s11 + $0xcc] sm:$0xf]
        %v1846 = vld [vmem:[%s11 + $0xd0] sm:$0xf]
        %v1847 = vld [vmem:[%s11 + $0xd4] sm:$0xf]
        %v1848 = vld [vmem:[%s11 + $0xd8] sm:$0xf]
        %v1849 = vld [vmem:[%s11 + $0xdc] sm:$0xf]
        %v1850 = vld [vmem:[%s11 + $0xe0] sm:$0xf]
        %v1851 = vld [vmem:[%s11 + $0xe4] sm:$0xf]
        %v1852 = vld [vmem:[%s11 + $0xe8] sm:$0xf]
        %v1853 = vld [vmem:[%s11 + $0xec] sm:$0xf]
        %v1854 = vld [vmem:[%s11 + $0xf0] sm:$0xf]
        %v1855 = vld [vmem:[%s11 + $0xf4] sm:$0xf]
        %v1856 = vld [vmem:[%s11 + $0xf8] sm:$0xf]
        %v1857 = vld [vmem:[%s11 + $0xfc] sm:$0xf]
        %v1858 = vld [vmem:[%s11 + $0x100] sm:$0xf]
        %v1859 = vld [vmem:[%s11 + $0x104] sm:$0xf]
        %v1860 = vld [vmem:[%s11 + $0x108] sm:$0xf]
        %v1861 = vld [vmem:[%s11 + $0x10c] sm:$0xf]
        %v1862 = vld [vmem:[%s11 + $0x110] sm:$0xf]
        %v1863 = vld [vmem:[%s11 + $0x114] sm:$0xf]
        %v1864 = vld [vmem:[%s11 + $0x118] sm:$0xf]
        %v1865 = vld [vmem:[%s11 + $0x11c] sm:$0xf]
        %v1866 = vld [vmem:[%s11 + $0x120] sm:$0xf]
        %v1867 = vld [vmem:[%s11 + $0x124] sm:$0xf]
        %v1868 = vld [vmem:[%s11 + $0x128] sm:$0xf]
        %v1869 = vld [vmem:[%s11 + $0x12c] sm:$0xf]
        %v1870 = vld [vmem:[%s11 + $0x130] sm:$0xf]
        %v1871 = vld [vmem:[%s11 + $0x134] sm:$0xf]
        %v1872 = vld [vmem:[%s11 + $0x138] sm:$0xf]
        %v1873 = vld [vmem:[%s11 + $0x13c] sm:$0xf]
        %v1874 = vld [vmem:[%s11 + $0x140] sm:$0xf]
        %v1875 = vld [vmem:[%s11 + $0x144] sm:$0xf]
        %v1876 = vld [vmem:[%s11 + $0x148] sm:$0xf]
        %v1877 = vld [vmem:[%s11 + $0x14c] sm:$0xf]
        %v1878 = vld [vmem:[%s11 + $0x150] sm:$0xf]
        %v1879 = vld [vmem:[%s11 + $0x154] sm:$0xf]
        %v1880 = vld [vmem:[%s11 + $0x158] sm:$0xf]
        %v1881 = vld [vmem:[%s11 + $0x15c] sm:$0xf]
        %v1882 = vld [vmem:[%s11 + $0x160] sm:$0xf]
        %v1883 = vld [vmem:[%s11 + $0x164] sm:$0xf]
        %v1884 = vld [vmem:[%s11 + $0x168] sm:$0xf]
        %v1885 = vld [vmem:[%s11 + $0x16c] sm:$0xf]
        %v1886 = vld [vmem:[%s11 + $0x170] sm:$0xf]
        %v1887 = vld [vmem:[%s11 + $0x174] sm:$0xf]
        %v1888 = vld [vmem:[%s11 + $0x178] sm:$0xf]
        %v1889 = vld [vmem:[%s11 + $0x17c] sm:$0xf]
        %v1890 = vld [vmem:[%s11 + $0x180] sm:$0xf]
        %v1891 = vld [vmem:[%s11 + $0x184] sm:$0xf]
        %v1892 = vld [vmem:[%s11 + $0x188] sm:$0xf]
        %v1893 = vld [vmem:[%s11 + $0x18c] sm:$0xf]
        %v1894 = vld [vmem:[%s11 + $0x190] sm:$0xf]
        %v1895 = vld [vmem:[%s11 + $0x194] sm:$0xf]
        %v1896 = vld [vmem:[%s11 + $0x198] sm:$0xf]
        %v1897 = vld [vmem:[%s11 + $0x19c] sm:$0xf]
        %v1898 = vld [vmem:[%s11 + $0x1a0] sm:$0xf]
        %v1899 = vld [vmem:[%s11 + $0x1a4] sm:$0xf]
        %v1900 = vld [vmem:[%s11 + $0x1a8] sm:$0xf]
        %v1901 = vld [vmem:[%s11 + $0x1ac] sm:$0xf]
        %v1902 = vld [vmem:[%s11 + $0x1b0] sm:$0xf]
        %v1903 = vld [vmem:[%s11 + $0x1b4] sm:$0xf]
        %v1904 = vld [vmem:[%s11 + $0x1b8] sm:$0xf]
        %v1905 = vld [vmem:[%s11 + $0x1bc] sm:$0xf]
        %v1906 = vld [vmem:[%s11 + $0x1c0] sm:$0xf]
        %v1907 = vld [vmem:[%s11 + $0x1c4] sm:$0xf]
        %v1908 = vld [vmem:[%s11 + $0x1c8] sm:$0xf]
        %v1909 = vld [vmem:[%s11 + $0x1cc] sm:$0xf]
        %v1910 = vld [vmem:[%s11 + $0x1d0] sm:$0xf]
        %v1911 = vld [vmem:[%s11 + $0x1d4] sm:$0xf]
        %v1912 = vld [vmem:[%s11 + $0x1d8] sm:$0xf]
        %v1913 = vld [vmem:[%s11 + $0x1dc] sm:$0xf]
        %v1914 = vld [vmem:[%s11 + $0x1e0] sm:$0xf]
        %v1915 = vld [vmem:[%s11 + $0x1e4] sm:$0xf]
        %v1916 = vld [vmem:[%s11 + $0x1e8] sm:$0xf]
        %v1917 = vld [vmem:[%s11 + $0x1ec] sm:$0xf]
        %v1918 = vld [vmem:[%s11 + $0x1f0] sm:$0xf]
        %v1919 = vld [vmem:[%s11 + $0x1f4] sm:$0xf]
        %v1920 = vld [vmem:[%s11 + $0x1f8] sm:$0xf]
        %v1921 = vld [vmem:[%s11 + $0x1fc] sm:$0xf]
        %v1922 = vld [vmem:[%s11 + $0x200] sm:$0xf]
        %v1923 = vld [vmem:[%s11 + $0x204] sm:$0xf]
        %v1924 = vld [vmem:[%s11 + $0x208] sm:$0xf]
        %v1925 = vld [vmem:[%s11 + $0x20c] sm:$0xf]
        %v1926 = vld [vmem:[%s11 + $0x210] sm:$0xf]
        %v1927 = vld [vmem:[%s11 + $0x214] sm:$0xf]
        %v1928 = vld [vmem:[%s11 + $0x218] sm:$0xf]
        %v1929 = vld [vmem:[%s11 + $0x21c] sm:$0xf]
        %v1930 = vld [vmem:[%s11 + $0x220] sm:$0xf]
        %v1931 = vld [vmem:[%s11 + $0x224] sm:$0xf]
        %v1932 = vld [vmem:[%s11 + $0x228] sm:$0xf]
        %v1933 = vld [vmem:[%s11 + $0x22c] sm:$0xf]
        %v1934 = vld [vmem:[%s11 + $0x230] sm:$0xf]
        %v1935 = vld [vmem:[%s11 + $0x234] sm:$0xf]
        %v1936 = vld [vmem:[%s11 + $0x238] sm:$0xf]
        %v1937 = vld [vmem:[%s11 + $0x23c] sm:$0xf]
        %v1938 = vld [vmem:[%s11 + $0x240] sm:$0xf]
        %v1939 = vld [vmem:[%s11 + $0x244] sm:$0xf]
        %v1940 = vld [vmem:[%s11 + $0x248] sm:$0xf]
        %v1941 = vld [vmem:[%s11 + $0x24c] sm:$0xf]
        %v1942 = vld [vmem:[%s11 + $0x250] sm:$0xf]
        %v1943 = vld [vmem:[%s11 + $0x254] sm:$0xf]
        %v1944 = vld [vmem:[%s11 + $0x258] sm:$0xf]
        %v1945 = vld [vmem:[%s11 + $0x25c] sm:$0xf]
        %v1946 = vld [vmem:[%s11 + $0x260] sm:$0xf]
        %v1947 = vld [vmem:[%s11 + $0x264] sm:$0xf]
        %v1948 = vld [vmem:[%s11 + $0x268] sm:$0xf]
        %v1949 = vld [vmem:[%s11 + $0x26c] sm:$0xf]
        %v1950 = vld [vmem:[%s11 + $0x270] sm:$0xf]
        %v1951 = vld [vmem:[%s11 + $0x274] sm:$0xf]
        %v1952 = vld [vmem:[%s11 + $0x278] sm:$0xf]
        %v1953 = vld [vmem:[%s11 + $0x27c] sm:$0xf]
        %v1954 = vld [vmem:[%s11 + $0x280] sm:$0xf]
        %v1955 = vld [vmem:[%s11 + $0x284] sm:$0xf]
        %v1956 = vld [vmem:[%s11 + $0x288] sm:$0xf]
        %v1957 = vld [vmem:[%s11 + $0x28c] sm:$0xf]
        %v1958 = vld [vmem:[%s11 + $0x290] sm:$0xf]
        %v1959 = vld [vmem:[%s11 + $0x294] sm:$0xf]
        %v1960 = vld [vmem:[%s11 + $0x298] sm:$0xf]
        %v1961 = vld [vmem:[%s11 + $0x29c] sm:$0xf]
        %v1962 = vld [vmem:[%s11 + $0x2a0] sm:$0xf]
        %v1963 = vld [vmem:[%s11 + $0x2a4] sm:$0xf]
        %v1964 = vld [vmem:[%s11 + $0x2a8] sm:$0xf]
        %v1965 = vld [vmem:[%s11 + $0x2ac] sm:$0xf]
        %v1966 = vld [vmem:[%s11 + $0x2b0] sm:$0xf]
        %v1967 = vld [vmem:[%s11 + $0x2b4] sm:$0xf]
        %v1968 = vld [vmem:[%s11 + $0x2b8] sm:$0xf]
        %v1969 = vld [vmem:[%s11 + $0x2bc] sm:$0xf]
        %v1970 = vld [vmem:[%s11 + $0x2c0] sm:$0xf]
        %v1971 = vld [vmem:[%s11 + $0x2c4] sm:$0xf]
        %v1972 = vld [vmem:[%s11 + $0x2c8] sm:$0xf]
        %v1973 = vld [vmem:[%s11 + $0x2cc] sm:$0xf]
        %v1974 = vld [vmem:[%s11 + $0x2d0] sm:$0xf]
        %v1975 = vld [vmem:[%s11 + $0x2d4] sm:$0xf]
        %v1976 = vld [vmem:[%s11 + $0x2d8] sm:$0xf]
        %v1977 = vld [vmem:[%s11 + $0x2dc] sm:$0xf]
        %v1978 = vld [vmem:[%s11 + $0x2e0] sm:$0xf]
        %v1979 = vld [vmem:[%s11 + $0x2e4] sm:$0xf]
        %v1980 = vld [vmem:[%s11 + $0x2e8] sm:$0xf]
        %v1981 = vld [vmem:[%s11 + $0x2ec] sm:$0xf]
        %v1982 = vld [vmem:[%s11 + $0x2f0] sm:$0xf]
        %v1983 = vld [vmem:[%s11 + $0x2f4] sm:$0xf]
        %v1984 = vld [vmem:[%s11 + $0x2f8] sm:$0xf]
        %v1985 = vld [vmem:[%s11 + $0x2fc] sm:$0xf]
        %v1986 = vld [vmem:[%s11 + $0x300] sm:$0xf]
        %v1987 = vld [vmem:[%s11 + $0x304] sm:$0xf]
        %v1988 = vld [vmem:[%s11 + $0x308] sm:$0xf]
        %v1989 = vld [vmem:[%s11 + $0x30c] sm:$0xf]
        %v1990 = vld [vmem:[%s11 + $0x310] sm:$0xf]
        %v1991 = vld [vmem:[%s11 + $0x314] sm:$0xf]
        %v1992 = vld [vmem:[%s11 + $0x318] sm:$0xf]
        %v1993 = vld [vmem:[%s11 + $0x31c] sm:$0xf]
        %v1994 = vld [vmem:[%s11 + $0x320] sm:$0xf]
        %v1995 = vld [vmem:[%s11 + $0x324] sm:$0xf]
        %v1996 = vld [vmem:[%s11 + $0x328] sm:$0xf]
        %v1997 = vld [vmem:[%s11 + $0x32c] sm:$0xf]
        %v1998 = vld [vmem:[%s11 + $0x330] sm:$0xf]
        %v1999 = vld [vmem:[%s11 + $0x334] sm:$0xf]
        %v2000 = vld [vmem:[%s11 + $0x338] sm:$0xf]
        %v2001 = vld [vmem:[%s11 + $0x33c] sm:$0xf]
        %v2002 = vld [vmem:[%s11 + $0x340] sm:$0xf]
        %v2003 = vld [vmem:[%s11 + $0x344] sm:$0xf]
        %v2004 = vld [vmem:[%s11 + $0x348] sm:$0xf]
        %v2005 = vld [vmem:[%s11 + $0x34c] sm:$0xf]
        %v2006 = vld [vmem:[%s11 + $0x350] sm:$0xf]
        %v2007 = vld [vmem:[%s11 + $0x354] sm:$0xf]
        %v2008 = vld [vmem:[%s11 + $0x358] sm:$0xf]
        %v2009 = vld [vmem:[%s11 + $0x35c] sm:$0xf]
        %v2010 = vld [vmem:[%s11 + $0x360] sm:$0xf]
        %v2011 = vld [vmem:[%s11 + $0x364] sm:$0xf]
        %v2012 = vld [vmem:[%s11 + $0x368] sm:$0xf]
        %v2013 = vld [vmem:[%s11 + $0x36c] sm:$0xf]
        %v2014 = vld [vmem:[%s11 + $0x370] sm:$0xf]
        %v2015 = vld [vmem:[%s11 + $0x374] sm:$0xf]
        %v2016 = vld [vmem:[%s11 + $0x378] sm:$0xf]
        %v2017 = vld [vmem:[%s11 + $0x37c] sm:$0xf]
        %v2018 = vld [vmem:[%s11 + $0x380] sm:$0xf]
        %v2019 = vld [vmem:[%s11 + $0x384] sm:$0xf]
        %v2020 = vld [vmem:[%s11 + $0x388] sm:$0xf]
        %v2021 = vld [vmem:[%s11 + $0x38c] sm:$0xf]
        %v2022 = vld [vmem:[%s11 + $0x390] sm:$0xf]
        %v2023 = vld [vmem:[%s11 + $0x394] sm:$0xf]
        %v2024 = vld [vmem:[%s11 + $0x398] sm:$0xf]
        %v2025 = vld [vmem:[%s11 + $0x39c] sm:$0xf]
        %v2026 = vld [vmem:[%s11 + $0x3a0] sm:$0xf]
        %v2027 = vld [vmem:[%s11 + $0x3a4] sm:$0xf]
        %v2028 = vld [vmem:[%s11 + $0x3a8] sm:$0xf]
        %v2029 = vld [vmem:[%s11 + $0x3ac] sm:$0xf]
        %v2030 = vld [vmem:[%s11 + $0x3b0] sm:$0xf]
        %v2031 = vld [vmem:[%s11 + $0x3b4] sm:$0xf]
        %v2032 = vld [vmem:[%s11 + $0x3b8] sm:$0xf]
        %v2033 = vld [vmem:[%s11 + $0x3bc] sm:$0xf]
        %v2034 = vld [vmem:[%s11 + $0x3c0] sm:$0xf]
        %v2035 = vld [vmem:[%s11 + $0x3c4] sm:$0xf]
        %v2036 = vld [vmem:[%s11 + $0x3c8] sm:$0xf]
        %v2037 = vld [vmem:[%s11 + $0x3cc] sm:$0xf]
        %v2038 = vld [vmem:[%s11 + $0x3d0] sm:$0xf]
        %v2039 = vld [vmem:[%s11 + $0x3d4] sm:$0xf]
        %v2040 = vld [vmem:[%s11 + $0x3d8] sm:$0xf]
        %v2041 = vld [vmem:[%s11 + $0x3dc] sm:$0xf]
        %v2042 = vld [vmem:[%s11 + $0x3e0] sm:$0xf]
        %v2043 = vld [vmem:[%s11 + $0x3e4] sm:$0xf]
        %v2044 = vld [vmem:[%s11 + $0x3e8] sm:$0xf]
        %v2045 = vld [vmem:[%s11 + $0x3ec] sm:$0xf]
        %v2046 = vld [vmem:[%s11 + $0x3f0] sm:$0xf]
        %v2047 = vld [vmem:[%s11 + $0x3f4] sm:$0xf]
        %v2048 = vld [vmem:[%s11 + $0x3f8] sm:$0xf]
        %v2049 = vld [vmem:[%s11 + $0x3fc] sm:$0xf]
        %v2050 = vpack.c.bf16 %v1778, %v1778
        %v2051 = vpack.c.bf16 %v1779, %v1779
        %v2052 = vpack.c.bf16 %v1780, %v1780
        %v2053 = vpack.c.bf16 %v1781, %v1781
        %v2054 = vpack.c.bf16 %v1782, %v1782
        %v2055 = vpack.c.bf16 %v1783, %v1783
        %v2056 = vpack.c.bf16 %v1784, %v1784
        %v2057 = vpack.c.bf16 %v1785, %v1785
        %v2058 = vpack.c.bf16 %v1786, %v1786
        %v2059 = vpack.c.bf16 %v1787, %v1787
        %v2060 = vpack.c.bf16 %v1788, %v1788
        %v2061 = vpack.c.bf16 %v1789, %v1789
        %v2062 = vpack.c.bf16 %v1790, %v1790
        %v2063 = vpack.c.bf16 %v1791, %v1791
        %v2064 = vpack.c.bf16 %v1792, %v1792
        %v2065 = vpack.c.bf16 %v1793, %v1793
        %v2066 = vld [vmem:[%s12] sm:$0x1]
        %v2068 = vlaneseq
        %v2069 = vshrl.u32 %v2068, 7
        %v2070 = vsub.s32 0, %v2069
        %v2071 = vrot.slane %v2066, %v2070
        %v2329 = vunpack.c.l.b16 %v1794
        %v2330 = vunpack.c.l.b16 %v1795
        %v2331 = vunpack.c.l.b16 %v1796
        %v2332 = vunpack.c.l.b16 %v1797
        %v2333 = vunpack.c.l.b16 %v1798
        %v2334 = vunpack.c.l.b16 %v1799
        %v2335 = vunpack.c.l.b16 %v1800
        %v2336 = vunpack.c.l.b16 %v1801
        %v2337 = vunpack.c.l.b16 %v1802
        %v2338 = vunpack.c.l.b16 %v1803
        %v2339 = vunpack.c.l.b16 %v1804
        %v2340 = vunpack.c.l.b16 %v1805
        %v2341 = vunpack.c.l.b16 %v1806
        %v2342 = vunpack.c.l.b16 %v1807
        %v2343 = vunpack.c.l.b16 %v1808
        %v2344 = vunpack.c.l.b16 %v1809
        %v2345 = vunpack.c.l.b16 %v1810
        %v2346 = vunpack.c.l.b16 %v1811
        %v2347 = vunpack.c.l.b16 %v1812
        %v2348 = vunpack.c.l.b16 %v1813
        %v2349 = vunpack.c.l.b16 %v1814
        %v2350 = vunpack.c.l.b16 %v1815
        %v2351 = vunpack.c.l.b16 %v1816
        %v2352 = vunpack.c.l.b16 %v1817
        %v2353 = vunpack.c.l.b16 %v1818
        %v2354 = vunpack.c.l.b16 %v1819
        %v2355 = vunpack.c.l.b16 %v1820
        %v2356 = vunpack.c.l.b16 %v1821
        %v2357 = vunpack.c.l.b16 %v1822
        %v2358 = vunpack.c.l.b16 %v1823
        %v2359 = vunpack.c.l.b16 %v1824
        %v2360 = vunpack.c.l.b16 %v1825
        %v2361 = vunpack.c.l.b16 %v1826
        %v2362 = vunpack.c.l.b16 %v1827
        %v2363 = vunpack.c.l.b16 %v1828
        %v2364 = vunpack.c.l.b16 %v1829
        %v2365 = vunpack.c.l.b16 %v1830
        %v2366 = vunpack.c.l.b16 %v1831
        %v2367 = vunpack.c.l.b16 %v1832
        %v2368 = vunpack.c.l.b16 %v1833
        %v2369 = vunpack.c.l.b16 %v1834
        %v2370 = vunpack.c.l.b16 %v1835
        %v2371 = vunpack.c.l.b16 %v1836
        %v2372 = vunpack.c.l.b16 %v1837
        %v2373 = vunpack.c.l.b16 %v1838
        %v2374 = vunpack.c.l.b16 %v1839
        %v2375 = vunpack.c.l.b16 %v1840
        %v2376 = vunpack.c.l.b16 %v1841
        %v2377 = vunpack.c.l.b16 %v1842
        %v2378 = vunpack.c.l.b16 %v1843
        %v2379 = vunpack.c.l.b16 %v1844
        %v2380 = vunpack.c.l.b16 %v1845
        %v2381 = vunpack.c.l.b16 %v1846
        %v2382 = vunpack.c.l.b16 %v1847
        %v2383 = vunpack.c.l.b16 %v1848
        %v2384 = vunpack.c.l.b16 %v1849
        %v2385 = vunpack.c.l.b16 %v1850
        %v2386 = vunpack.c.l.b16 %v1851
        %v2387 = vunpack.c.l.b16 %v1852
        %v2388 = vunpack.c.l.b16 %v1853
        %v2389 = vunpack.c.l.b16 %v1854
        %v2390 = vunpack.c.l.b16 %v1855
        %v2391 = vunpack.c.l.b16 %v1856
        %v2392 = vunpack.c.l.b16 %v1857
        %v2393 = vunpack.c.l.b16 %v1858
        %v2394 = vunpack.c.l.b16 %v1859
        %v2395 = vunpack.c.l.b16 %v1860
        %v2396 = vunpack.c.l.b16 %v1861
        %v2397 = vunpack.c.l.b16 %v1862
        %v2398 = vunpack.c.l.b16 %v1863
        %v2399 = vunpack.c.l.b16 %v1864
        %v2400 = vunpack.c.l.b16 %v1865
        %v2401 = vunpack.c.l.b16 %v1866
        %v2402 = vunpack.c.l.b16 %v1867
        %v2403 = vunpack.c.l.b16 %v1868
        %v2404 = vunpack.c.l.b16 %v1869
        %v2405 = vunpack.c.l.b16 %v1870
        %v2406 = vunpack.c.l.b16 %v1871
        %v2407 = vunpack.c.l.b16 %v1872
        %v2408 = vunpack.c.l.b16 %v1873
        %v2409 = vunpack.c.l.b16 %v1874
        %v2410 = vunpack.c.l.b16 %v1875
        %v2411 = vunpack.c.l.b16 %v1876
        %v2412 = vunpack.c.l.b16 %v1877
        %v2413 = vunpack.c.l.b16 %v1878
        %v2414 = vunpack.c.l.b16 %v1879
        %v2415 = vunpack.c.l.b16 %v1880
        %v2416 = vunpack.c.l.b16 %v1881
        %v2417 = vunpack.c.l.b16 %v1882
        %v2418 = vunpack.c.l.b16 %v1883
        %v2419 = vunpack.c.l.b16 %v1884
        %v2420 = vunpack.c.l.b16 %v1885
        %v2421 = vunpack.c.l.b16 %v1886
        %v2422 = vunpack.c.l.b16 %v1887
        %v2423 = vunpack.c.l.b16 %v1888
        %v2424 = vunpack.c.l.b16 %v1889
        %v2425 = vunpack.c.l.b16 %v1890
        %v2426 = vunpack.c.l.b16 %v1891
        %v2427 = vunpack.c.l.b16 %v1892
        %v2428 = vunpack.c.l.b16 %v1893
        %v2429 = vunpack.c.l.b16 %v1894
        %v2430 = vunpack.c.l.b16 %v1895
        %v2431 = vunpack.c.l.b16 %v1896
        %v2432 = vunpack.c.l.b16 %v1897
        %v2433 = vunpack.c.l.b16 %v1898
        %v2434 = vunpack.c.l.b16 %v1899
        %v2435 = vunpack.c.l.b16 %v1900
        %v2436 = vunpack.c.l.b16 %v1901
        %v2437 = vunpack.c.l.b16 %v1902
        %v2438 = vunpack.c.l.b16 %v1903
        %v2439 = vunpack.c.l.b16 %v1904
        %v2440 = vunpack.c.l.b16 %v1905
        %v2441 = vunpack.c.l.b16 %v1906
        %v2442 = vunpack.c.l.b16 %v1907
        %v2443 = vunpack.c.l.b16 %v1908
        %v2444 = vunpack.c.l.b16 %v1909
        %v2445 = vunpack.c.l.b16 %v1910
        %v2446 = vunpack.c.l.b16 %v1911
        %v2447 = vunpack.c.l.b16 %v1912
        %v2448 = vunpack.c.l.b16 %v1913
        %v2449 = vunpack.c.l.b16 %v1914
        %v2450 = vunpack.c.l.b16 %v1915
        %v2451 = vunpack.c.l.b16 %v1916
        %v2452 = vunpack.c.l.b16 %v1917
        %v2453 = vunpack.c.l.b16 %v1918
        %v2454 = vunpack.c.l.b16 %v1919
        %v2455 = vunpack.c.l.b16 %v1920
        %v2456 = vunpack.c.l.b16 %v1921
        %v2457 = vunpack.c.l.b16 %v1922
        %v2458 = vunpack.c.l.b16 %v1923
        %v2459 = vunpack.c.l.b16 %v1924
        %v2460 = vunpack.c.l.b16 %v1925
        %v2461 = vunpack.c.l.b16 %v1926
        %v2462 = vunpack.c.l.b16 %v1927
        %v2463 = vunpack.c.l.b16 %v1928
        %v2464 = vunpack.c.l.b16 %v1929
        %v2465 = vunpack.c.l.b16 %v1930
        %v2466 = vunpack.c.l.b16 %v1931
        %v2467 = vunpack.c.l.b16 %v1932
        %v2468 = vunpack.c.l.b16 %v1933
        %v2469 = vunpack.c.l.b16 %v1934
        %v2470 = vunpack.c.l.b16 %v1935
        %v2471 = vunpack.c.l.b16 %v1936
        %v2472 = vunpack.c.l.b16 %v1937
        %v2473 = vunpack.c.l.b16 %v1938
        %v2474 = vunpack.c.l.b16 %v1939
        %v2475 = vunpack.c.l.b16 %v1940
        %v2476 = vunpack.c.l.b16 %v1941
        %v2477 = vunpack.c.l.b16 %v1942
        %v2478 = vunpack.c.l.b16 %v1943
        %v2479 = vunpack.c.l.b16 %v1944
        %v2480 = vunpack.c.l.b16 %v1945
        %v2481 = vunpack.c.l.b16 %v1946
        %v2482 = vunpack.c.l.b16 %v1947
        %v2483 = vunpack.c.l.b16 %v1948
        %v2484 = vunpack.c.l.b16 %v1949
        %v2485 = vunpack.c.l.b16 %v1950
        %v2486 = vunpack.c.l.b16 %v1951
        %v2487 = vunpack.c.l.b16 %v1952
        %v2488 = vunpack.c.l.b16 %v1953
        %v2489 = vunpack.c.l.b16 %v1954
        %v2490 = vunpack.c.l.b16 %v1955
        %v2491 = vunpack.c.l.b16 %v1956
        %v2492 = vunpack.c.l.b16 %v1957
        %v2493 = vunpack.c.l.b16 %v1958
        %v2494 = vunpack.c.l.b16 %v1959
        %v2495 = vunpack.c.l.b16 %v1960
        %v2496 = vunpack.c.l.b16 %v1961
        %v2497 = vunpack.c.l.b16 %v1962
        %v2498 = vunpack.c.l.b16 %v1963
        %v2499 = vunpack.c.l.b16 %v1964
        %v2500 = vunpack.c.l.b16 %v1965
        %v2501 = vunpack.c.l.b16 %v1966
        %v2502 = vunpack.c.l.b16 %v1967
        %v2503 = vunpack.c.l.b16 %v1968
        %v2504 = vunpack.c.l.b16 %v1969
        %v2505 = vunpack.c.l.b16 %v1970
        %v2506 = vunpack.c.l.b16 %v1971
        %v2507 = vunpack.c.l.b16 %v1972
        %v2508 = vunpack.c.l.b16 %v1973
        %v2509 = vunpack.c.l.b16 %v1974
        %v2510 = vunpack.c.l.b16 %v1975
        %v2511 = vunpack.c.l.b16 %v1976
        %v2512 = vunpack.c.l.b16 %v1977
        %v2513 = vunpack.c.l.b16 %v1978
        %v2514 = vunpack.c.l.b16 %v1979
        %v2515 = vunpack.c.l.b16 %v1980
        %v2516 = vunpack.c.l.b16 %v1981
        %v2517 = vunpack.c.l.b16 %v1982
        %v2518 = vunpack.c.l.b16 %v1983
        %v2519 = vunpack.c.l.b16 %v1984
        %v2520 = vunpack.c.l.b16 %v1985
        %v2521 = vunpack.c.l.b16 %v1986
        %v2522 = vunpack.c.l.b16 %v1987
        %v2523 = vunpack.c.l.b16 %v1988
        %v2524 = vunpack.c.l.b16 %v1989
        %v2525 = vunpack.c.l.b16 %v1990
        %v2526 = vunpack.c.l.b16 %v1991
        %v2527 = vunpack.c.l.b16 %v1992
        %v2528 = vunpack.c.l.b16 %v1993
        %v2529 = vunpack.c.l.b16 %v1994
        %v2530 = vunpack.c.l.b16 %v1995
        %v2531 = vunpack.c.l.b16 %v1996
        %v2532 = vunpack.c.l.b16 %v1997
        %v2533 = vunpack.c.l.b16 %v1998
        %v2534 = vunpack.c.l.b16 %v1999
        %v2535 = vunpack.c.l.b16 %v2000
        %v2536 = vunpack.c.l.b16 %v2001
        %v2537 = vunpack.c.l.b16 %v2002
        %v2538 = vunpack.c.l.b16 %v2003
        %v2539 = vunpack.c.l.b16 %v2004
        %v2540 = vunpack.c.l.b16 %v2005
        %v2541 = vunpack.c.l.b16 %v2006
        %v2542 = vunpack.c.l.b16 %v2007
        %v2543 = vunpack.c.l.b16 %v2008
        %v2544 = vunpack.c.l.b16 %v2009
        %v2545 = vunpack.c.l.b16 %v2010
        %v2546 = vunpack.c.l.b16 %v2011
        %v2547 = vunpack.c.l.b16 %v2012
        %v2548 = vunpack.c.l.b16 %v2013
        %v2549 = vunpack.c.l.b16 %v2014
        %v2550 = vunpack.c.l.b16 %v2015
        %v2551 = vunpack.c.l.b16 %v2016
        %v2552 = vunpack.c.l.b16 %v2017
        %v2553 = vunpack.c.l.b16 %v2018
        %v2554 = vunpack.c.l.b16 %v2019
        %v2555 = vunpack.c.l.b16 %v2020
        %v2556 = vunpack.c.l.b16 %v2021
        %v2557 = vunpack.c.l.b16 %v2022
        %v2558 = vunpack.c.l.b16 %v2023
        %v2559 = vunpack.c.l.b16 %v2024
        %v2560 = vunpack.c.l.b16 %v2025
        %v2561 = vunpack.c.l.b16 %v2026
        %v2562 = vunpack.c.l.b16 %v2027
        %v2563 = vunpack.c.l.b16 %v2028
        %v2564 = vunpack.c.l.b16 %v2029
        %v2565 = vunpack.c.l.b16 %v2030
        %v2566 = vunpack.c.l.b16 %v2031
        %v2567 = vunpack.c.l.b16 %v2032
        %v2568 = vunpack.c.l.b16 %v2033
        %v2569 = vunpack.c.l.b16 %v2034
        %v2570 = vunpack.c.l.b16 %v2035
        %v2571 = vunpack.c.l.b16 %v2036
        %v2572 = vunpack.c.l.b16 %v2037
        %v2573 = vunpack.c.l.b16 %v2038
        %v2574 = vunpack.c.l.b16 %v2039
        %v2575 = vunpack.c.l.b16 %v2040
        %v2576 = vunpack.c.l.b16 %v2041
        %v2577 = vunpack.c.l.b16 %v2042
        %v2578 = vunpack.c.l.b16 %v2043
        %v2579 = vunpack.c.l.b16 %v2044
        %v2580 = vunpack.c.l.b16 %v2045
        %v2581 = vunpack.c.l.b16 %v2046
        %v2582 = vunpack.c.l.b16 %v2047
        %v2583 = vunpack.c.l.b16 %v2048
        %v2584 = vunpack.c.l.b16 %v2049
        %v2585 = vpack.c.b16 %v2330, %v2329
        %v2586 = vpack.c.b16 %v2332, %v2331
        %v2587 = vpack.c.b16 %v2334, %v2333
        %v2588 = vpack.c.b16 %v2336, %v2335
        %v2589 = vpack.c.b16 %v2338, %v2337
        %v2590 = vpack.c.b16 %v2340, %v2339
        %v2591 = vpack.c.b16 %v2342, %v2341
        %v2592 = vpack.c.b16 %v2344, %v2343
        %v2593 = vpack.c.b16 %v2346, %v2345
        %v2594 = vpack.c.b16 %v2348, %v2347
        %v2595 = vpack.c.b16 %v2350, %v2349
        %v2596 = vpack.c.b16 %v2352, %v2351
        %v2597 = vpack.c.b16 %v2354, %v2353
        %v2598 = vpack.c.b16 %v2356, %v2355
        %v2599 = vpack.c.b16 %v2358, %v2357
        %v2600 = vpack.c.b16 %v2360, %v2359
        %v2601 = vpack.c.b16 %v2362, %v2361
        %v2602 = vpack.c.b16 %v2364, %v2363
        %v2603 = vpack.c.b16 %v2366, %v2365
        %v2604 = vpack.c.b16 %v2368, %v2367
        %v2605 = vpack.c.b16 %v2370, %v2369
        %v2606 = vpack.c.b16 %v2372, %v2371
        %v2607 = vpack.c.b16 %v2374, %v2373
        %v2608 = vpack.c.b16 %v2376, %v2375
        %v2609 = vpack.c.b16 %v2378, %v2377
        %v2610 = vpack.c.b16 %v2380, %v2379
        %v2611 = vpack.c.b16 %v2382, %v2381
        %v2612 = vpack.c.b16 %v2384, %v2383
        %v2613 = vpack.c.b16 %v2386, %v2385
        %v2614 = vpack.c.b16 %v2388, %v2387
        %v2615 = vpack.c.b16 %v2390, %v2389
        %v2616 = vpack.c.b16 %v2392, %v2391
        %v2617 = vpack.c.b16 %v2394, %v2393
        %v2618 = vpack.c.b16 %v2396, %v2395
        %v2619 = vpack.c.b16 %v2398, %v2397
        %v2620 = vpack.c.b16 %v2400, %v2399
        %v2621 = vpack.c.b16 %v2402, %v2401
        %v2622 = vpack.c.b16 %v2404, %v2403
        %v2623 = vpack.c.b16 %v2406, %v2405
        %v2624 = vpack.c.b16 %v2408, %v2407
        %v2625 = vpack.c.b16 %v2410, %v2409
        %v2626 = vpack.c.b16 %v2412, %v2411
        %v2627 = vpack.c.b16 %v2414, %v2413
        %v2628 = vpack.c.b16 %v2416, %v2415
        %v2629 = vpack.c.b16 %v2418, %v2417
        %v2630 = vpack.c.b16 %v2420, %v2419
        %v2631 = vpack.c.b16 %v2422, %v2421
        %v2632 = vpack.c.b16 %v2424, %v2423
        %v2633 = vpack.c.b16 %v2426, %v2425
        %v2634 = vpack.c.b16 %v2428, %v2427
        %v2635 = vpack.c.b16 %v2430, %v2429
        %v2636 = vpack.c.b16 %v2432, %v2431
        %v2637 = vpack.c.b16 %v2434, %v2433
        %v2638 = vpack.c.b16 %v2436, %v2435
        %v2639 = vpack.c.b16 %v2438, %v2437
        %v2640 = vpack.c.b16 %v2440, %v2439
        %v2641 = vpack.c.b16 %v2442, %v2441
        %v2642 = vpack.c.b16 %v2444, %v2443
        %v2643 = vpack.c.b16 %v2446, %v2445
        %v2644 = vpack.c.b16 %v2448, %v2447
        %v2645 = vpack.c.b16 %v2450, %v2449
        %v2646 = vpack.c.b16 %v2452, %v2451
        %v2647 = vpack.c.b16 %v2454, %v2453
        %v2648 = vpack.c.b16 %v2456, %v2455
        %v2649 = vpack.c.b16 %v2458, %v2457
        %v2650 = vpack.c.b16 %v2460, %v2459
        %v2651 = vpack.c.b16 %v2462, %v2461
        %v2652 = vpack.c.b16 %v2464, %v2463
        %v2653 = vpack.c.b16 %v2466, %v2465
        %v2654 = vpack.c.b16 %v2468, %v2467
        %v2655 = vpack.c.b16 %v2470, %v2469
        %v2656 = vpack.c.b16 %v2472, %v2471
        %v2657 = vpack.c.b16 %v2474, %v2473
        %v2658 = vpack.c.b16 %v2476, %v2475
        %v2659 = vpack.c.b16 %v2478, %v2477
        %v2660 = vpack.c.b16 %v2480, %v2479
        %v2661 = vpack.c.b16 %v2482, %v2481
        %v2662 = vpack.c.b16 %v2484, %v2483
        %v2663 = vpack.c.b16 %v2486, %v2485
        %v2664 = vpack.c.b16 %v2488, %v2487
        %v2665 = vpack.c.b16 %v2490, %v2489
        %v2666 = vpack.c.b16 %v2492, %v2491
        %v2667 = vpack.c.b16 %v2494, %v2493
        %v2668 = vpack.c.b16 %v2496, %v2495
        %v2669 = vpack.c.b16 %v2498, %v2497
        %v2670 = vpack.c.b16 %v2500, %v2499
        %v2671 = vpack.c.b16 %v2502, %v2501
        %v2672 = vpack.c.b16 %v2504, %v2503
        %v2673 = vpack.c.b16 %v2506, %v2505
        %v2674 = vpack.c.b16 %v2508, %v2507
        %v2675 = vpack.c.b16 %v2510, %v2509
        %v2676 = vpack.c.b16 %v2512, %v2511
        %v2677 = vpack.c.b16 %v2514, %v2513
        %v2678 = vpack.c.b16 %v2516, %v2515
        %v2679 = vpack.c.b16 %v2518, %v2517
        %v2680 = vpack.c.b16 %v2520, %v2519
        %v2681 = vpack.c.b16 %v2522, %v2521
        %v2682 = vpack.c.b16 %v2524, %v2523
        %v2683 = vpack.c.b16 %v2526, %v2525
        %v2684 = vpack.c.b16 %v2528, %v2527
        %v2685 = vpack.c.b16 %v2530, %v2529
        %v2686 = vpack.c.b16 %v2532, %v2531
        %v2687 = vpack.c.b16 %v2534, %v2533
        %v2688 = vpack.c.b16 %v2536, %v2535
        %v2689 = vpack.c.b16 %v2538, %v2537
        %v2690 = vpack.c.b16 %v2540, %v2539
        %v2691 = vpack.c.b16 %v2542, %v2541
        %v2692 = vpack.c.b16 %v2544, %v2543
        %v2693 = vpack.c.b16 %v2546, %v2545
        %v2694 = vpack.c.b16 %v2548, %v2547
        %v2695 = vpack.c.b16 %v2550, %v2549
        %v2696 = vpack.c.b16 %v2552, %v2551
        %v2697 = vpack.c.b16 %v2554, %v2553
        %v2698 = vpack.c.b16 %v2556, %v2555
        %v2699 = vpack.c.b16 %v2558, %v2557
        %v2700 = vpack.c.b16 %v2560, %v2559
        %v2701 = vpack.c.b16 %v2562, %v2561
        %v2702 = vpack.c.b16 %v2564, %v2563
        %v2703 = vpack.c.b16 %v2566, %v2565
        %v2704 = vpack.c.b16 %v2568, %v2567
        %v2705 = vpack.c.b16 %v2570, %v2569
        %v2706 = vpack.c.b16 %v2572, %v2571
        %v2707 = vpack.c.b16 %v2574, %v2573
        %v2708 = vpack.c.b16 %v2576, %v2575
        %v2709 = vpack.c.b16 %v2578, %v2577
        %v2710 = vpack.c.b16 %v2580, %v2579
        %v2711 = vpack.c.b16 %v2582, %v2581
        %v2712 = vpack.c.b16 %v2584, %v2583
        %2841 = vmatprep.subr.bf16.mxu0 0
        %2842 = vmatpush1.bf16.msra.mxu0 %v2585
        %2843 = vmatprep.subr.bf16.mxu0 0
        %2844 = vmatpush1.bf16.msra.mxu0 %v2586
        %2845 = vmatprep.subr.bf16.mxu0 0
        %2846 = vmatpush1.bf16.msra.mxu0 %v2587
        %2847 = vmatprep.subr.bf16.mxu0 0
        %2848 = vmatpush1.bf16.msra.mxu0 %v2588
        %2849 = vmatprep.subr.bf16.mxu0 0
        %2850 = vmatpush1.bf16.msra.mxu0 %v2589
        %2851 = vmatprep.subr.bf16.mxu0 0
        %2852 = vmatpush1.bf16.msra.mxu0 %v2590
        %2853 = vmatprep.subr.bf16.mxu0 0
        %2854 = vmatpush1.bf16.msra.mxu0 %v2591
        %2855 = vmatprep.subr.bf16.mxu0 0
        %2856 = vmatpush1.bf16.msra.mxu0 %v2592
        %2857 = vmatprep.subr.bf16.mxu0 0
        %2858 = vmatpush1.bf16.msra.mxu0 %v2593
        %2859 = vmatprep.subr.bf16.mxu0 0
        %2860 = vmatpush1.bf16.msra.mxu0 %v2594
        %2861 = vmatprep.subr.bf16.mxu0 0
        %2862 = vmatpush1.bf16.msra.mxu0 %v2595
        %2863 = vmatprep.subr.bf16.mxu0 0
        %2864 = vmatpush1.bf16.msra.mxu0 %v2596
        %2865 = vmatprep.subr.bf16.mxu0 0
        %2866 = vmatpush1.bf16.msra.mxu0 %v2597
        %2867 = vmatprep.subr.bf16.mxu0 0
        %2868 = vmatpush1.bf16.msra.mxu0 %v2598
        %2869 = vmatprep.subr.bf16.mxu0 0
        %2870 = vmatpush1.bf16.msra.mxu0 %v2599
        %2871 = vmatprep.subr.bf16.mxu0 0
        %2872 = vmatpush1.bf16.msra.mxu0 %v2600
        %2873 = vmatprep.mubr.bf16.mxu0 %v2051
        %2874 = vmatmul.mubr.bf16.gmra.mrb[0].mxu0 %v2050
        %v2875 = vpop.f32.mrb[0].mxu0
        %v2876 = vadd.f32 %v2071, %v2875
        %v2877 = vpop.f32.mrb[0].mxu0
        %v2878 = vpop.f32.mrb[0].mxu0
        %v2879 = vpop.f32.mrb[0].mxu0
        %2880 = vdwg.mxu0
        %2881 = vmatprep.subr.bf16.mxu0 0
        %2882 = vmatpush1.bf16.msra.mxu0 %v2601
        %2883 = vmatprep.subr.bf16.mxu0 0
        %2884 = vmatpush1.bf16.msra.mxu0 %v2602
        %2885 = vmatprep.subr.bf16.mxu0 0
        %2886 = vmatpush1.bf16.msra.mxu0 %v2603
        %2887 = vmatprep.subr.bf16.mxu0 0
        %2888 = vmatpush1.bf16.msra.mxu0 %v2604
        %2889 = vmatprep.subr.bf16.mxu0 0
        %2890 = vmatpush1.bf16.msra.mxu0 %v2605
        %2891 = vmatprep.subr.bf16.mxu0 0
        %2892 = vmatpush1.bf16.msra.mxu0 %v2606
        %2893 = vmatprep.subr.bf16.mxu0 0
        %2894 = vmatpush1.bf16.msra.mxu0 %v2607
        %2895 = vmatprep.subr.bf16.mxu0 0
        %2896 = vmatpush1.bf16.msra.mxu0 %v2608
        %2897 = vmatprep.subr.bf16.mxu0 0
        %2898 = vmatpush1.bf16.msra.mxu0 %v2609
        %2899 = vmatprep.subr.bf16.mxu0 0
        %2900 = vmatpush1.bf16.msra.mxu0 %v2610
        %2901 = vmatprep.subr.bf16.mxu0 0
        %2902 = vmatpush1.bf16.msra.mxu0 %v2611
        %2903 = vmatprep.subr.bf16.mxu0 0
        %2904 = vmatpush1.bf16.msra.mxu0 %v2612
        %2905 = vmatprep.subr.bf16.mxu0 0
        %2906 = vmatpush1.bf16.msra.mxu0 %v2613
        %2907 = vmatprep.subr.bf16.mxu0 0
        %2908 = vmatpush1.bf16.msra.mxu0 %v2614
        %2909 = vmatprep.subr.bf16.mxu0 0
        %2910 = vmatpush1.bf16.msra.mxu0 %v2615
        %2911 = vmatprep.subr.bf16.mxu0 0
        %2912 = vmatpush1.bf16.msra.mxu0 %v2616
        %2913 = vmatprep.mubr.bf16.mxu0 %v2053
        %2914 = vmatmul.mubr.bf16.gmra.mrb[0].mxu0 %v2052
        %v2915 = vpop.f32.mrb[0].mxu0
        %v2916 = vadd.f32 %v2876, %v2915
        %v2917 = vpop.f32.mrb[0].mxu0
        %v2918 = vpop.f32.mrb[0].mxu0
        %v2919 = vpop.f32.mrb[0].mxu0
        %2920 = vdwg.mxu0
        %2921 = vmatprep.subr.bf16.mxu0 0
        %2922 = vmatpush1.bf16.msra.mxu0 %v2617
        %2923 = vmatprep.subr.bf16.mxu0 0
        %2924 = vmatpush1.bf16.msra.mxu0 %v2618
        %2925 = vmatprep.subr.bf16.mxu0 0
        %2926 = vmatpush1.bf16.msra.mxu0 %v2619
        %2927 = vmatprep.subr.bf16.mxu0 0
        %2928 = vmatpush1.bf16.msra.mxu0 %v2620
        %2929 = vmatprep.subr.bf16.mxu0 0
        %2930 = vmatpush1.bf16.msra.mxu0 %v2621
        %2931 = vmatprep.subr.bf16.mxu0 0
        %2932 = vmatpush1.bf16.msra.mxu0 %v2622
        %2933 = vmatprep.subr.bf16.mxu0 0
        %2934 = vmatpush1.bf16.msra.mxu0 %v2623
        %2935 = vmatprep.subr.bf16.mxu0 0
        %2936 = vmatpush1.bf16.msra.mxu0 %v2624
        %2937 = vmatprep.subr.bf16.mxu0 0
        %2938 = vmatpush1.bf16.msra.mxu0 %v2625
        %2939 = vmatprep.subr.bf16.mxu0 0
        %2940 = vmatpush1.bf16.msra.mxu0 %v2626
        %2941 = vmatprep.subr.bf16.mxu0 0
        %2942 = vmatpush1.bf16.msra.mxu0 %v2627
        %2943 = vmatprep.subr.bf16.mxu0 0
        %2944 = vmatpush1.bf16.msra.mxu0 %v2628
        %2945 = vmatprep.subr.bf16.mxu0 0
        %2946 = vmatpush1.bf16.msra.mxu0 %v2629
        %2947 = vmatprep.subr.bf16.mxu0 0
        %2948 = vmatpush1.bf16.msra.mxu0 %v2630
        %2949 = vmatprep.subr.bf16.mxu0 0
        %2950 = vmatpush1.bf16.msra.mxu0 %v2631
        %2951 = vmatprep.subr.bf16.mxu0 0
        %2952 = vmatpush1.bf16.msra.mxu0 %v2632
        %2953 = vmatprep.mubr.bf16.mxu0 %v2055
        %2954 = vmatmul.mubr.bf16.gmra.mrb[0].mxu0 %v2054
        %v2955 = vpop.f32.mrb[0].mxu0
        %v2956 = vadd.f32 %v2916, %v2955
        %v2957 = vpop.f32.mrb[0].mxu0
        %v2958 = vpop.f32.mrb[0].mxu0
        %v2959 = vpop.f32.mrb[0].mxu0
        %2960 = vdwg.mxu0
        %2961 = vmatprep.subr.bf16.mxu0 0
        %2962 = vmatpush1.bf16.msra.mxu0 %v2633
        %2963 = vmatprep.subr.bf16.mxu0 0
        %2964 = vmatpush1.bf16.msra.mxu0 %v2634
        %2965 = vmatprep.subr.bf16.mxu0 0
        %2966 = vmatpush1.bf16.msra.mxu0 %v2635
        %2967 = vmatprep.subr.bf16.mxu0 0
        %2968 = vmatpush1.bf16.msra.mxu0 %v2636
        %2969 = vmatprep.subr.bf16.mxu0 0
        %2970 = vmatpush1.bf16.msra.mxu0 %v2637
        %2971 = vmatprep.subr.bf16.mxu0 0
        %2972 = vmatpush1.bf16.msra.mxu0 %v2638
        %2973 = vmatprep.subr.bf16.mxu0 0
        %2974 = vmatpush1.bf16.msra.mxu0 %v2639
        %2975 = vmatprep.subr.bf16.mxu0 0
        %2976 = vmatpush1.bf16.msra.mxu0 %v2640
        %2977 = vmatprep.subr.bf16.mxu0 0
        %2978 = vmatpush1.bf16.msra.mxu0 %v2641
        %2979 = vmatprep.subr.bf16.mxu0 0
        %2980 = vmatpush1.bf16.msra.mxu0 %v2642
        %2981 = vmatprep.subr.bf16.mxu0 0
        %2982 = vmatpush1.bf16.msra.mxu0 %v2643
        %2983 = vmatprep.subr.bf16.mxu0 0
        %2984 = vmatpush1.bf16.msra.mxu0 %v2644
        %2985 = vmatprep.subr.bf16.mxu0 0
        %2986 = vmatpush1.bf16.msra.mxu0 %v2645
        %2987 = vmatprep.subr.bf16.mxu0 0
        %2988 = vmatpush1.bf16.msra.mxu0 %v2646
        %2989 = vmatprep.subr.bf16.mxu0 0
        %2990 = vmatpush1.bf16.msra.mxu0 %v2647
        %2991 = vmatprep.subr.bf16.mxu0 0
        %2992 = vmatpush1.bf16.msra.mxu0 %v2648
        %2993 = vmatprep.mubr.bf16.mxu0 %v2057
        %2994 = vmatmul.mubr.bf16.gmra.mrb[0].mxu0 %v2056
        %v2995 = vpop.f32.mrb[0].mxu0
        %v2996 = vadd.f32 %v2956, %v2995
        %v2997 = vpop.f32.mrb[0].mxu0
        %v2998 = vpop.f32.mrb[0].mxu0
        %v2999 = vpop.f32.mrb[0].mxu0
        %3000 = vdwg.mxu0
        %3001 = vmatprep.subr.bf16.mxu0 0
        %3002 = vmatpush1.bf16.msra.mxu0 %v2649
        %3003 = vmatprep.subr.bf16.mxu0 0
        %3004 = vmatpush1.bf16.msra.mxu0 %v2650
        %3005 = vmatprep.subr.bf16.mxu0 0
        %3006 = vmatpush1.bf16.msra.mxu0 %v2651
        %3007 = vmatprep.subr.bf16.mxu0 0
        %3008 = vmatpush1.bf16.msra.mxu0 %v2652
        %3009 = vmatprep.subr.bf16.mxu0 0
        %3010 = vmatpush1.bf16.msra.mxu0 %v2653
        %3011 = vmatprep.subr.bf16.mxu0 0
        %3012 = vmatpush1.bf16.msra.mxu0 %v2654
        %3013 = vmatprep.subr.bf16.mxu0 0
        %3014 = vmatpush1.bf16.msra.mxu0 %v2655
        %3015 = vmatprep.subr.bf16.mxu0 0
        %3016 = vmatpush1.bf16.msra.mxu0 %v2656
        %3017 = vmatprep.subr.bf16.mxu0 0
        %3018 = vmatpush1.bf16.msra.mxu0 %v2657
        %3019 = vmatprep.subr.bf16.mxu0 0
        %3020 = vmatpush1.bf16.msra.mxu0 %v2658
        %3021 = vmatprep.subr.bf16.mxu0 0
        %3022 = vmatpush1.bf16.msra.mxu0 %v2659
        %3023 = vmatprep.subr.bf16.mxu0 0
        %3024 = vmatpush1.bf16.msra.mxu0 %v2660
        %3025 = vmatprep.subr.bf16.mxu0 0
        %3026 = vmatpush1.bf16.msra.mxu0 %v2661
        %3027 = vmatprep.subr.bf16.mxu0 0
        %3028 = vmatpush1.bf16.msra.mxu0 %v2662
        %3029 = vmatprep.subr.bf16.mxu0 0
        %3030 = vmatpush1.bf16.msra.mxu0 %v2663
        %3031 = vmatprep.subr.bf16.mxu0 0
        %3032 = vmatpush1.bf16.msra.mxu0 %v2664
        %3033 = vmatprep.mubr.bf16.mxu0 %v2059
        %3034 = vmatmul.mubr.bf16.gmra.mrb[0].mxu0 %v2058
        %v3035 = vpop.f32.mrb[0].mxu0
        %v3036 = vadd.f32 %v2996, %v3035
        %v3037 = vpop.f32.mrb[0].mxu0
        %v3038 = vpop.f32.mrb[0].mxu0
        %v3039 = vpop.f32.mrb[0].mxu0
        %3040 = vdwg.mxu0
        %3041 = vmatprep.subr.bf16.mxu0 0
        %3042 = vmatpush1.bf16.msra.mxu0 %v2665
        %3043 = vmatprep.subr.bf16.mxu0 0
        %3044 = vmatpush1.bf16.msra.mxu0 %v2666
        %3045 = vmatprep.subr.bf16.mxu0 0
        %3046 = vmatpush1.bf16.msra.mxu0 %v2667
        %3047 = vmatprep.subr.bf16.mxu0 0
        %3048 = vmatpush1.bf16.msra.mxu0 %v2668
        %3049 = vmatprep.subr.bf16.mxu0 0
        %3050 = vmatpush1.bf16.msra.mxu0 %v2669
        %3051 = vmatprep.subr.bf16.mxu0 0
        %3052 = vmatpush1.bf16.msra.mxu0 %v2670
        %3053 = vmatprep.subr.bf16.mxu0 0
        %3054 = vmatpush1.bf16.msra.mxu0 %v2671
        %3055 = vmatprep.subr.bf16.mxu0 0
        %3056 = vmatpush1.bf16.msra.mxu0 %v2672
        %3057 = vmatprep.subr.bf16.mxu0 0
        %3058 = vmatpush1.bf16.msra.mxu0 %v2673
        %3059 = vmatprep.subr.bf16.mxu0 0
        %3060 = vmatpush1.bf16.msra.mxu0 %v2674
        %3061 = vmatprep.subr.bf16.mxu0 0
        %3062 = vmatpush1.bf16.msra.mxu0 %v2675
        %3063 = vmatprep.subr.bf16.mxu0 0
        %3064 = vmatpush1.bf16.msra.mxu0 %v2676
        %3065 = vmatprep.subr.bf16.mxu0 0
        %3066 = vmatpush1.bf16.msra.mxu0 %v2677
        %3067 = vmatprep.subr.bf16.mxu0 0
        %3068 = vmatpush1.bf16.msra.mxu0 %v2678
        %3069 = vmatprep.subr.bf16.mxu0 0
        %3070 = vmatpush1.bf16.msra.mxu0 %v2679
        %3071 = vmatprep.subr.bf16.mxu0 0
        %3072 = vmatpush1.bf16.msra.mxu0 %v2680
        %3073 = vmatprep.mubr.bf16.mxu0 %v2061
        %3074 = vmatmul.mubr.bf16.gmra.mrb[0].mxu0 %v2060
        %v3075 = vpop.f32.mrb[0].mxu0
        %v3076 = vadd.f32 %v3036, %v3075
        %v3077 = vpop.f32.mrb[0].mxu0
        %v3078 = vpop.f32.mrb[0].mxu0
        %v3079 = vpop.f32.mrb[0].mxu0
        %3080 = vdwg.mxu0
        %3081 = vmatprep.subr.bf16.mxu0 0
        %3082 = vmatpush1.bf16.msra.mxu0 %v2681
        %3083 = vmatprep.subr.bf16.mxu0 0
        %3084 = vmatpush1.bf16.msra.mxu0 %v2682
        %3085 = vmatprep.subr.bf16.mxu0 0
        %3086 = vmatpush1.bf16.msra.mxu0 %v2683
        %3087 = vmatprep.subr.bf16.mxu0 0
        %3088 = vmatpush1.bf16.msra.mxu0 %v2684
        %3089 = vmatprep.subr.bf16.mxu0 0
        %3090 = vmatpush1.bf16.msra.mxu0 %v2685
        %3091 = vmatprep.subr.bf16.mxu0 0
        %3092 = vmatpush1.bf16.msra.mxu0 %v2686
        %3093 = vmatprep.subr.bf16.mxu0 0
        %3094 = vmatpush1.bf16.msra.mxu0 %v2687
        %3095 = vmatprep.subr.bf16.mxu0 0
        %3096 = vmatpush1.bf16.msra.mxu0 %v2688
        %3097 = vmatprep.subr.bf16.mxu0 0
        %3098 = vmatpush1.bf16.msra.mxu0 %v2689
        %3099 = vmatprep.subr.bf16.mxu0 0
        %3100 = vmatpush1.bf16.msra.mxu0 %v2690
        %3101 = vmatprep.subr.bf16.mxu0 0
        %3102 = vmatpush1.bf16.msra.mxu0 %v2691
        %3103 = vmatprep.subr.bf16.mxu0 0
        %3104 = vmatpush1.bf16.msra.mxu0 %v2692
        %3105 = vmatprep.subr.bf16.mxu0 0
        %3106 = vmatpush1.bf16.msra.mxu0 %v2693
        %3107 = vmatprep.subr.bf16.mxu0 0
        %3108 = vmatpush1.bf16.msra.mxu0 %v2694
        %3109 = vmatprep.subr.bf16.mxu0 0
        %3110 = vmatpush1.bf16.msra.mxu0 %v2695
        %3111 = vmatprep.subr.bf16.mxu0 0
        %3112 = vmatpush1.bf16.msra.mxu0 %v2696
        %3113 = vmatprep.mubr.bf16.mxu0 %v2063
        %3114 = vmatmul.mubr.bf16.gmra.mrb[0].mxu0 %v2062
        %v3115 = vpop.f32.mrb[0].mxu0
        %v3116 = vadd.f32 %v3076, %v3115
        %v3117 = vpop.f32.mrb[0].mxu0
        %v3118 = vpop.f32.mrb[0].mxu0
        %v3119 = vpop.f32.mrb[0].mxu0
        %3120 = vdwg.mxu0
        %3121 = vmatprep.subr.bf16.mxu0 0
        %3122 = vmatpush1.bf16.msra.mxu0 %v2697
        %3123 = vmatprep.subr.bf16.mxu0 0
        %3124 = vmatpush1.bf16.msra.mxu0 %v2698
        %3125 = vmatprep.subr.bf16.mxu0 0
        %3126 = vmatpush1.bf16.msra.mxu0 %v2699
        %3127 = vmatprep.subr.bf16.mxu0 0
        %3128 = vmatpush1.bf16.msra.mxu0 %v2700
        %3129 = vmatprep.subr.bf16.mxu0 0
        %3130 = vmatpush1.bf16.msra.mxu0 %v2701
        %3131 = vmatprep.subr.bf16.mxu0 0
        %3132 = vmatpush1.bf16.msra.mxu0 %v2702
        %3133 = vmatprep.subr.bf16.mxu0 0
        %3134 = vmatpush1.bf16.msra.mxu0 %v2703
        %3135 = vmatprep.subr.bf16.mxu0 0
        %3136 = vmatpush1.bf16.msra.mxu0 %v2704
        %3137 = vmatprep.subr.bf16.mxu0 0
        %3138 = vmatpush1.bf16.msra.mxu0 %v2705
        %3139 = vmatprep.subr.bf16.mxu0 0
        %3140 = vmatpush1.bf16.msra.mxu0 %v2706
        %3141 = vmatprep.subr.bf16.mxu0 0
        %3142 = vmatpush1.bf16.msra.mxu0 %v2707
        %3143 = vmatprep.subr.bf16.mxu0 0
        %3144 = vmatpush1.bf16.msra.mxu0 %v2708
        %3145 = vmatprep.subr.bf16.mxu0 0
        %3146 = vmatpush1.bf16.msra.mxu0 %v2709
        %3147 = vmatprep.subr.bf16.mxu0 0
        %3148 = vmatpush1.bf16.msra.mxu0 %v2710
        %3149 = vmatprep.subr.bf16.mxu0 0
        %3150 = vmatpush1.bf16.msra.mxu0 %v2711
        %3151 = vmatprep.subr.bf16.mxu0 0
        %3152 = vmatpush1.bf16.msra.mxu0 %v2712
        %3153 = vmatprep.mubr.bf16.mxu0 %v2065
        %3154 = vmatmul.mubr.bf16.gmra.mrb[0].mxu0 %v2064
        %v3155 = vpop.f32.mrb[0].mxu0
        %v3156 = vadd.f32 %v3116, %v3155
        %v3157 = vpop.f32.mrb[0].mxu0
        %v3158 = vpop.f32.mrb[0].mxu0
        %v3159 = vpop.f32.mrb[0].mxu0
        %3160 = vdwg.mxu0
        %v3161 = vadd.f32 %v1169, %v3156
        %v3162 = vld [vmem:[%s7] sm:$0x1]
        %v3163 = vld [vmem:[%s8] sm:$0x1]
        %v3164 = vsel %vm569, %v3161, 0.0
        %3165 = vadd.xlane.f32.xlu0 %v3164
        %v3166 = vpop.xlane.xlu0 %3165
        %v3167 = vmul.f32 %v3166, %v1145
        %v3168 = vsub.f32 %v3161, %v3167
        %v3169 = vmul.f32 %v3168, %v3168
        %v3170 = vsel %vm569, %v3169, 0.0
        %3171 = vadd.xlane.f32.xlu0 %v3170
        %v3172 = vpop.xlane.xlu0 %3171
        %v3173 = vmul.f32 %v3172, %v1145
        %v3174 = vadd.f32 %v3173, 1e-05
        %v3175 = vrsqrt.pop %v3174
        %v3176 = vmul.f32 %v3168, %v3175
        %v3178 = vlaneseq
        %v3179 = vshrl.u32 %v3178, 7
        %v3180 = vsub.s32 0, %v3179
        %v3181 = vrot.slane %v3162, %v3180
        %v3183 = vmul.f32 %v3176, %v3181
        %v3185 = vlaneseq
        %v3186 = vshrl.u32 %v3185, 7
        %v3187 = vsub.s32 0, %v3186
        %v3188 = vrot.slane %v3163, %v3187
        %v3190 = vadd.f32 %v3183, %v3188
        %s3191 = scalar_lea.vmem %s1, 16
        %v3192 = vld [vmem:[%s3191] sm:$0xf]
        %v3193 = vld [vmem:[%s3191 + $0x4] sm:$0xf]
        %v3194 = vld [vmem:[%s3191 + $0x8] sm:$0xf]
        %v3195 = vld [vmem:[%s3191 + $0xc] sm:$0xf]
        %v3196 = vpack.c.bf16 %v3190, %v3190
        %s3197 = scalar_lea.vmem %s2, 1
        %v3198 = vld [vmem:[%s3197] sm:$0x1]
        %v3200 = vlaneseq
        %v3201 = vshrl.u32 %v3200, 7
        %v3202 = vsub.s32 0, %v3201
        %v3203 = vrot.slane %v3198, %v3202
        %v3209 = vunpack.c.l.b16 %v3192
        %v3210 = vunpack.c.l.b16 %v3193
        %v3211 = vunpack.c.l.b16 %v3194
        %v3212 = vunpack.c.l.b16 %v3195
        %v3213 = vpack.c.b16 %v3210, %v3209
        %v3214 = vpack.c.b16 %v3212, %v3211
        %v3218 = vsel %vm569, %v3196, 0
        %3220 = vmatprep.subr.bf16.mxu0 0
        %3221 = vmatpush1.bf16.msra.mxu0 %v3213
        %3222 = vmatprep.subr.bf16.mxu0 0
        %3223 = vmatpush1.bf16.msra.mxu0 %v3214
        %3224 = vmatprep.subr.bf16.mxu0 0
        %3225 = vmatpush1.bf16.msra.mxu0 0
        %3226 = vmatprep.subr.bf16.mxu0 0
        %3227 = vmatpush1.bf16.msra.mxu0 0
        %3228 = vmatprep.subr.bf16.mxu0 0
        %3229 = vmatpush1.bf16.msra.mxu0 0
        %3230 = vmatprep.subr.bf16.mxu0 0
        %3231 = vmatpush1.bf16.msra.mxu0 0
        %3232 = vmatprep.subr.bf16.mxu0 0
        %3233 = vmatpush1.bf16.msra.mxu0 0
        %3234 = vmatprep.subr.bf16.mxu0 0
        %3235 = vmatpush1.bf16.msra.mxu0 0
        %3236 = vmatprep.subr.bf16.mxu0 0
        %3237 = vmatpush1.bf16.msra.mxu0 0
        %3238 = vmatprep.subr.bf16.mxu0 0
        %3239 = vmatpush1.bf16.msra.mxu0 0
        %3240 = vmatprep.subr.bf16.mxu0 0
        %3241 = vmatpush1.bf16.msra.mxu0 0
        %3242 = vmatprep.subr.bf16.mxu0 0
        %3243 = vmatpush1.bf16.msra.mxu0 0
        %3244 = vmatprep.subr.bf16.mxu0 0
        %3245 = vmatpush1.bf16.msra.mxu0 0
        %3246 = vmatprep.subr.bf16.mxu0 0
        %3247 = vmatpush1.bf16.msra.mxu0 0
        %3248 = vmatprep.subr.bf16.mxu0 0
        %3249 = vmatpush1.bf16.msra.mxu0 0
        %3250 = vmatprep.subr.bf16.mxu0 0
        %3251 = vmatpush1.bf16.msra.mxu0 0
        %3252 = vmatprep.mubr.bf16.mxu0 0
        %3253 = vmatmul.mubr.bf16.gmra.mrb[0].mxu0 %v3218
        %v3254 = vpop.f32.mrb[0].mxu0
        %v3255 = vadd.f32 %v3203, %v3254
        %v3256 = vpop.f32.mrb[0].mxu0
        %v3257 = vpop.f32.mrb[0].mxu0
        %v3258 = vpop.f32.mrb[0].mxu0
        %3259 = vdwg.mxu0
        %v3260 = vpack.c.bf16 %v3255, %v3255
        %3262 = vrot.lane.b32.xlu0 %v3260, 96
        %v3263 = vpop.permute.xlu0 %3262
        %v3265 = vsel %vm617, %v3260, 0
        %v3268 = vsel %vm617, %v3263, 0
        %3270 = vmatprep.subr.bf16.mxu0 0
        %3271 = vmatpush1.bf16.xpose.msra.mxu0 %v3268
        %3272 = vmatprep.subr.bf16.mxu0 0
        %3273 = vmatpush1.bf16.xpose.msra.mxu0 0
        %3274 = vmatprep.subr.bf16.mxu0 0
        %3275 = vmatpush1.bf16.xpose.msra.mxu0 0
        %3276 = vmatprep.subr.bf16.mxu0 0
        %3277 = vmatpush1.bf16.xpose.msra.mxu0 0
        %3278 = vmatprep.subr.bf16.mxu0 0
        %3279 = vmatpush1.bf16.xpose.msra.mxu0 0
        %3280 = vmatprep.subr.bf16.mxu0 0
        %3281 = vmatpush1.bf16.xpose.msra.mxu0 0
        %3282 = vmatprep.subr.bf16.mxu0 0
        %3283 = vmatpush1.bf16.xpose.msra.mxu0 0
        %3284 = vmatprep.subr.bf16.mxu0 0
        %3285 = vmatpush1.bf16.xpose.msra.mxu0 0
        %3286 = vmatprep.subr.bf16.mxu0 0
        %3287 = vmatpush1.bf16.xpose.msra.mxu0 0
        %3288 = vmatprep.subr.bf16.mxu0 0
        %3289 = vmatpush1.bf16.xpose.msra.mxu0 0
        %3290 = vmatprep.subr.bf16.mxu0 0
        %3291 = vmatpush1.bf16.xpose.msra.mxu0 0
        %3292 = vmatprep.subr.bf16.mxu0 0
        %3293 = vmatpush1.bf16.xpose.msra.mxu0 0
        %3294 = vmatprep.subr.bf16.mxu0 0
        %3295 = vmatpush1.bf16.xpose.msra.mxu0 0
        %3296 = vmatprep.subr.bf16.mxu0 0
        %3297 = vmatpush1.bf16.xpose.msra.mxu0 0
        %3298 = vmatprep.subr.bf16.mxu0 0
        %3299 = vmatpush1.bf16.xpose.msra.mxu0 0
        %3300 = vmatprep.subr.bf16.mxu0 0
        %3301 = vmatpush1.bf16.xpose.msra.mxu0 0
        %3302 = vmatprep.mubr.bf16.mxu0 0
        %3303 = vmatmul.mubr.bf16.gmra.mrb[0].mxu0 %v3265
        %v3304 = vpop.f32.mrb[0].mxu0
        %v3305 = vadd.f32 0.0, %v3304
        %v3306 = vpop.f32.mrb[0].mxu0
        %v3307 = vpop.f32.mrb[0].mxu0
        %v3308 = vpop.f32.mrb[0].mxu0
        %3309 = vdwg.mxu0
        %v3310 = vsel %vm617, %v3305, -inf
        %3311 = vmax.xlane.f32.xlu0 %v3310
        %v3312 = vpop.xlane.xlu0 %3311
        %v3313 = vsub.f32 %v3305, %v3312
        %v3314 = vmul.f32 %v3313, 1.442695
        %v3315 = vpow.pop %v3314
        %v3316 = vsel %vm617, %v3315, 0.0
        %3317 = vadd.xlane.f32.xlu0 %v3316
        %v3318 = vpop.xlane.xlu0 %3317
        %v3319 = vrcp.pop %v3318
        %v3320 = vmul.f32 %v3315, %v3319
        %v3321 = vpack.c.bf16 %v3320, %v3320
        %3322 = vrot.lane.b32.xlu0 %v3260, 64
        %v3323 = vpop.permute.xlu0 %3322
        %v3325 = vsel %vm617, %v3321, 0
        %v3328 = vsel %vm681, %v3323, 0
        %3330 = vmatprep.subr.bf16.mxu0 0
        %3331 = vmatpush1.bf16.msra.mxu0 %v3328
        %3332 = vmatprep.subr.bf16.mxu0 0
        %3333 = vmatpush1.bf16.msra.mxu0 0
        %3334 = vmatprep.subr.bf16.mxu0 0
        %3335 = vmatpush1.bf16.msra.mxu0 0
        %3336 = vmatprep.subr.bf16.mxu0 0
        %3337 = vmatpush1.bf16.msra.mxu0 0
        %3338 = vmatprep.subr.bf16.mxu0 0
        %3339 = vmatpush1.bf16.msra.mxu0 0
        %3340 = vmatprep.subr.bf16.mxu0 0
        %3341 = vmatpush1.bf16.msra.mxu0 0
        %3342 = vmatprep.subr.bf16.mxu0 0
        %3343 = vmatpush1.bf16.msra.mxu0 0
        %3344 = vmatprep.subr.bf16.mxu0 0
        %3345 = vmatpush1.bf16.msra.mxu0 0
        %3346 = vmatprep.subr.bf16.mxu0 0
        %3347 = vmatpush1.bf16.msra.mxu0 0
        %3348 = vmatprep.subr.bf16.mxu0 0
        %3349 = vmatpush1.bf16.msra.mxu0 0
        %3350 = vmatprep.subr.bf16.mxu0 0
        %3351 = vmatpush1.bf16.msra.mxu0 0
        %3352 = vmatprep.subr.bf16.mxu0 0
        %3353 = vmatpush1.bf16.msra.mxu0 0
        %3354 = vmatprep.subr.bf16.mxu0 0
        %3355 = vmatpush1.bf16.msra.mxu0 0
        %3356 = vmatprep.subr.bf16.mxu0 0
        %3357 = vmatpush1.bf16.msra.mxu0 0
        %3358 = vmatprep.subr.bf16.mxu0 0
        %3359 = vmatpush1.bf16.msra.mxu0 0
        %3360 = vmatprep.subr.bf16.mxu0 0
        %3361 = vmatpush1.bf16.msra.mxu0 0
        %3362 = vmatprep.mubr.bf16.mxu0 0
        %3363 = vmatmul.mubr.bf16.gmra.mrb[0].mxu0 %v3325
        %v3364 = vpop.f32.mrb[0].mxu0
        %v3365 = vadd.f32 0.0, %v3364
        %v3366 = vpop.f32.mrb[0].mxu0
        %v3367 = vpop.f32.mrb[0].mxu0
        %v3368 = vpop.f32.mrb[0].mxu0
        %3369 = vdwg.mxu0
        %3370 = vrot.lane.b32.xlu0 %v3260, 120
        %v3371 = vpop.permute.xlu0 %3370
        %3372 = vrot.lane.b32.xlu0 %v3260, 88
        %v3373 = vpop.permute.xlu0 %3372
        %v3375 = vsel %vm617, %v3371, 0
        %v3378 = vsel %vm617, %v3373, 0
        %3380 = vmatprep.subr.bf16.mxu0 0
        %3381 = vmatpush1.bf16.xpose.msra.mxu0 %v3378
        %3382 = vmatprep.subr.bf16.mxu0 0
        %3383 = vmatpush1.bf16.xpose.msra.mxu0 0
        %3384 = vmatprep.subr.bf16.mxu0 0
        %3385 = vmatpush1.bf16.xpose.msra.mxu0 0
        %3386 = vmatprep.subr.bf16.mxu0 0
        %3387 = vmatpush1.bf16.xpose.msra.mxu0 0
        %3388 = vmatprep.subr.bf16.mxu0 0
        %3389 = vmatpush1.bf16.xpose.msra.mxu0 0
        %3390 = vmatprep.subr.bf16.mxu0 0
        %3391 = vmatpush1.bf16.xpose.msra.mxu0 0
        %3392 = vmatprep.subr.bf16.mxu0 0
        %3393 = vmatpush1.bf16.xpose.msra.mxu0 0
        %3394 = vmatprep.subr.bf16.mxu0 0
        %3395 = vmatpush1.bf16.xpose.msra.mxu0 0
        %3396 = vmatprep.subr.bf16.mxu0 0
        %3397 = vmatpush1.bf16.xpose.msra.mxu0 0
        %3398 = vmatprep.subr.bf16.mxu0 0
        %3399 = vmatpush1.bf16.xpose.msra.mxu0 0
        %3400 = vmatprep.subr.bf16.mxu0 0
        %3401 = vmatpush1.bf16.xpose.msra.mxu0 0
        %3402 = vmatprep.subr.bf16.mxu0 0
        %3403 = vmatpush1.bf16.xpose.msra.mxu0 0
        %3404 = vmatprep.subr.bf16.mxu0 0
        %3405 = vmatpush1.bf16.xpose.msra.mxu0 0
        %3406 = vmatprep.subr.bf16.mxu0 0
        %3407 = vmatpush1.bf16.xpose.msra.mxu0 0
        %3408 = vmatprep.subr.bf16.mxu0 0
        %3409 = vmatpush1.bf16.xpose.msra.mxu0 0
        %3410 = vmatprep.subr.bf16.mxu0 0
        %3411 = vmatpush1.bf16.xpose.msra.mxu0 0
        %3412 = vmatprep.mubr.bf16.mxu0 0
        %3413 = vmatmul.mubr.bf16.gmra.mrb[0].mxu0 %v3375
        %v3414 = vpop.f32.mrb[0].mxu0
        %v3415 = vadd.f32 0.0, %v3414
        %v3416 = vpop.f32.mrb[0].mxu0
        %v3417 = vpop.f32.mrb[0].mxu0
        %v3418 = vpop.f32.mrb[0].mxu0
        %3419 = vdwg.mxu0
        %v3420 = vsel %vm617, %v3415, -inf
        %3421 = vmax.xlane.f32.xlu0 %v3420
        %v3422 = vpop.xlane.xlu0 %3421
        %v3423 = vsub.f32 %v3415, %v3422
        %v3424 = vmul.f32 %v3423, 1.442695
        %v3425 = vpow.pop %v3424
        %v3426 = vsel %vm617, %v3425, 0.0
        %3427 = vadd.xlane.f32.xlu0 %v3426
        %v3428 = vpop.xlane.xlu0 %3427
        %v3429 = vrcp.pop %v3428
        %v3430 = vmul.f32 %v3425, %v3429
        %v3431 = vpack.c.bf16 %v3430, %v3430
        %3432 = vrot.lane.b32.xlu0 %v3260, 56
        %v3433 = vpop.permute.xlu0 %3432
        %v3435 = vsel %vm617, %v3431, 0
        %v3438 = vsel %vm681, %v3433, 0
        %3440 = vmatprep.subr.bf16.mxu0 0
        %3441 = vmatpush1.bf16.msra.mxu0 %v3438
        %3442 = vmatprep.subr.bf16.mxu0 0
        %3443 = vmatpush1.bf16.msra.mxu0 0
        %3444 = vmatprep.subr.bf16.mxu0 0
        %3445 = vmatpush1.bf16.msra.mxu0 0
        %3446 = vmatprep.subr.bf16.mxu0 0
        %3447 = vmatpush1.bf16.msra.mxu0 0
        %3448 = vmatprep.subr.bf16.mxu0 0
        %3449 = vmatpush1.bf16.msra.mxu0 0
        %3450 = vmatprep.subr.bf16.mxu0 0
        %3451 = vmatpush1.bf16.msra.mxu0 0
        %3452 = vmatprep.subr.bf16.mxu0 0
        %3453 = vmatpush1.bf16.msra.mxu0 0
        %3454 = vmatprep.subr.bf16.mxu0 0
        %3455 = vmatpush1.bf16.msra.mxu0 0
        %3456 = vmatprep.subr.bf16.mxu0 0
        %3457 = vmatpush1.bf16.msra.mxu0 0
        %3458 = vmatprep.subr.bf16.mxu0 0
        %3459 = vmatpush1.bf16.msra.mxu0 0
        %3460 = vmatprep.subr.bf16.mxu0 0
        %3461 = vmatpush1.bf16.msra.mxu0 0
        %3462 = vmatprep.subr.bf16.mxu0 0
        %3463 = vmatpush1.bf16.msra.mxu0 0
        %3464 = vmatprep.subr.bf16.mxu0 0
        %3465 = vmatpush1.bf16.msra.mxu0 0
        %3466 = vmatprep.subr.bf16.mxu0 0
        %3467 = vmatpush1.bf16.msra.mxu0 0
        %3468 = vmatprep.subr.bf16.mxu0 0
        %3469 = vmatpush1.bf16.msra.mxu0 0
        %3470 = vmatprep.subr.bf16.mxu0 0
        %3471 = vmatpush1.bf16.msra.mxu0 0
        %3472 = vmatprep.mubr.bf16.mxu0 0
        %3473 = vmatmul.mubr.bf16.gmra.mrb[0].mxu0 %v3435
        %v3474 = vpop.f32.mrb[0].mxu0
        %v3475 = vadd.f32 0.0, %v3474
        %v3476 = vpop.f32.mrb[0].mxu0
        %v3477 = vpop.f32.mrb[0].mxu0
        %v3478 = vpop.f32.mrb[0].mxu0
        %3479 = vdwg.mxu0
        %3480 = vrot.lane.b32.xlu0 %v3260, 112
        %v3481 = vpop.permute.xlu0 %3480
        %3482 = vrot.lane.b32.xlu0 %v3260, 80
        %v3483 = vpop.permute.xlu0 %3482
        %v3485 = vsel %vm617, %v3481, 0
        %v3488 = vsel %vm617, %v3483, 0
        %3490 = vmatprep.subr.bf16.mxu0 0
        %3491 = vmatpush1.bf16.xpose.msra.mxu0 %v3488
        %3492 = vmatprep.subr.bf16.mxu0 0
        %3493 = vmatpush1.bf16.xpose.msra.mxu0 0
        %3494 = vmatprep.subr.bf16.mxu0 0
        %3495 = vmatpush1.bf16.xpose.msra.mxu0 0
        %3496 = vmatprep.subr.bf16.mxu0 0
        %3497 = vmatpush1.bf16.xpose.msra.mxu0 0
        %3498 = vmatprep.subr.bf16.mxu0 0
        %3499 = vmatpush1.bf16.xpose.msra.mxu0 0
        %3500 = vmatprep.subr.bf16.mxu0 0
        %3501 = vmatpush1.bf16.xpose.msra.mxu0 0
        %3502 = vmatprep.subr.bf16.mxu0 0
        %3503 = vmatpush1.bf16.xpose.msra.mxu0 0
        %3504 = vmatprep.subr.bf16.mxu0 0
        %3505 = vmatpush1.bf16.xpose.msra.mxu0 0
        %3506 = vmatprep.subr.bf16.mxu0 0
        %3507 = vmatpush1.bf16.xpose.msra.mxu0 0
        %3508 = vmatprep.subr.bf16.mxu0 0
        %3509 = vmatpush1.bf16.xpose.msra.mxu0 0
        %3510 = vmatprep.subr.bf16.mxu0 0
        %3511 = vmatpush1.bf16.xpose.msra.mxu0 0
        %3512 = vmatprep.subr.bf16.mxu0 0
        %3513 = vmatpush1.bf16.xpose.msra.mxu0 0
        %3514 = vmatprep.subr.bf16.mxu0 0
        %3515 = vmatpush1.bf16.xpose.msra.mxu0 0
        %3516 = vmatprep.subr.bf16.mxu0 0
        %3517 = vmatpush1.bf16.xpose.msra.mxu0 0
        %3518 = vmatprep.subr.bf16.mxu0 0
        %3519 = vmatpush1.bf16.xpose.msra.mxu0 0
        %3520 = vmatprep.subr.bf16.mxu0 0
        %3521 = vmatpush1.bf16.xpose.msra.mxu0 0
        %3522 = vmatprep.mubr.bf16.mxu0 0
        %3523 = vmatmul.mubr.bf16.gmra.mrb[0].mxu0 %v3485
        %v3524 = vpop.f32.mrb[0].mxu0
        %v3525 = vadd.f32 0.0, %v3524
        %v3526 = vpop.f32.mrb[0].mxu0
        %v3527 = vpop.f32.mrb[0].mxu0
        %v3528 = vpop.f32.mrb[0].mxu0
        %3529 = vdwg.mxu0
        %v3530 = vsel %vm617, %v3525, -inf
        %3531 = vmax.xlane.f32.xlu0 %v3530
        %v3532 = vpop.xlane.xlu0 %3531
        %v3533 = vsub.f32 %v3525, %v3532
        %v3534 = vmul.f32 %v3533, 1.442695
        %v3535 = vpow.pop %v3534
        %v3536 = vsel %vm617, %v3535, 0.0
        %3537 = vadd.xlane.f32.xlu0 %v3536
        %v3538 = vpop.xlane.xlu0 %3537
        %v3539 = vrcp.pop %v3538
        %v3540 = vmul.f32 %v3535, %v3539
        %v3541 = vpack.c.bf16 %v3540, %v3540
        %3542 = vrot.lane.b32.xlu0 %v3260, 48
        %v3543 = vpop.permute.xlu0 %3542
        %v3545 = vsel %vm617, %v3541, 0
        %v3548 = vsel %vm681, %v3543, 0
        %3550 = vmatprep.subr.bf16.mxu0 0
        %3551 = vmatpush1.bf16.msra.mxu0 %v3548
        %3552 = vmatprep.subr.bf16.mxu0 0
        %3553 = vmatpush1.bf16.msra.mxu0 0
        %3554 = vmatprep.subr.bf16.mxu0 0
        %3555 = vmatpush1.bf16.msra.mxu0 0
        %3556 = vmatprep.subr.bf16.mxu0 0
        %3557 = vmatpush1.bf16.msra.mxu0 0
        %3558 = vmatprep.subr.bf16.mxu0 0
        %3559 = vmatpush1.bf16.msra.mxu0 0
        %3560 = vmatprep.subr.bf16.mxu0 0
        %3561 = vmatpush1.bf16.msra.mxu0 0
        %3562 = vmatprep.subr.bf16.mxu0 0
        %3563 = vmatpush1.bf16.msra.mxu0 0
        %3564 = vmatprep.subr.bf16.mxu0 0
        %3565 = vmatpush1.bf16.msra.mxu0 0
        %3566 = vmatprep.subr.bf16.mxu0 0
        %3567 = vmatpush1.bf16.msra.mxu0 0
        %3568 = vmatprep.subr.bf16.mxu0 0
        %3569 = vmatpush1.bf16.msra.mxu0 0
        %3570 = vmatprep.subr.bf16.mxu0 0
        %3571 = vmatpush1.bf16.msra.mxu0 0
        %3572 = vmatprep.subr.bf16.mxu0 0
        %3573 = vmatpush1.bf16.msra.mxu0 0
        %3574 = vmatprep.subr.bf16.mxu0 0
        %3575 = vmatpush1.bf16.msra.mxu0 0
        %3576 = vmatprep.subr.bf16.mxu0 0
        %3577 = vmatpush1.bf16.msra.mxu0 0
        %3578 = vmatprep.subr.bf16.mxu0 0
        %3579 = vmatpush1.bf16.msra.mxu0 0
        %3580 = vmatprep.subr.bf16.mxu0 0
        %3581 = vmatpush1.bf16.msra.mxu0 0
        %3582 = vmatprep.mubr.bf16.mxu0 0
        %3583 = vmatmul.mubr.bf16.gmra.mrb[0].mxu0 %v3545
        %v3584 = vpop.f32.mrb[0].mxu0
        %v3585 = vadd.f32 0.0, %v3584
        %v3586 = vpop.f32.mrb[0].mxu0
        %v3587 = vpop.f32.mrb[0].mxu0
        %v3588 = vpop.f32.mrb[0].mxu0
        %3589 = vdwg.mxu0
        %3590 = vrot.lane.b32.xlu0 %v3260, 104
        %v3591 = vpop.permute.xlu0 %3590
        %3592 = vrot.lane.b32.xlu0 %v3260, 72
        %v3593 = vpop.permute.xlu0 %3592
        %v3595 = vsel %vm617, %v3591, 0
        %v3598 = vsel %vm617, %v3593, 0
        %3600 = vmatprep.subr.bf16.mxu0 0
        %3601 = vmatpush1.bf16.xpose.msra.mxu0 %v3598
        %3602 = vmatprep.subr.bf16.mxu0 0
        %3603 = vmatpush1.bf16.xpose.msra.mxu0 0
        %3604 = vmatprep.subr.bf16.mxu0 0
        %3605 = vmatpush1.bf16.xpose.msra.mxu0 0
        %3606 = vmatprep.subr.bf16.mxu0 0
        %3607 = vmatpush1.bf16.xpose.msra.mxu0 0
        %3608 = vmatprep.subr.bf16.mxu0 0
        %3609 = vmatpush1.bf16.xpose.msra.mxu0 0
        %3610 = vmatprep.subr.bf16.mxu0 0
        %3611 = vmatpush1.bf16.xpose.msra.mxu0 0
        %3612 = vmatprep.subr.bf16.mxu0 0
        %3613 = vmatpush1.bf16.xpose.msra.mxu0 0
        %3614 = vmatprep.subr.bf16.mxu0 0
        %3615 = vmatpush1.bf16.xpose.msra.mxu0 0
        %3616 = vmatprep.subr.bf16.mxu0 0
        %3617 = vmatpush1.bf16.xpose.msra.mxu0 0
        %3618 = vmatprep.subr.bf16.mxu0 0
        %3619 = vmatpush1.bf16.xpose.msra.mxu0 0
        %3620 = vmatprep.subr.bf16.mxu0 0
        %3621 = vmatpush1.bf16.xpose.msra.mxu0 0
        %3622 = vmatprep.subr.bf16.mxu0 0
        %3623 = vmatpush1.bf16.xpose.msra.mxu0 0
        %3624 = vmatprep.subr.bf16.mxu0 0
        %3625 = vmatpush1.bf16.xpose.msra.mxu0 0
        %3626 = vmatprep.subr.bf16.mxu0 0
        %3627 = vmatpush1.bf16.xpose.msra.mxu0 0
        %3628 = vmatprep.subr.bf16.mxu0 0
        %3629 = vmatpush1.bf16.xpose.msra.mxu0 0
        %3630 = vmatprep.subr.bf16.mxu0 0
        %3631 = vmatpush1.bf16.xpose.msra.mxu0 0
        %3632 = vmatprep.mubr.bf16.mxu0 0
        %3633 = vmatmul.mubr.bf16.gmra.mrb[0].mxu0 %v3595
        %v3634 = vpop.f32.mrb[0].mxu0
        %v3635 = vadd.f32 0.0, %v3634
        %v3636 = vpop.f32.mrb[0].mxu0
        %v3637 = vpop.f32.mrb[0].mxu0
        %v3638 = vpop.f32.mrb[0].mxu0
        %3639 = vdwg.mxu0
        %v3640 = vsel %vm617, %v3635, -inf
        %3641 = vmax.xlane.f32.xlu0 %v3640
        %v3642 = vpop.xlane.xlu0 %3641
        %v3643 = vsub.f32 %v3635, %v3642
        %v3644 = vmul.f32 %v3643, 1.442695
        %v3645 = vpow.pop %v3644
        %v3646 = vsel %vm617, %v3645, 0.0
        %3647 = vadd.xlane.f32.xlu0 %v3646
        %v3648 = vpop.xlane.xlu0 %3647
        %v3649 = vrcp.pop %v3648
        %v3650 = vmul.f32 %v3645, %v3649
        %v3651 = vpack.c.bf16 %v3650, %v3650
        %3652 = vrot.lane.b32.xlu0 %v3260, 40
        %v3653 = vpop.permute.xlu0 %3652
        %v3655 = vsel %vm617, %v3651, 0
        %v3658 = vsel %vm681, %v3653, 0
        %3660 = vmatprep.subr.bf16.mxu0 0
        %3661 = vmatpush1.bf16.msra.mxu0 %v3658
        %3662 = vmatprep.subr.bf16.mxu0 0
        %3663 = vmatpush1.bf16.msra.mxu0 0
        %3664 = vmatprep.subr.bf16.mxu0 0
        %3665 = vmatpush1.bf16.msra.mxu0 0
        %3666 = vmatprep.subr.bf16.mxu0 0
        %3667 = vmatpush1.bf16.msra.mxu0 0
        %3668 = vmatprep.subr.bf16.mxu0 0
        %3669 = vmatpush1.bf16.msra.mxu0 0
        %3670 = vmatprep.subr.bf16.mxu0 0
        %3671 = vmatpush1.bf16.msra.mxu0 0
        %3672 = vmatprep.subr.bf16.mxu0 0
        %3673 = vmatpush1.bf16.msra.mxu0 0
        %3674 = vmatprep.subr.bf16.mxu0 0
        %3675 = vmatpush1.bf16.msra.mxu0 0
        %3676 = vmatprep.subr.bf16.mxu0 0
        %3677 = vmatpush1.bf16.msra.mxu0 0
        %3678 = vmatprep.subr.bf16.mxu0 0
        %3679 = vmatpush1.bf16.msra.mxu0 0
        %3680 = vmatprep.subr.bf16.mxu0 0
        %3681 = vmatpush1.bf16.msra.mxu0 0
        %3682 = vmatprep.subr.bf16.mxu0 0
        %3683 = vmatpush1.bf16.msra.mxu0 0
        %3684 = vmatprep.subr.bf16.mxu0 0
        %3685 = vmatpush1.bf16.msra.mxu0 0
        %3686 = vmatprep.subr.bf16.mxu0 0
        %3687 = vmatpush1.bf16.msra.mxu0 0
        %3688 = vmatprep.subr.bf16.mxu0 0
        %3689 = vmatpush1.bf16.msra.mxu0 0
        %3690 = vmatprep.subr.bf16.mxu0 0
        %3691 = vmatpush1.bf16.msra.mxu0 0
        %3692 = vmatprep.mubr.bf16.mxu0 0
        %3693 = vmatmul.mubr.bf16.gmra.mrb[0].mxu0 %v3655
        %v3694 = vpop.f32.mrb[0].mxu0
        %v3695 = vadd.f32 0.0, %v3694
        %v3696 = vpop.f32.mrb[0].mxu0
        %v3697 = vpop.f32.mrb[0].mxu0
        %v3698 = vpop.f32.mrb[0].mxu0
        %3699 = vdwg.mxu0
        %3701 = vrot.lane.b32.xlu0 %v3475, 8
        %v3702 = vpop.permute.xlu0 %3701
        %3705 = vrot.lane.b32.xlu0 %v3585, 16
        %v3706 = vpop.permute.xlu0 %3705
        %3709 = vrot.lane.b32.xlu0 %v3695, 24
        %v3710 = vpop.permute.xlu0 %3709
        %v3712 = vsel %vm617, %v3365, %v3702
        %v3713 = vsel %vm1068, %v3712, %v3706
        %v3714 = vsel %vm1070, %v3713, %v3710
        %s3715 = scalar_lea.vmem %s3, 16
        %v3716 = vld [vmem:[%s3715] sm:$0xf]
        %v3717 = vld [vmem:[%s3715 + $0x4] sm:$0xf]
        %v3718 = vld [vmem:[%s3715 + $0x8] sm:$0xf]
        %v3719 = vld [vmem:[%s3715 + $0xc] sm:$0xf]
        %v3720 = vpack.c.bf16 %v3714, %v3714
        %s3721 = scalar_lea.vmem %s4, 1
        %v3722 = vld [vmem:[%s3721] sm:$0x1]
        %v3724 = vlaneseq
        %v3725 = vshrl.u32 %v3724, 7
        %v3726 = vsub.s32 0, %v3725
        %v3727 = vrot.slane %v3722, %v3726
        %v3733 = vunpack.c.l.b16 %v3716
        %v3734 = vunpack.c.l.b16 %v3717
        %v3735 = vunpack.c.l.b16 %v3718
        %v3736 = vunpack.c.l.b16 %v3719
        %v3737 = vpack.c.b16 %v3734, %v3733
        %v3738 = vpack.c.b16 %v3736, %v3735
        %v3742 = vsel %vm569, %v3720, 0
        %3744 = vmatprep.subr.bf16.mxu0 0
        %3745 = vmatpush1.bf16.msra.mxu0 %v3737
        %3746 = vmatprep.subr.bf16.mxu0 0
        %3747 = vmatpush1.bf16.msra.mxu0 %v3738
        %3748 = vmatprep.subr.bf16.mxu0 0
        %3749 = vmatpush1.bf16.msra.mxu0 0
        %3750 = vmatprep.subr.bf16.mxu0 0
        %3751 = vmatpush1.bf16.msra.mxu0 0
        %3752 = vmatprep.subr.bf16.mxu0 0
        %3753 = vmatpush1.bf16.msra.mxu0 0
        %3754 = vmatprep.subr.bf16.mxu0 0
        %3755 = vmatpush1.bf16.msra.mxu0 0
        %3756 = vmatprep.subr.bf16.mxu0 0
        %3757 = vmatpush1.bf16.msra.mxu0 0
        %3758 = vmatprep.subr.bf16.mxu0 0
        %3759 = vmatpush1.bf16.msra.mxu0 0
        %3760 = vmatprep.subr.bf16.mxu0 0
        %3761 = vmatpush1.bf16.msra.mxu0 0
        %3762 = vmatprep.subr.bf16.mxu0 0
        %3763 = vmatpush1.bf16.msra.mxu0 0
        %3764 = vmatprep.subr.bf16.mxu0 0
        %3765 = vmatpush1.bf16.msra.mxu0 0
        %3766 = vmatprep.subr.bf16.mxu0 0
        %3767 = vmatpush1.bf16.msra.mxu0 0
        %3768 = vmatprep.subr.bf16.mxu0 0
        %3769 = vmatpush1.bf16.msra.mxu0 0
        %3770 = vmatprep.subr.bf16.mxu0 0
        %3771 = vmatpush1.bf16.msra.mxu0 0
        %3772 = vmatprep.subr.bf16.mxu0 0
        %3773 = vmatpush1.bf16.msra.mxu0 0
        %3774 = vmatprep.subr.bf16.mxu0 0
        %3775 = vmatpush1.bf16.msra.mxu0 0
        %3776 = vmatprep.mubr.bf16.mxu0 0
        %3777 = vmatmul.mubr.bf16.gmra.mrb[0].mxu0 %v3742
        %v3778 = vpop.f32.mrb[0].mxu0
        %v3779 = vadd.f32 %v3727, %v3778
        %v3780 = vpop.f32.mrb[0].mxu0
        %v3781 = vpop.f32.mrb[0].mxu0
        %v3782 = vpop.f32.mrb[0].mxu0
        %3783 = vdwg.mxu0
        %v3784 = vadd.f32 %v3190, %v3779
        %s3785 = scalar_lea.vmem %s5, 1
        %v3786 = vld [vmem:[%s3785] sm:$0x1]
        %s3787 = scalar_lea.vmem %s6, 1
        %v3788 = vld [vmem:[%s3787] sm:$0x1]
        %v3789 = vsel %vm569, %v3784, 0.0
        %3790 = vadd.xlane.f32.xlu0 %v3789
        %v3791 = vpop.xlane.xlu0 %3790
        %v3792 = vmul.f32 %v3791, %v1145
        %v3793 = vsub.f32 %v3784, %v3792
        %v3794 = vmul.f32 %v3793, %v3793
        %v3795 = vsel %vm569, %v3794, 0.0
        %3796 = vadd.xlane.f32.xlu0 %v3795
        %v3797 = vpop.xlane.xlu0 %3796
        %v3798 = vmul.f32 %v3797, %v1145
        %v3799 = vadd.f32 %v3798, 1e-05
        %v3800 = vrsqrt.pop %v3799
        %v3801 = vmul.f32 %v3793, %v3800
        %v3803 = vlaneseq
        %v3804 = vshrl.u32 %v3803, 7
        %v3805 = vsub.s32 0, %v3804
        %v3806 = vrot.slane %v3786, %v3805
        %v3808 = vmul.f32 %v3801, %v3806
        %v3810 = vlaneseq
        %v3811 = vshrl.u32 %v3810, 7
        %v3812 = vsub.s32 0, %v3811
        %v3813 = vrot.slane %v3788, %v3812
        %v3815 = vadd.f32 %v3808, %v3813
        %s3816 = scalar_lea.vmem %s9, 256
        %v3817 = vld [vmem:[%s3816] sm:$0xff]
        %v3818 = vld [vmem:[%s3816 + $0x8] sm:$0xff]
        %v3819 = vld [vmem:[%s3816 + $0x10] sm:$0xff]
        %v3820 = vld [vmem:[%s3816 + $0x18] sm:$0xff]
        %v3821 = vld [vmem:[%s3816 + $0x20] sm:$0xff]
        %v3822 = vld [vmem:[%s3816 + $0x28] sm:$0xff]
        %v3823 = vld [vmem:[%s3816 + $0x30] sm:$0xff]
        %v3824 = vld [vmem:[%s3816 + $0x38] sm:$0xff]
        %v3825 = vld [vmem:[%s3816 + $0x40] sm:$0xff]
        %v3826 = vld [vmem:[%s3816 + $0x48] sm:$0xff]
        %v3827 = vld [vmem:[%s3816 + $0x50] sm:$0xff]
        %v3828 = vld [vmem:[%s3816 + $0x58] sm:$0xff]
        %v3829 = vld [vmem:[%s3816 + $0x60] sm:$0xff]
        %v3830 = vld [vmem:[%s3816 + $0x68] sm:$0xff]
        %v3831 = vld [vmem:[%s3816 + $0x70] sm:$0xff]
        %v3832 = vld [vmem:[%s3816 + $0x78] sm:$0xff]
        %v3833 = vld [vmem:[%s3816 + $0x80] sm:$0xff]
        %v3834 = vld [vmem:[%s3816 + $0x88] sm:$0xff]
        %v3835 = vld [vmem:[%s3816 + $0x90] sm:$0xff]
        %v3836 = vld [vmem:[%s3816 + $0x98] sm:$0xff]
        %v3837 = vld [vmem:[%s3816 + $0xa0] sm:$0xff]
        %v3838 = vld [vmem:[%s3816 + $0xa8] sm:$0xff]
        %v3839 = vld [vmem:[%s3816 + $0xb0] sm:$0xff]
        %v3840 = vld [vmem:[%s3816 + $0xb8] sm:$0xff]
        %v3841 = vld [vmem:[%s3816 + $0xc0] sm:$0xff]
        %v3842 = vld [vmem:[%s3816 + $0xc8] sm:$0xff]
        %v3843 = vld [vmem:[%s3816 + $0xd0] sm:$0xff]
        %v3844 = vld [vmem:[%s3816 + $0xd8] sm:$0xff]
        %v3845 = vld [vmem:[%s3816 + $0xe0] sm:$0xff]
        %v3846 = vld [vmem:[%s3816 + $0xe8] sm:$0xff]
        %v3847 = vld [vmem:[%s3816 + $0xf0] sm:$0xff]
        %v3848 = vld [vmem:[%s3816 + $0xf8] sm:$0xff]
        %v3849 = vpack.c.bf16 %v3815, %v3815
        %s3850 = scalar_lea.vmem %s10, 16
        %v3851 = vld [vmem:[%s3850] sm:$0xff]
        %v3852 = vld [vmem:[%s3850 + $0x8] sm:$0xff]
        %v3855 = vlaneseq
        %v3856 = vshrl.u32 %v3855, 7
        %v3857 = vsub.s32 0, %v3856
        %v3858 = vrot.slane %v3851, %v3857
        %v3859 = vlaneseq
        %v3860 = vshrl.u32 %v3859, 7
        %v3861 = vsub.s32 1, %v3860
        %v3862 = vrot.slane %v3851, %v3861
        %v3863 = vlaneseq
        %v3864 = vshrl.u32 %v3863, 7
        %v3865 = vsub.s32 2, %v3864
        %v3866 = vrot.slane %v3851, %v3865
        %v3867 = vlaneseq
        %v3868 = vshrl.u32 %v3867, 7
        %v3869 = vsub.s32 3, %v3868
        %v3870 = vrot.slane %v3851, %v3869
        %v3871 = vlaneseq
        %v3872 = vshrl.u32 %v3871, 7
        %v3873 = vsub.s32 4, %v3872
        %v3874 = vrot.slane %v3851, %v3873
        %v3875 = vlaneseq
        %v3876 = vshrl.u32 %v3875, 7
        %v3877 = vsub.s32 5, %v3876
        %v3878 = vrot.slane %v3851, %v3877
        %v3879 = vlaneseq
        %v3880 = vshrl.u32 %v3879, 7
        %v3881 = vsub.s32 6, %v3880
        %v3882 = vrot.slane %v3851, %v3881
        %v3883 = vlaneseq
        %v3884 = vshrl.u32 %v3883, 7
        %v3885 = vsub.s32 7, %v3884
        %v3886 = vrot.slane %v3851, %v3885
        %v3887 = vlaneseq
        %v3888 = vshrl.u32 %v3887, 7
        %v3889 = vsub.s32 0, %v3888
        %v3890 = vrot.slane %v3852, %v3889
        %v3891 = vlaneseq
        %v3892 = vshrl.u32 %v3891, 7
        %v3893 = vsub.s32 1, %v3892
        %v3894 = vrot.slane %v3852, %v3893
        %v3895 = vlaneseq
        %v3896 = vshrl.u32 %v3895, 7
        %v3897 = vsub.s32 2, %v3896
        %v3898 = vrot.slane %v3852, %v3897
        %v3899 = vlaneseq
        %v3900 = vshrl.u32 %v3899, 7
        %v3901 = vsub.s32 3, %v3900
        %v3902 = vrot.slane %v3852, %v3901
        %v3903 = vlaneseq
        %v3904 = vshrl.u32 %v3903, 7
        %v3905 = vsub.s32 4, %v3904
        %v3906 = vrot.slane %v3852, %v3905
        %v3907 = vlaneseq
        %v3908 = vshrl.u32 %v3907, 7
        %v3909 = vsub.s32 5, %v3908
        %v3910 = vrot.slane %v3852, %v3909
        %v3911 = vlaneseq
        %v3912 = vshrl.u32 %v3911, 7
        %v3913 = vsub.s32 6, %v3912
        %v3914 = vrot.slane %v3852, %v3913
        %v3915 = vlaneseq
        %v3916 = vshrl.u32 %v3915, 7
        %v3917 = vsub.s32 7, %v3916
        %v3918 = vrot.slane %v3852, %v3917
        %v3967 = vunpack.c.l.b16 %v3817
        %v3968 = vunpack.c.h.b16 %v3817
        %v3969 = vunpack.c.l.b16 %v3818
        %v3970 = vunpack.c.h.b16 %v3818
        %v3971 = vunpack.c.l.b16 %v3819
        %v3972 = vunpack.c.h.b16 %v3819
        %v3973 = vunpack.c.l.b16 %v3820
        %v3974 = vunpack.c.h.b16 %v3820
        %v3975 = vunpack.c.l.b16 %v3821
        %v3976 = vunpack.c.h.b16 %v3821
        %v3977 = vunpack.c.l.b16 %v3822
        %v3978 = vunpack.c.h.b16 %v3822
        %v3979 = vunpack.c.l.b16 %v3823
        %v3980 = vunpack.c.h.b16 %v3823
        %v3981 = vunpack.c.l.b16 %v3824
        %v3982 = vunpack.c.h.b16 %v3824
        %v3983 = vunpack.c.l.b16 %v3825
        %v3984 = vunpack.c.h.b16 %v3825
        %v3985 = vunpack.c.l.b16 %v3826
        %v3986 = vunpack.c.h.b16 %v3826
        %v3987 = vunpack.c.l.b16 %v3827
        %v3988 = vunpack.c.h.b16 %v3827
        %v3989 = vunpack.c.l.b16 %v3828
        %v3990 = vunpack.c.h.b16 %v3828
        %v3991 = vunpack.c.l.b16 %v3829
        %v3992 = vunpack.c.h.b16 %v3829
        %v3993 = vunpack.c.l.b16 %v3830
        %v3994 = vunpack.c.h.b16 %v3830
        %v3995 = vunpack.c.l.b16 %v3831
        %v3996 = vunpack.c.h.b16 %v3831
        %v3997 = vunpack.c.l.b16 %v3832
        %v3998 = vunpack.c.h.b16 %v3832
        %v3999 = vunpack.c.l.b16 %v3833
        %v4000 = vunpack.c.h.b16 %v3833
        %v4001 = vunpack.c.l.b16 %v3834
        %v4002 = vunpack.c.h.b16 %v3834
        %v4003 = vunpack.c.l.b16 %v3835
        %v4004 = vunpack.c.h.b16 %v3835
        %v4005 = vunpack.c.l.b16 %v3836
        %v4006 = vunpack.c.h.b16 %v3836
        %v4007 = vunpack.c.l.b16 %v3837
        %v4008 = vunpack.c.h.b16 %v3837
        %v4009 = vunpack.c.l.b16 %v3838
        %v4010 = vunpack.c.h.b16 %v3838
        %v4011 = vunpack.c.l.b16 %v3839
        %v4012 = vunpack.c.h.b16 %v3839
        %v4013 = vunpack.c.l.b16 %v3840
        %v4014 = vunpack.c.h.b16 %v3840
        %v4015 = vunpack.c.l.b16 %v3841
        %v4016 = vunpack.c.h.b16 %v3841
        %v4017 = vunpack.c.l.b16 %v3842
        %v4018 = vunpack.c.h.b16 %v3842
        %v4019 = vunpack.c.l.b16 %v3843
        %v4020 = vunpack.c.h.b16 %v3843
        %v4021 = vunpack.c.l.b16 %v3844
        %v4022 = vunpack.c.h.b16 %v3844
        %v4023 = vunpack.c.l.b16 %v3845
        %v4024 = vunpack.c.h.b16 %v3845
        %v4025 = vunpack.c.l.b16 %v3846
        %v4026 = vunpack.c.h.b16 %v3846
        %v4027 = vunpack.c.l.b16 %v3847
        %v4028 = vunpack.c.h.b16 %v3847
        %v4029 = vunpack.c.l.b16 %v3848
        %v4030 = vunpack.c.h.b16 %v3848
        %v4031 = vpack.c.b16 %v3983, %v3967
        %v4032 = vpack.c.b16 %v3984, %v3968
        %v4033 = vpack.c.b16 %v3985, %v3969
        %v4034 = vpack.c.b16 %v3986, %v3970
        %v4035 = vpack.c.b16 %v3987, %v3971
        %v4036 = vpack.c.b16 %v3988, %v3972
        %v4037 = vpack.c.b16 %v3989, %v3973
        %v4038 = vpack.c.b16 %v3990, %v3974
        %v4039 = vpack.c.b16 %v3991, %v3975
        %v4040 = vpack.c.b16 %v3992, %v3976
        %v4041 = vpack.c.b16 %v3993, %v3977
        %v4042 = vpack.c.b16 %v3994, %v3978
        %v4043 = vpack.c.b16 %v3995, %v3979
        %v4044 = vpack.c.b16 %v3996, %v3980
        %v4045 = vpack.c.b16 %v3997, %v3981
        %v4046 = vpack.c.b16 %v3998, %v3982
        %v4047 = vpack.c.b16 %v4015, %v3999
        %v4048 = vpack.c.b16 %v4016, %v4000
        %v4049 = vpack.c.b16 %v4017, %v4001
        %v4050 = vpack.c.b16 %v4018, %v4002
        %v4051 = vpack.c.b16 %v4019, %v4003
        %v4052 = vpack.c.b16 %v4020, %v4004
        %v4053 = vpack.c.b16 %v4021, %v4005
        %v4054 = vpack.c.b16 %v4022, %v4006
        %v4055 = vpack.c.b16 %v4023, %v4007
        %v4056 = vpack.c.b16 %v4024, %v4008
        %v4057 = vpack.c.b16 %v4025, %v4009
        %v4058 = vpack.c.b16 %v4026, %v4010
        %v4059 = vpack.c.b16 %v4027, %v4011
        %v4060 = vpack.c.b16 %v4028, %v4012
        %v4061 = vpack.c.b16 %v4029, %v4013
        %v4062 = vpack.c.b16 %v4030, %v4014
        %v4096 = vsel %vm569, %v3849, 0
        %4098 = vmatprep.subr.bf16.mxu0 %v4032
        %4099 = vmatpush1.bf16.msra.mxu0 %v4031
        %4100 = vmatprep.subr.bf16.mxu0 %v4048
        %4101 = vmatpush1.bf16.msra.mxu0 %v4047
        %4102 = vmatprep.subr.bf16.mxu0 0
        %4103 = vmatpush1.bf16.msra.mxu0 0
        %4104 = vmatprep.subr.bf16.mxu0 0
        %4105 = vmatpush1.bf16.msra.mxu0 0
        %4106 = vmatprep.subr.bf16.mxu0 0
        %4107 = vmatpush1.bf16.msra.mxu0 0
        %4108 = vmatprep.subr.bf16.mxu0 0
        %4109 = vmatpush1.bf16.msra.mxu0 0
        %4110 = vmatprep.subr.bf16.mxu0 0
        %4111 = vmatpush1.bf16.msra.mxu0 0
        %4112 = vmatprep.subr.bf16.mxu0 0
        %4113 = vmatpush1.bf16.msra.mxu0 0
        %4114 = vmatprep.subr.bf16.mxu0 0
        %4115 = vmatpush1.bf16.msra.mxu0 0
        %4116 = vmatprep.subr.bf16.mxu0 0
        %4117 = vmatpush1.bf16.msra.mxu0 0
        %4118 = vmatprep.subr.bf16.mxu0 0
        %4119 = vmatpush1.bf16.msra.mxu0 0
        %4120 = vmatprep.subr.bf16.mxu0 0
        %4121 = vmatpush1.bf16.msra.mxu0 0
        %4122 = vmatprep.subr.bf16.mxu0 0
        %4123 = vmatpush1.bf16.msra.mxu0 0
        %4124 = vmatprep.subr.bf16.mxu0 0
        %4125 = vmatpush1.bf16.msra.mxu0 0
        %4126 = vmatprep.subr.bf16.mxu0 0
        %4127 = vmatpush1.bf16.msra.mxu0 0
        %4128 = vmatprep.subr.bf16.mxu0 0
        %4129 = vmatpush1.bf16.msra.mxu0 0
        %4130 = vmatprep.mubr.bf16.mxu0 0
        %4131 = vmatmul.mubr.bf16.gmra.mrb[0].mxu0 %v4096
        %v4132 = vpop.f32.mrb[0].mxu0
        %v4133 = vadd.f32 %v3858, %v4132
        %v4134 = vpop.f32.mrb[0].mxu0
        %v4135 = vadd.f32 %v3862, %v4134
        %v4136 = vpop.f32.mrb[0].mxu0
        %v4137 = vpop.f32.mrb[0].mxu0
        %4138 = vdwg.mxu0
        %4139 = vmatprep.subr.bf16.mxu0 %v4034
        %4140 = vmatpush1.bf16.msra.mxu0 %v4033
        %4141 = vmatprep.subr.bf16.mxu0 %v4050
        %4142 = vmatpush1.bf16.msra.mxu0 %v4049
        %4143 = vmatprep.subr.bf16.mxu0 0
        %4144 = vmatpush1.bf16.msra.mxu0 0
        %4145 = vmatprep.subr.bf16.mxu0 0
        %4146 = vmatpush1.bf16.msra.mxu0 0
        %4147 = vmatprep.subr.bf16.mxu0 0
        %4148 = vmatpush1.bf16.msra.mxu0 0
        %4149 = vmatprep.subr.bf16.mxu0 0
        %4150 = vmatpush1.bf16.msra.mxu0 0
        %4151 = vmatprep.subr.bf16.mxu0 0
        %4152 = vmatpush1.bf16.msra.mxu0 0
        %4153 = vmatprep.subr.bf16.mxu0 0
        %4154 = vmatpush1.bf16.msra.mxu0 0
        %4155 = vmatprep.subr.bf16.mxu0 0
        %4156 = vmatpush1.bf16.msra.mxu0 0
        %4157 = vmatprep.subr.bf16.mxu0 0
        %4158 = vmatpush1.bf16.msra.mxu0 0
        %4159 = vmatprep.subr.bf16.mxu0 0
        %4160 = vmatpush1.bf16.msra.mxu0 0
        %4161 = vmatprep.subr.bf16.mxu0 0
        %4162 = vmatpush1.bf16.msra.mxu0 0
        %4163 = vmatprep.subr.bf16.mxu0 0
        %4164 = vmatpush1.bf16.msra.mxu0 0
        %4165 = vmatprep.subr.bf16.mxu0 0
        %4166 = vmatpush1.bf16.msra.mxu0 0
        %4167 = vmatprep.subr.bf16.mxu0 0
        %4168 = vmatpush1.bf16.msra.mxu0 0
        %4169 = vmatprep.subr.bf16.mxu0 0
        %4170 = vmatpush1.bf16.msra.mxu0 0
        %4171 = vmatprep.mubr.bf16.mxu0 0
        %4172 = vmatmul.mubr.bf16.gmra.mrb[0].mxu0 %v4096
        %v4173 = vpop.f32.mrb[0].mxu0
        %v4174 = vadd.f32 %v3866, %v4173
        %v4175 = vpop.f32.mrb[0].mxu0
        %v4176 = vadd.f32 %v3870, %v4175
        %v4177 = vpop.f32.mrb[0].mxu0
        %v4178 = vpop.f32.mrb[0].mxu0
        %4179 = vdwg.mxu0
        %4180 = vmatprep.subr.bf16.mxu0 %v4036
        %4181 = vmatpush1.bf16.msra.mxu0 %v4035
        %4182 = vmatprep.subr.bf16.mxu0 %v4052
        %4183 = vmatpush1.bf16.msra.mxu0 %v4051
        %4184 = vmatprep.subr.bf16.mxu0 0
        %4185 = vmatpush1.bf16.msra.mxu0 0
        %4186 = vmatprep.subr.bf16.mxu0 0
        %4187 = vmatpush1.bf16.msra.mxu0 0
        %4188 = vmatprep.subr.bf16.mxu0 0
        %4189 = vmatpush1.bf16.msra.mxu0 0
        %4190 = vmatprep.subr.bf16.mxu0 0
        %4191 = vmatpush1.bf16.msra.mxu0 0
        %4192 = vmatprep.subr.bf16.mxu0 0
        %4193 = vmatpush1.bf16.msra.mxu0 0
        %4194 = vmatprep.subr.bf16.mxu0 0
        %4195 = vmatpush1.bf16.msra.mxu0 0
        %4196 = vmatprep.subr.bf16.mxu0 0
        %4197 = vmatpush1.bf16.msra.mxu0 0
        %4198 = vmatprep.subr.bf16.mxu0 0
        %4199 = vmatpush1.bf16.msra.mxu0 0
        %4200 = vmatprep.subr.bf16.mxu0 0
        %4201 = vmatpush1.bf16.msra.mxu0 0
        %4202 = vmatprep.subr.bf16.mxu0 0
        %4203 = vmatpush1.bf16.msra.mxu0 0
        %4204 = vmatprep.subr.bf16.mxu0 0
        %4205 = vmatpush1.bf16.msra.mxu0 0
        %4206 = vmatprep.subr.bf16.mxu0 0
        %4207 = vmatpush1.bf16.msra.mxu0 0
        %4208 = vmatprep.subr.bf16.mxu0 0
        %4209 = vmatpush1.bf16.msra.mxu0 0
        %4210 = vmatprep.subr.bf16.mxu0 0
        %4211 = vmatpush1.bf16.msra.mxu0 0
        %4212 = vmatprep.mubr.bf16.mxu0 0
        %4213 = vmatmul.mubr.bf16.gmra.mrb[0].mxu0 %v4096
        %v4214 = vpop.f32.mrb[0].mxu0
        %v4215 = vadd.f32 %v3874, %v4214
        %v4216 = vpop.f32.mrb[0].mxu0
        %v4217 = vadd.f32 %v3878, %v4216
        %v4218 = vpop.f32.mrb[0].mxu0
        %v4219 = vpop.f32.mrb[0].mxu0
        %4220 = vdwg.mxu0
        %4221 = vmatprep.subr.bf16.mxu0 %v4038
        %4222 = vmatpush1.bf16.msra.mxu0 %v4037
        %4223 = vmatprep.subr.bf16.mxu0 %v4054
        %4224 = vmatpush1.bf16.msra.mxu0 %v4053
        %4225 = vmatprep.subr.bf16.mxu0 0
        %4226 = vmatpush1.bf16.msra.mxu0 0
        %4227 = vmatprep.subr.bf16.mxu0 0
        %4228 = vmatpush1.bf16.msra.mxu0 0
        %4229 = vmatprep.subr.bf16.mxu0 0
        %4230 = vmatpush1.bf16.msra.mxu0 0
        %4231 = vmatprep.subr.bf16.mxu0 0
        %4232 = vmatpush1.bf16.msra.mxu0 0
        %4233 = vmatprep.subr.bf16.mxu0 0
        %4234 = vmatpush1.bf16.msra.mxu0 0
        %4235 = vmatprep.subr.bf16.mxu0 0
        %4236 = vmatpush1.bf16.msra.mxu0 0
        %4237 = vmatprep.subr.bf16.mxu0 0
        %4238 = vmatpush1.bf16.msra.mxu0 0
        %4239 = vmatprep.subr.bf16.mxu0 0
        %4240 = vmatpush1.bf16.msra.mxu0 0
        %4241 = vmatprep.subr.bf16.mxu0 0
        %4242 = vmatpush1.bf16.msra.mxu0 0
        %4243 = vmatprep.subr.bf16.mxu0 0
        %4244 = vmatpush1.bf16.msra.mxu0 0
        %4245 = vmatprep.subr.bf16.mxu0 0
        %4246 = vmatpush1.bf16.msra.mxu0 0
        %4247 = vmatprep.subr.bf16.mxu0 0
        %4248 = vmatpush1.bf16.msra.mxu0 0
        %4249 = vmatprep.subr.bf16.mxu0 0
        %4250 = vmatpush1.bf16.msra.mxu0 0
        %4251 = vmatprep.subr.bf16.mxu0 0
        %4252 = vmatpush1.bf16.msra.mxu0 0
        %4253 = vmatprep.mubr.bf16.mxu0 0
        %4254 = vmatmul.mubr.bf16.gmra.mrb[0].mxu0 %v4096
        %v4255 = vpop.f32.mrb[0].mxu0
        %v4256 = vadd.f32 %v3882, %v4255
        %v4257 = vpop.f32.mrb[0].mxu0
        %v4258 = vadd.f32 %v3886, %v4257
        %v4259 = vpop.f32.mrb[0].mxu0
        %v4260 = vpop.f32.mrb[0].mxu0
        %4261 = vdwg.mxu0
        %4262 = vmatprep.subr.bf16.mxu0 %v4040
        %4263 = vmatpush1.bf16.msra.mxu0 %v4039
        %4264 = vmatprep.subr.bf16.mxu0 %v4056
        %4265 = vmatpush1.bf16.msra.mxu0 %v4055
        %4266 = vmatprep.subr.bf16.mxu0 0
        %4267 = vmatpush1.bf16.msra.mxu0 0
        %4268 = vmatprep.subr.bf16.mxu0 0
        %4269 = vmatpush1.bf16.msra.mxu0 0
        %4270 = vmatprep.subr.bf16.mxu0 0
        %4271 = vmatpush1.bf16.msra.mxu0 0
        %4272 = vmatprep.subr.bf16.mxu0 0
        %4273 = vmatpush1.bf16.msra.mxu0 0
        %4274 = vmatprep.subr.bf16.mxu0 0
        %4275 = vmatpush1.bf16.msra.mxu0 0
        %4276 = vmatprep.subr.bf16.mxu0 0
        %4277 = vmatpush1.bf16.msra.mxu0 0
        %4278 = vmatprep.subr.bf16.mxu0 0
        %4279 = vmatpush1.bf16.msra.mxu0 0
        %4280 = vmatprep.subr.bf16.mxu0 0
        %4281 = vmatpush1.bf16.msra.mxu0 0
        %4282 = vmatprep.subr.bf16.mxu0 0
        %4283 = vmatpush1.bf16.msra.mxu0 0
        %4284 = vmatprep.subr.bf16.mxu0 0
        %4285 = vmatpush1.bf16.msra.mxu0 0
        %4286 = vmatprep.subr.bf16.mxu0 0
        %4287 = vmatpush1.bf16.msra.mxu0 0
        %4288 = vmatprep.subr.bf16.mxu0 0
        %4289 = vmatpush1.bf16.msra.mxu0 0
        %4290 = vmatprep.subr.bf16.mxu0 0
        %4291 = vmatpush1.bf16.msra.mxu0 0
        %4292 = vmatprep.subr.bf16.mxu0 0
        %4293 = vmatpush1.bf16.msra.mxu0 0
        %4294 = vmatprep.mubr.bf16.mxu0 0
        %4295 = vmatmul.mubr.bf16.gmra.mrb[0].mxu0 %v4096
        %v4296 = vpop.f32.mrb[0].mxu0
        %v4297 = vadd.f32 %v3890, %v4296
        %v4298 = vpop.f32.mrb[0].mxu0
        %v4299 = vadd.f32 %v3894, %v4298
        %v4300 = vpop.f32.mrb[0].mxu0
        %v4301 = vpop.f32.mrb[0].mxu0
        %4302 = vdwg.mxu0
        %4303 = vmatprep.subr.bf16.mxu0 %v4042
        %4304 = vmatpush1.bf16.msra.mxu0 %v4041
        %4305 = vmatprep.subr.bf16.mxu0 %v4058
        %4306 = vmatpush1.bf16.msra.mxu0 %v4057
        %4307 = vmatprep.subr.bf16.mxu0 0
        %4308 = vmatpush1.bf16.msra.mxu0 0
        %4309 = vmatprep.subr.bf16.mxu0 0
        %4310 = vmatpush1.bf16.msra.mxu0 0
        %4311 = vmatprep.subr.bf16.mxu0 0
        %4312 = vmatpush1.bf16.msra.mxu0 0
        %4313 = vmatprep.subr.bf16.mxu0 0
        %4314 = vmatpush1.bf16.msra.mxu0 0
        %4315 = vmatprep.subr.bf16.mxu0 0
        %4316 = vmatpush1.bf16.msra.mxu0 0
        %4317 = vmatprep.subr.bf16.mxu0 0
        %4318 = vmatpush1.bf16.msra.mxu0 0
        %4319 = vmatprep.subr.bf16.mxu0 0
        %4320 = vmatpush1.bf16.msra.mxu0 0
        %4321 = vmatprep.subr.bf16.mxu0 0
        %4322 = vmatpush1.bf16.msra.mxu0 0
        %4323 = vmatprep.subr.bf16.mxu0 0
        %4324 = vmatpush1.bf16.msra.mxu0 0
        %4325 = vmatprep.subr.bf16.mxu0 0
        %4326 = vmatpush1.bf16.msra.mxu0 0
        %4327 = vmatprep.subr.bf16.mxu0 0
        %4328 = vmatpush1.bf16.msra.mxu0 0
        %4329 = vmatprep.subr.bf16.mxu0 0
        %4330 = vmatpush1.bf16.msra.mxu0 0
        %4331 = vmatprep.subr.bf16.mxu0 0
        %4332 = vmatpush1.bf16.msra.mxu0 0
        %4333 = vmatprep.subr.bf16.mxu0 0
        %4334 = vmatpush1.bf16.msra.mxu0 0
        %4335 = vmatprep.mubr.bf16.mxu0 0
        %4336 = vmatmul.mubr.bf16.gmra.mrb[0].mxu0 %v4096
        %v4337 = vpop.f32.mrb[0].mxu0
        %v4338 = vadd.f32 %v3898, %v4337
        %v4339 = vpop.f32.mrb[0].mxu0
        %v4340 = vadd.f32 %v3902, %v4339
        %v4341 = vpop.f32.mrb[0].mxu0
        %v4342 = vpop.f32.mrb[0].mxu0
        %4343 = vdwg.mxu0
        %4344 = vmatprep.subr.bf16.mxu0 %v4044
        %4345 = vmatpush1.bf16.msra.mxu0 %v4043
        %4346 = vmatprep.subr.bf16.mxu0 %v4060
        %4347 = vmatpush1.bf16.msra.mxu0 %v4059
        %4348 = vmatprep.subr.bf16.mxu0 0
        %4349 = vmatpush1.bf16.msra.mxu0 0
        %4350 = vmatprep.subr.bf16.mxu0 0
        %4351 = vmatpush1.bf16.msra.mxu0 0
        %4352 = vmatprep.subr.bf16.mxu0 0
        %4353 = vmatpush1.bf16.msra.mxu0 0
        %4354 = vmatprep.subr.bf16.mxu0 0
        %4355 = vmatpush1.bf16.msra.mxu0 0
        %4356 = vmatprep.subr.bf16.mxu0 0
        %4357 = vmatpush1.bf16.msra.mxu0 0
        %4358 = vmatprep.subr.bf16.mxu0 0
        %4359 = vmatpush1.bf16.msra.mxu0 0
        %4360 = vmatprep.subr.bf16.mxu0 0
        %4361 = vmatpush1.bf16.msra.mxu0 0
        %4362 = vmatprep.subr.bf16.mxu0 0
        %4363 = vmatpush1.bf16.msra.mxu0 0
        %4364 = vmatprep.subr.bf16.mxu0 0
        %4365 = vmatpush1.bf16.msra.mxu0 0
        %4366 = vmatprep.subr.bf16.mxu0 0
        %4367 = vmatpush1.bf16.msra.mxu0 0
        %4368 = vmatprep.subr.bf16.mxu0 0
        %4369 = vmatpush1.bf16.msra.mxu0 0
        %4370 = vmatprep.subr.bf16.mxu0 0
        %4371 = vmatpush1.bf16.msra.mxu0 0
        %4372 = vmatprep.subr.bf16.mxu0 0
        %4373 = vmatpush1.bf16.msra.mxu0 0
        %4374 = vmatprep.subr.bf16.mxu0 0
        %4375 = vmatpush1.bf16.msra.mxu0 0
        %4376 = vmatprep.mubr.bf16.mxu0 0
        %4377 = vmatmul.mubr.bf16.gmra.mrb[0].mxu0 %v4096
        %v4378 = vpop.f32.mrb[0].mxu0
        %v4379 = vadd.f32 %v3906, %v4378
        %v4380 = vpop.f32.mrb[0].mxu0
        %v4381 = vadd.f32 %v3910, %v4380
        %v4382 = vpop.f32.mrb[0].mxu0
        %v4383 = vpop.f32.mrb[0].mxu0
        %4384 = vdwg.mxu0
        %4385 = vmatprep.subr.bf16.mxu0 %v4046
        %4386 = vmatpush1.bf16.msra.mxu0 %v4045
        %4387 = vmatprep.subr.bf16.mxu0 %v4062
        %4388 = vmatpush1.bf16.msra.mxu0 %v4061
        %4389 = vmatprep.subr.bf16.mxu0 0
        %4390 = vmatpush1.bf16.msra.mxu0 0
        %4391 = vmatprep.subr.bf16.mxu0 0
        %4392 = vmatpush1.bf16.msra.mxu0 0
        %4393 = vmatprep.subr.bf16.mxu0 0
        %4394 = vmatpush1.bf16.msra.mxu0 0
        %4395 = vmatprep.subr.bf16.mxu0 0
        %4396 = vmatpush1.bf16.msra.mxu0 0
        %4397 = vmatprep.subr.bf16.mxu0 0
        %4398 = vmatpush1.bf16.msra.mxu0 0
        %4399 = vmatprep.subr.bf16.mxu0 0
        %4400 = vmatpush1.bf16.msra.mxu0 0
        %4401 = vmatprep.subr.bf16.mxu0 0
        %4402 = vmatpush1.bf16.msra.mxu0 0
        %4403 = vmatprep.subr.bf16.mxu0 0
        %4404 = vmatpush1.bf16.msra.mxu0 0
        %4405 = vmatprep.subr.bf16.mxu0 0
        %4406 = vmatpush1.bf16.msra.mxu0 0
        %4407 = vmatprep.subr.bf16.mxu0 0
        %4408 = vmatpush1.bf16.msra.mxu0 0
        %4409 = vmatprep.subr.bf16.mxu0 0
        %4410 = vmatpush1.bf16.msra.mxu0 0
        %4411 = vmatprep.subr.bf16.mxu0 0
        %4412 = vmatpush1.bf16.msra.mxu0 0
        %4413 = vmatprep.subr.bf16.mxu0 0
        %4414 = vmatpush1.bf16.msra.mxu0 0
        %4415 = vmatprep.subr.bf16.mxu0 0
        %4416 = vmatpush1.bf16.msra.mxu0 0
        %4417 = vmatprep.mubr.bf16.mxu0 0
        %4418 = vmatmul.mubr.bf16.gmra.mrb[0].mxu0 %v4096
        %v4419 = vpop.f32.mrb[0].mxu0
        %v4420 = vadd.f32 %v3914, %v4419
        %v4421 = vpop.f32.mrb[0].mxu0
        %v4422 = vadd.f32 %v3918, %v4421
        %v4423 = vpop.f32.mrb[0].mxu0
        %v4424 = vpop.f32.mrb[0].mxu0
        %4425 = vdwg.mxu0
        %v4426 = vmax.f32 %v4133, 0.0
        %v4427 = vmax.f32 %v4135, 0.0
        %v4428 = vmax.f32 %v4174, 0.0
        %v4429 = vmax.f32 %v4176, 0.0
        %v4430 = vmax.f32 %v4215, 0.0
        %v4431 = vmax.f32 %v4217, 0.0
        %v4432 = vmax.f32 %v4256, 0.0
        %v4433 = vmax.f32 %v4258, 0.0
        %v4434 = vmax.f32 %v4297, 0.0
        %v4435 = vmax.f32 %v4299, 0.0
        %v4436 = vmax.f32 %v4338, 0.0
        %v4437 = vmax.f32 %v4340, 0.0
        %v4438 = vmax.f32 %v4379, 0.0
        %v4439 = vmax.f32 %v4381, 0.0
        %v4440 = vmax.f32 %v4420, 0.0
        %v4441 = vmax.f32 %v4422, 0.0
        %s4442 = scalar_lea.vmem %s11, 1024
        %v4443 = vld [vmem:[%s4442] sm:$0xf]
        %v4444 = vld [vmem:[%s4442 + $0x4] sm:$0xf]
        %v4445 = vld [vmem:[%s4442 + $0x8] sm:$0xf]
        %v4446 = vld [vmem:[%s4442 + $0xc] sm:$0xf]
        %v4447 = vld [vmem:[%s4442 + $0x10] sm:$0xf]
        %v4448 = vld [vmem:[%s4442 + $0x14] sm:$0xf]
        %v4449 = vld [vmem:[%s4442 + $0x18] sm:$0xf]
        %v4450 = vld [vmem:[%s4442 + $0x1c] sm:$0xf]
        %v4451 = vld [vmem:[%s4442 + $0x20] sm:$0xf]
        %v4452 = vld [vmem:[%s4442 + $0x24] sm:$0xf]
        %v4453 = vld [vmem:[%s4442 + $0x28] sm:$0xf]
        %v4454 = vld [vmem:[%s4442 + $0x2c] sm:$0xf]
        %v4455 = vld [vmem:[%s4442 + $0x30] sm:$0xf]
        %v4456 = vld [vmem:[%s4442 + $0x34] sm:$0xf]
        %v4457 = vld [vmem:[%s4442 + $0x38] sm:$0xf]
        %v4458 = vld [vmem:[%s4442 + $0x3c] sm:$0xf]
        %v4459 = vld [vmem:[%s4442 + $0x40] sm:$0xf]
        %v4460 = vld [vmem:[%s4442 + $0x44] sm:$0xf]
        %v4461 = vld [vmem:[%s4442 + $0x48] sm:$0xf]
        %v4462 = vld [vmem:[%s4442 + $0x4c] sm:$0xf]
        %v4463 = vld [vmem:[%s4442 + $0x50] sm:$0xf]
        %v4464 = vld [vmem:[%s4442 + $0x54] sm:$0xf]
        %v4465 = vld [vmem:[%s4442 + $0x58] sm:$0xf]
        %v4466 = vld [vmem:[%s4442 + $0x5c] sm:$0xf]
        %v4467 = vld [vmem:[%s4442 + $0x60] sm:$0xf]
        %v4468 = vld [vmem:[%s4442 + $0x64] sm:$0xf]
        %v4469 = vld [vmem:[%s4442 + $0x68] sm:$0xf]
        %v4470 = vld [vmem:[%s4442 + $0x6c] sm:$0xf]
        %v4471 = vld [vmem:[%s4442 + $0x70] sm:$0xf]
        %v4472 = vld [vmem:[%s4442 + $0x74] sm:$0xf]
        %v4473 = vld [vmem:[%s4442 + $0x78] sm:$0xf]
        %v4474 = vld [vmem:[%s4442 + $0x7c] sm:$0xf]
        %v4475 = vld [vmem:[%s4442 + $0x80] sm:$0xf]
        %v4476 = vld [vmem:[%s4442 + $0x84] sm:$0xf]
        %v4477 = vld [vmem:[%s4442 + $0x88] sm:$0xf]
        %v4478 = vld [vmem:[%s4442 + $0x8c] sm:$0xf]
        %v4479 = vld [vmem:[%s4442 + $0x90] sm:$0xf]
        %v4480 = vld [vmem:[%s4442 + $0x94] sm:$0xf]
        %v4481 = vld [vmem:[%s4442 + $0x98] sm:$0xf]
        %v4482 = vld [vmem:[%s4442 + $0x9c] sm:$0xf]
        %v4483 = vld [vmem:[%s4442 + $0xa0] sm:$0xf]
        %v4484 = vld [vmem:[%s4442 + $0xa4] sm:$0xf]
        %v4485 = vld [vmem:[%s4442 + $0xa8] sm:$0xf]
        %v4486 = vld [vmem:[%s4442 + $0xac] sm:$0xf]
        %v4487 = vld [vmem:[%s4442 + $0xb0] sm:$0xf]
        %v4488 = vld [vmem:[%s4442 + $0xb4] sm:$0xf]
        %v4489 = vld [vmem:[%s4442 + $0xb8] sm:$0xf]
        %v4490 = vld [vmem:[%s4442 + $0xbc] sm:$0xf]
        %v4491 = vld [vmem:[%s4442 + $0xc0] sm:$0xf]
        %v4492 = vld [vmem:[%s4442 + $0xc4] sm:$0xf]
        %v4493 = vld [vmem:[%s4442 + $0xc8] sm:$0xf]
        %v4494 = vld [vmem:[%s4442 + $0xcc] sm:$0xf]
        %v4495 = vld [vmem:[%s4442 + $0xd0] sm:$0xf]
        %v4496 = vld [vmem:[%s4442 + $0xd4] sm:$0xf]
        %v4497 = vld [vmem:[%s4442 + $0xd8] sm:$0xf]
        %v4498 = vld [vmem:[%s4442 + $0xdc] sm:$0xf]
        %v4499 = vld [vmem:[%s4442 + $0xe0] sm:$0xf]
        %v4500 = vld [vmem:[%s4442 + $0xe4] sm:$0xf]
        %v4501 = vld [vmem:[%s4442 + $0xe8] sm:$0xf]
        %v4502 = vld [vmem:[%s4442 + $0xec] sm:$0xf]
        %v4503 = vld [vmem:[%s4442 + $0xf0] sm:$0xf]
        %v4504 = vld [vmem:[%s4442 + $0xf4] sm:$0xf]
        %v4505 = vld [vmem:[%s4442 + $0xf8] sm:$0xf]
        %v4506 = vld [vmem:[%s4442 + $0xfc] sm:$0xf]
        %v4507 = vld [vmem:[%s4442 + $0x100] sm:$0xf]
        %v4508 = vld [vmem:[%s4442 + $0x104] sm:$0xf]
        %v4509 = vld [vmem:[%s4442 + $0x108] sm:$0xf]
        %v4510 = vld [vmem:[%s4442 + $0x10c] sm:$0xf]
        %v4511 = vld [vmem:[%s4442 + $0x110] sm:$0xf]
        %v4512 = vld [vmem:[%s4442 + $0x114] sm:$0xf]
        %v4513 = vld [vmem:[%s4442 + $0x118] sm:$0xf]
        %v4514 = vld [vmem:[%s4442 + $0x11c] sm:$0xf]
        %v4515 = vld [vmem:[%s4442 + $0x120] sm:$0xf]
        %v4516 = vld [vmem:[%s4442 + $0x124] sm:$0xf]
        %v4517 = vld [vmem:[%s4442 + $0x128] sm:$0xf]
        %v4518 = vld [vmem:[%s4442 + $0x12c] sm:$0xf]
        %v4519 = vld [vmem:[%s4442 + $0x130] sm:$0xf]
        %v4520 = vld [vmem:[%s4442 + $0x134] sm:$0xf]
        %v4521 = vld [vmem:[%s4442 + $0x138] sm:$0xf]
        %v4522 = vld [vmem:[%s4442 + $0x13c] sm:$0xf]
        %v4523 = vld [vmem:[%s4442 + $0x140] sm:$0xf]
        %v4524 = vld [vmem:[%s4442 + $0x144] sm:$0xf]
        %v4525 = vld [vmem:[%s4442 + $0x148] sm:$0xf]
        %v4526 = vld [vmem:[%s4442 + $0x14c] sm:$0xf]
        %v4527 = vld [vmem:[%s4442 + $0x150] sm:$0xf]
        %v4528 = vld [vmem:[%s4442 + $0x154] sm:$0xf]
        %v4529 = vld [vmem:[%s4442 + $0x158] sm:$0xf]
        %v4530 = vld [vmem:[%s4442 + $0x15c] sm:$0xf]
        %v4531 = vld [vmem:[%s4442 + $0x160] sm:$0xf]
        %v4532 = vld [vmem:[%s4442 + $0x164] sm:$0xf]
        %v4533 = vld [vmem:[%s4442 + $0x168] sm:$0xf]
        %v4534 = vld [vmem:[%s4442 + $0x16c] sm:$0xf]
        %v4535 = vld [vmem:[%s4442 + $0x170] sm:$0xf]
        %v4536 = vld [vmem:[%s4442 + $0x174] sm:$0xf]
        %v4537 = vld [vmem:[%s4442 + $0x178] sm:$0xf]
        %v4538 = vld [vmem:[%s4442 + $0x17c] sm:$0xf]
        %v4539 = vld [vmem:[%s4442 + $0x180] sm:$0xf]
        %v4540 = vld [vmem:[%s4442 + $0x184] sm:$0xf]
        %v4541 = vld [vmem:[%s4442 + $0x188] sm:$0xf]
        %v4542 = vld [vmem:[%s4442 + $0x18c] sm:$0xf]
        %v4543 = vld [vmem:[%s4442 + $0x190] sm:$0xf]
        %v4544 = vld [vmem:[%s4442 + $0x194] sm:$0xf]
        %v4545 = vld [vmem:[%s4442 + $0x198] sm:$0xf]
        %v4546 = vld [vmem:[%s4442 + $0x19c] sm:$0xf]
        %v4547 = vld [vmem:[%s4442 + $0x1a0] sm:$0xf]
        %v4548 = vld [vmem:[%s4442 + $0x1a4] sm:$0xf]
        %v4549 = vld [vmem:[%s4442 + $0x1a8] sm:$0xf]
        %v4550 = vld [vmem:[%s4442 + $0x1ac] sm:$0xf]
        %v4551 = vld [vmem:[%s4442 + $0x1b0] sm:$0xf]
        %v4552 = vld [vmem:[%s4442 + $0x1b4] sm:$0xf]
        %v4553 = vld [vmem:[%s4442 + $0x1b8] sm:$0xf]
        %v4554 = vld [vmem:[%s4442 + $0x1bc] sm:$0xf]
        %v4555 = vld [vmem:[%s4442 + $0x1c0] sm:$0xf]
        %v4556 = vld [vmem:[%s4442 + $0x1c4] sm:$0xf]
        %v4557 = vld [vmem:[%s4442 + $0x1c8] sm:$0xf]
        %v4558 = vld [vmem:[%s4442 + $0x1cc] sm:$0xf]
        %v4559 = vld [vmem:[%s4442 + $0x1d0] sm:$0xf]
        %v4560 = vld [vmem:[%s4442 + $0x1d4] sm:$0xf]
        %v4561 = vld [vmem:[%s4442 + $0x1d8] sm:$0xf]
        %v4562 = vld [vmem:[%s4442 + $0x1dc] sm:$0xf]
        %v4563 = vld [vmem:[%s4442 + $0x1e0] sm:$0xf]
        %v4564 = vld [vmem:[%s4442 + $0x1e4] sm:$0xf]
        %v4565 = vld [vmem:[%s4442 + $0x1e8] sm:$0xf]
        %v4566 = vld [vmem:[%s4442 + $0x1ec] sm:$0xf]
        %v4567 = vld [vmem:[%s4442 + $0x1f0] sm:$0xf]
        %v4568 = vld [vmem:[%s4442 + $0x1f4] sm:$0xf]
        %v4569 = vld [vmem:[%s4442 + $0x1f8] sm:$0xf]
        %v4570 = vld [vmem:[%s4442 + $0x1fc] sm:$0xf]
        %v4571 = vld [vmem:[%s4442 + $0x200] sm:$0xf]
        %v4572 = vld [vmem:[%s4442 + $0x204] sm:$0xf]
        %v4573 = vld [vmem:[%s4442 + $0x208] sm:$0xf]
        %v4574 = vld [vmem:[%s4442 + $0x20c] sm:$0xf]
        %v4575 = vld [vmem:[%s4442 + $0x210] sm:$0xf]
        %v4576 = vld [vmem:[%s4442 + $0x214] sm:$0xf]
        %v4577 = vld [vmem:[%s4442 + $0x218] sm:$0xf]
        %v4578 = vld [vmem:[%s4442 + $0x21c] sm:$0xf]
        %v4579 = vld [vmem:[%s4442 + $0x220] sm:$0xf]
        %v4580 = vld [vmem:[%s4442 + $0x224] sm:$0xf]
        %v4581 = vld [vmem:[%s4442 + $0x228] sm:$0xf]
        %v4582 = vld [vmem:[%s4442 + $0x22c] sm:$0xf]
        %v4583 = vld [vmem:[%s4442 + $0x230] sm:$0xf]
        %v4584 = vld [vmem:[%s4442 + $0x234] sm:$0xf]
        %v4585 = vld [vmem:[%s4442 + $0x238] sm:$0xf]
        %v4586 = vld [vmem:[%s4442 + $0x23c] sm:$0xf]
        %v4587 = vld [vmem:[%s4442 + $0x240] sm:$0xf]
        %v4588 = vld [vmem:[%s4442 + $0x244] sm:$0xf]
        %v4589 = vld [vmem:[%s4442 + $0x248] sm:$0xf]
        %v4590 = vld [vmem:[%s4442 + $0x24c] sm:$0xf]
        %v4591 = vld [vmem:[%s4442 + $0x250] sm:$0xf]
        %v4592 = vld [vmem:[%s4442 + $0x254] sm:$0xf]
        %v4593 = vld [vmem:[%s4442 + $0x258] sm:$0xf]
        %v4594 = vld [vmem:[%s4442 + $0x25c] sm:$0xf]
        %v4595 = vld [vmem:[%s4442 + $0x260] sm:$0xf]
        %v4596 = vld [vmem:[%s4442 + $0x264] sm:$0xf]
        %v4597 = vld [vmem:[%s4442 + $0x268] sm:$0xf]
        %v4598 = vld [vmem:[%s4442 + $0x26c] sm:$0xf]
        %v4599 = vld [vmem:[%s4442 + $0x270] sm:$0xf]
        %v4600 = vld [vmem:[%s4442 + $0x274] sm:$0xf]
        %v4601 = vld [vmem:[%s4442 + $0x278] sm:$0xf]
        %v4602 = vld [vmem:[%s4442 + $0x27c] sm:$0xf]
        %v4603 = vld [vmem:[%s4442 + $0x280] sm:$0xf]
        %v4604 = vld [vmem:[%s4442 + $0x284] sm:$0xf]
        %v4605 = vld [vmem:[%s4442 + $0x288] sm:$0xf]
        %v4606 = vld [vmem:[%s4442 + $0x28c] sm:$0xf]
        %v4607 = vld [vmem:[%s4442 + $0x290] sm:$0xf]
        %v4608 = vld [vmem:[%s4442 + $0x294] sm:$0xf]
        %v4609 = vld [vmem:[%s4442 + $0x298] sm:$0xf]
        %v4610 = vld [vmem:[%s4442 + $0x29c] sm:$0xf]
        %v4611 = vld [vmem:[%s4442 + $0x2a0] sm:$0xf]
        %v4612 = vld [vmem:[%s4442 + $0x2a4] sm:$0xf]
        %v4613 = vld [vmem:[%s4442 + $0x2a8] sm:$0xf]
        %v4614 = vld [vmem:[%s4442 + $0x2ac] sm:$0xf]
        %v4615 = vld [vmem:[%s4442 + $0x2b0] sm:$0xf]
        %v4616 = vld [vmem:[%s4442 + $0x2b4] sm:$0xf]
        %v4617 = vld [vmem:[%s4442 + $0x2b8] sm:$0xf]
        %v4618 = vld [vmem:[%s4442 + $0x2bc] sm:$0xf]
        %v4619 = vld [vmem:[%s4442 + $0x2c0] sm:$0xf]
        %v4620 = vld [vmem:[%s4442 + $0x2c4] sm:$0xf]
        %v4621 = vld [vmem:[%s4442 + $0x2c8] sm:$0xf]
        %v4622 = vld [vmem:[%s4442 + $0x2cc] sm:$0xf]
        %v4623 = vld [vmem:[%s4442 + $0x2d0] sm:$0xf]
        %v4624 = vld [vmem:[%s4442 + $0x2d4] sm:$0xf]
        %v4625 = vld [vmem:[%s4442 + $0x2d8] sm:$0xf]
        %v4626 = vld [vmem:[%s4442 + $0x2dc] sm:$0xf]
        %v4627 = vld [vmem:[%s4442 + $0x2e0] sm:$0xf]
        %v4628 = vld [vmem:[%s4442 + $0x2e4] sm:$0xf]
        %v4629 = vld [vmem:[%s4442 + $0x2e8] sm:$0xf]
        %v4630 = vld [vmem:[%s4442 + $0x2ec] sm:$0xf]
        %v4631 = vld [vmem:[%s4442 + $0x2f0] sm:$0xf]
        %v4632 = vld [vmem:[%s4442 + $0x2f4] sm:$0xf]
        %v4633 = vld [vmem:[%s4442 + $0x2f8] sm:$0xf]
        %v4634 = vld [vmem:[%s4442 + $0x2fc] sm:$0xf]
        %v4635 = vld [vmem:[%s4442 + $0x300] sm:$0xf]
        %v4636 = vld [vmem:[%s4442 + $0x304] sm:$0xf]
        %v4637 = vld [vmem:[%s4442 + $0x308] sm:$0xf]
        %v4638 = vld [vmem:[%s4442 + $0x30c] sm:$0xf]
        %v4639 = vld [vmem:[%s4442 + $0x310] sm:$0xf]
        %v4640 = vld [vmem:[%s4442 + $0x314] sm:$0xf]
        %v4641 = vld [vmem:[%s4442 + $0x318] sm:$0xf]
        %v4642 = vld [vmem:[%s4442 + $0x31c] sm:$0xf]
        %v4643 = vld [vmem:[%s4442 + $0x320] sm:$0xf]
        %v4644 = vld [vmem:[%s4442 + $0x324] sm:$0xf]
        %v4645 = vld [vmem:[%s4442 + $0x328] sm:$0xf]
        %v4646 = vld [vmem:[%s4442 + $0x32c] sm:$0xf]
        %v4647 = vld [vmem:[%s4442 + $0x330] sm:$0xf]
        %v4648 = vld [vmem:[%s4442 + $0x334] sm:$0xf]
        %v4649 = vld [vmem:[%s4442 + $0x338] sm:$0xf]
        %v4650 = vld [vmem:[%s4442 + $0x33c] sm:$0xf]
        %v4651 = vld [vmem:[%s4442 + $0x340] sm:$0xf]
        %v4652 = vld [vmem:[%s4442 + $0x344] sm:$0xf]
        %v4653 = vld [vmem:[%s4442 + $0x348] sm:$0xf]
        %v4654 = vld [vmem:[%s4442 + $0x34c] sm:$0xf]
        %v4655 = vld [vmem:[%s4442 + $0x350] sm:$0xf]
        %v4656 = vld [vmem:[%s4442 + $0x354] sm:$0xf]
        %v4657 = vld [vmem:[%s4442 + $0x358] sm:$0xf]
        %v4658 = vld [vmem:[%s4442 + $0x35c] sm:$0xf]
        %v4659 = vld [vmem:[%s4442 + $0x360] sm:$0xf]
        %v4660 = vld [vmem:[%s4442 + $0x364] sm:$0xf]
        %v4661 = vld [vmem:[%s4442 + $0x368] sm:$0xf]
        %v4662 = vld [vmem:[%s4442 + $0x36c] sm:$0xf]
        %v4663 = vld [vmem:[%s4442 + $0x370] sm:$0xf]
        %v4664 = vld [vmem:[%s4442 + $0x374] sm:$0xf]
        %v4665 = vld [vmem:[%s4442 + $0x378] sm:$0xf]
        %v4666 = vld [vmem:[%s4442 + $0x37c] sm:$0xf]
        %v4667 = vld [vmem:[%s4442 + $0x380] sm:$0xf]
        %v4668 = vld [vmem:[%s4442 + $0x384] sm:$0xf]
        %v4669 = vld [vmem:[%s4442 + $0x388] sm:$0xf]
        %v4670 = vld [vmem:[%s4442 + $0x38c] sm:$0xf]
        %v4671 = vld [vmem:[%s4442 + $0x390] sm:$0xf]
        %v4672 = vld [vmem:[%s4442 + $0x394] sm:$0xf]
        %v4673 = vld [vmem:[%s4442 + $0x398] sm:$0xf]
        %v4674 = vld [vmem:[%s4442 + $0x39c] sm:$0xf]
        %v4675 = vld [vmem:[%s4442 + $0x3a0] sm:$0xf]
        %v4676 = vld [vmem:[%s4442 + $0x3a4] sm:$0xf]
        %v4677 = vld [vmem:[%s4442 + $0x3a8] sm:$0xf]
        %v4678 = vld [vmem:[%s4442 + $0x3ac] sm:$0xf]
        %v4679 = vld [vmem:[%s4442 + $0x3b0] sm:$0xf]
        %v4680 = vld [vmem:[%s4442 + $0x3b4] sm:$0xf]
        %v4681 = vld [vmem:[%s4442 + $0x3b8] sm:$0xf]
        %v4682 = vld [vmem:[%s4442 + $0x3bc] sm:$0xf]
        %v4683 = vld [vmem:[%s4442 + $0x3c0] sm:$0xf]
        %v4684 = vld [vmem:[%s4442 + $0x3c4] sm:$0xf]
        %v4685 = vld [vmem:[%s4442 + $0x3c8] sm:$0xf]
        %v4686 = vld [vmem:[%s4442 + $0x3cc] sm:$0xf]
        %v4687 = vld [vmem:[%s4442 + $0x3d0] sm:$0xf]
        %v4688 = vld [vmem:[%s4442 + $0x3d4] sm:$0xf]
        %v4689 = vld [vmem:[%s4442 + $0x3d8] sm:$0xf]
        %v4690 = vld [vmem:[%s4442 + $0x3dc] sm:$0xf]
        %v4691 = vld [vmem:[%s4442 + $0x3e0] sm:$0xf]
        %v4692 = vld [vmem:[%s4442 + $0x3e4] sm:$0xf]
        %v4693 = vld [vmem:[%s4442 + $0x3e8] sm:$0xf]
        %v4694 = vld [vmem:[%s4442 + $0x3ec] sm:$0xf]
        %v4695 = vld [vmem:[%s4442 + $0x3f0] sm:$0xf]
        %v4696 = vld [vmem:[%s4442 + $0x3f4] sm:$0xf]
        %v4697 = vld [vmem:[%s4442 + $0x3f8] sm:$0xf]
        %v4698 = vld [vmem:[%s4442 + $0x3fc] sm:$0xf]
        %v4699 = vpack.c.bf16 %v4426, %v4426
        %v4700 = vpack.c.bf16 %v4427, %v4427
        %v4701 = vpack.c.bf16 %v4428, %v4428
        %v4702 = vpack.c.bf16 %v4429, %v4429
        %v4703 = vpack.c.bf16 %v4430, %v4430
        %v4704 = vpack.c.bf16 %v4431, %v4431
        %v4705 = vpack.c.bf16 %v4432, %v4432
        %v4706 = vpack.c.bf16 %v4433, %v4433
        %v4707 = vpack.c.bf16 %v4434, %v4434
        %v4708 = vpack.c.bf16 %v4435, %v4435
        %v4709 = vpack.c.bf16 %v4436, %v4436
        %v4710 = vpack.c.bf16 %v4437, %v4437
        %v4711 = vpack.c.bf16 %v4438, %v4438
        %v4712 = vpack.c.bf16 %v4439, %v4439
        %v4713 = vpack.c.bf16 %v4440, %v4440
        %v4714 = vpack.c.bf16 %v4441, %v4441
        %s4715 = scalar_lea.vmem %s12, 1
        %v4716 = vld [vmem:[%s4715] sm:$0x1]
        %v4718 = vlaneseq
        %v4719 = vshrl.u32 %v4718, 7
        %v4720 = vsub.s32 0, %v4719
        %v4721 = vrot.slane %v4716, %v4720
        %v4979 = vunpack.c.l.b16 %v4443
        %v4980 = vunpack.c.l.b16 %v4444
        %v4981 = vunpack.c.l.b16 %v4445
        %v4982 = vunpack.c.l.b16 %v4446
        %v4983 = vunpack.c.l.b16 %v4447
        %v4984 = vunpack.c.l.b16 %v4448
        %v4985 = vunpack.c.l.b16 %v4449
        %v4986 = vunpack.c.l.b16 %v4450
        %v4987 = vunpack.c.l.b16 %v4451
        %v4988 = vunpack.c.l.b16 %v4452
        %v4989 = vunpack.c.l.b16 %v4453
        %v4990 = vunpack.c.l.b16 %v4454
        %v4991 = vunpack.c.l.b16 %v4455
        %v4992 = vunpack.c.l.b16 %v4456
        %v4993 = vunpack.c.l.b16 %v4457
        %v4994 = vunpack.c.l.b16 %v4458
        %v4995 = vunpack.c.l.b16 %v4459
        %v4996 = vunpack.c.l.b16 %v4460
        %v4997 = vunpack.c.l.b16 %v4461
        %v4998 = vunpack.c.l.b16 %v4462
        %v4999 = vunpack.c.l.b16 %v4463
        %v5000 = vunpack.c.l.b16 %v4464
        %v5001 = vunpack.c.l.b16 %v4465
        %v5002 = vunpack.c.l.b16 %v4466
        %v5003 = vunpack.c.l.b16 %v4467
        %v5004 = vunpack.c.l.b16 %v4468
        %v5005 = vunpack.c.l.b16 %v4469
        %v5006 = vunpack.c.l.b16 %v4470
        %v5007 = vunpack.c.l.b16 %v4471
        %v5008 = vunpack.c.l.b16 %v4472
        %v5009 = vunpack.c.l.b16 %v4473
        %v5010 = vunpack.c.l.b16 %v4474
        %v5011 = vunpack.c.l.b16 %v4475
        %v5012 = vunpack.c.l.b16 %v4476
        %v5013 = vunpack.c.l.b16 %v4477
        %v5014 = vunpack.c.l.b16 %v4478
        %v5015 = vunpack.c.l.b16 %v4479
        %v5016 = vunpack.c.l.b16 %v4480
        %v5017 = vunpack.c.l.b16 %v4481
        %v5018 = vunpack.c.l.b16 %v4482
        %v5019 = vunpack.c.l.b16 %v4483
        %v5020 = vunpack.c.l.b16 %v4484
        %v5021 = vunpack.c.l.b16 %v4485
        %v5022 = vunpack.c.l.b16 %v4486
        %v5023 = vunpack.c.l.b16 %v4487
        %v5024 = vunpack.c.l.b16 %v4488
        %v5025 = vunpack.c.l.b16 %v4489
        %v5026 = vunpack.c.l.b16 %v4490
        %v5027 = vunpack.c.l.b16 %v4491
        %v5028 = vunpack.c.l.b16 %v4492
        %v5029 = vunpack.c.l.b16 %v4493
        %v5030 = vunpack.c.l.b16 %v4494
        %v5031 = vunpack.c.l.b16 %v4495
        %v5032 = vunpack.c.l.b16 %v4496
        %v5033 = vunpack.c.l.b16 %v4497
        %v5034 = vunpack.c.l.b16 %v4498
        %v5035 = vunpack.c.l.b16 %v4499
        %v5036 = vunpack.c.l.b16 %v4500
        %v5037 = vunpack.c.l.b16 %v4501
        %v5038 = vunpack.c.l.b16 %v4502
        %v5039 = vunpack.c.l.b16 %v4503
        %v5040 = vunpack.c.l.b16 %v4504
        %v5041 = vunpack.c.l.b16 %v4505
        %v5042 = vunpack.c.l.b16 %v4506
        %v5043 = vunpack.c.l.b16 %v4507
        %v5044 = vunpack.c.l.b16 %v4508
        %v5045 = vunpack.c.l.b16 %v4509
        %v5046 = vunpack.c.l.b16 %v4510
        %v5047 = vunpack.c.l.b16 %v4511
        %v5048 = vunpack.c.l.b16 %v4512
        %v5049 = vunpack.c.l.b16 %v4513
        %v5050 = vunpack.c.l.b16 %v4514
        %v5051 = vunpack.c.l.b16 %v4515
        %v5052 = vunpack.c.l.b16 %v4516
        %v5053 = vunpack.c.l.b16 %v4517
        %v5054 = vunpack.c.l.b16 %v4518
        %v5055 = vunpack.c.l.b16 %v4519
        %v5056 = vunpack.c.l.b16 %v4520
        %v5057 = vunpack.c.l.b16 %v4521
        %v5058 = vunpack.c.l.b16 %v4522
        %v5059 = vunpack.c.l.b16 %v4523
        %v5060 = vunpack.c.l.b16 %v4524
        %v5061 = vunpack.c.l.b16 %v4525
        %v5062 = vunpack.c.l.b16 %v4526
        %v5063 = vunpack.c.l.b16 %v4527
        %v5064 = vunpack.c.l.b16 %v4528
        %v5065 = vunpack.c.l.b16 %v4529
        %v5066 = vunpack.c.l.b16 %v4530
        %v5067 = vunpack.c.l.b16 %v4531
        %v5068 = vunpack.c.l.b16 %v4532
        %v5069 = vunpack.c.l.b16 %v4533
        %v5070 = vunpack.c.l.b16 %v4534
        %v5071 = vunpack.c.l.b16 %v4535
        %v5072 = vunpack.c.l.b16 %v4536
        %v5073 = vunpack.c.l.b16 %v4537
        %v5074 = vunpack.c.l.b16 %v4538
        %v5075 = vunpack.c.l.b16 %v4539
        %v5076 = vunpack.c.l.b16 %v4540
        %v5077 = vunpack.c.l.b16 %v4541
        %v5078 = vunpack.c.l.b16 %v4542
        %v5079 = vunpack.c.l.b16 %v4543
        %v5080 = vunpack.c.l.b16 %v4544
        %v5081 = vunpack.c.l.b16 %v4545
        %v5082 = vunpack.c.l.b16 %v4546
        %v5083 = vunpack.c.l.b16 %v4547
        %v5084 = vunpack.c.l.b16 %v4548
        %v5085 = vunpack.c.l.b16 %v4549
        %v5086 = vunpack.c.l.b16 %v4550
        %v5087 = vunpack.c.l.b16 %v4551
        %v5088 = vunpack.c.l.b16 %v4552
        %v5089 = vunpack.c.l.b16 %v4553
        %v5090 = vunpack.c.l.b16 %v4554
        %v5091 = vunpack.c.l.b16 %v4555
        %v5092 = vunpack.c.l.b16 %v4556
        %v5093 = vunpack.c.l.b16 %v4557
        %v5094 = vunpack.c.l.b16 %v4558
        %v5095 = vunpack.c.l.b16 %v4559
        %v5096 = vunpack.c.l.b16 %v4560
        %v5097 = vunpack.c.l.b16 %v4561
        %v5098 = vunpack.c.l.b16 %v4562
        %v5099 = vunpack.c.l.b16 %v4563
        %v5100 = vunpack.c.l.b16 %v4564
        %v5101 = vunpack.c.l.b16 %v4565
        %v5102 = vunpack.c.l.b16 %v4566
        %v5103 = vunpack.c.l.b16 %v4567
        %v5104 = vunpack.c.l.b16 %v4568
        %v5105 = vunpack.c.l.b16 %v4569
        %v5106 = vunpack.c.l.b16 %v4570
        %v5107 = vunpack.c.l.b16 %v4571
        %v5108 = vunpack.c.l.b16 %v4572
        %v5109 = vunpack.c.l.b16 %v4573
        %v5110 = vunpack.c.l.b16 %v4574
        %v5111 = vunpack.c.l.b16 %v4575
        %v5112 = vunpack.c.l.b16 %v4576
        %v5113 = vunpack.c.l.b16 %v4577
        %v5114 = vunpack.c.l.b16 %v4578
        %v5115 = vunpack.c.l.b16 %v4579
        %v5116 = vunpack.c.l.b16 %v4580
        %v5117 = vunpack.c.l.b16 %v4581
        %v5118 = vunpack.c.l.b16 %v4582
        %v5119 = vunpack.c.l.b16 %v4583
        %v5120 = vunpack.c.l.b16 %v4584
        %v5121 = vunpack.c.l.b16 %v4585
        %v5122 = vunpack.c.l.b16 %v4586
        %v5123 = vunpack.c.l.b16 %v4587
        %v5124 = vunpack.c.l.b16 %v4588
        %v5125 = vunpack.c.l.b16 %v4589
        %v5126 = vunpack.c.l.b16 %v4590
        %v5127 = vunpack.c.l.b16 %v4591
        %v5128 = vunpack.c.l.b16 %v4592
        %v5129 = vunpack.c.l.b16 %v4593
        %v5130 = vunpack.c.l.b16 %v4594
        %v5131 = vunpack.c.l.b16 %v4595
        %v5132 = vunpack.c.l.b16 %v4596
        %v5133 = vunpack.c.l.b16 %v4597
        %v5134 = vunpack.c.l.b16 %v4598
        %v5135 = vunpack.c.l.b16 %v4599
        %v5136 = vunpack.c.l.b16 %v4600
        %v5137 = vunpack.c.l.b16 %v4601
        %v5138 = vunpack.c.l.b16 %v4602
        %v5139 = vunpack.c.l.b16 %v4603
        %v5140 = vunpack.c.l.b16 %v4604
        %v5141 = vunpack.c.l.b16 %v4605
        %v5142 = vunpack.c.l.b16 %v4606
        %v5143 = vunpack.c.l.b16 %v4607
        %v5144 = vunpack.c.l.b16 %v4608
        %v5145 = vunpack.c.l.b16 %v4609
        %v5146 = vunpack.c.l.b16 %v4610
        %v5147 = vunpack.c.l.b16 %v4611
        %v5148 = vunpack.c.l.b16 %v4612
        %v5149 = vunpack.c.l.b16 %v4613
        %v5150 = vunpack.c.l.b16 %v4614
        %v5151 = vunpack.c.l.b16 %v4615
        %v5152 = vunpack.c.l.b16 %v4616
        %v5153 = vunpack.c.l.b16 %v4617
        %v5154 = vunpack.c.l.b16 %v4618
        %v5155 = vunpack.c.l.b16 %v4619
        %v5156 = vunpack.c.l.b16 %v4620
        %v5157 = vunpack.c.l.b16 %v4621
        %v5158 = vunpack.c.l.b16 %v4622
        %v5159 = vunpack.c.l.b16 %v4623
        %v5160 = vunpack.c.l.b16 %v4624
        %v5161 = vunpack.c.l.b16 %v4625
        %v5162 = vunpack.c.l.b16 %v4626
        %v5163 = vunpack.c.l.b16 %v4627
        %v5164 = vunpack.c.l.b16 %v4628
        %v5165 = vunpack.c.l.b16 %v4629
        %v5166 = vunpack.c.l.b16 %v4630
        %v5167 = vunpack.c.l.b16 %v4631
        %v5168 = vunpack.c.l.b16 %v4632
        %v5169 = vunpack.c.l.b16 %v4633
        %v5170 = vunpack.c.l.b16 %v4634
        %v5171 = vunpack.c.l.b16 %v4635
        %v5172 = vunpack.c.l.b16 %v4636
        %v5173 = vunpack.c.l.b16 %v4637
        %v5174 = vunpack.c.l.b16 %v4638
        %v5175 = vunpack.c.l.b16 %v4639
        %v5176 = vunpack.c.l.b16 %v4640
        %v5177 = vunpack.c.l.b16 %v4641
        %v5178 = vunpack.c.l.b16 %v4642
        %v5179 = vunpack.c.l.b16 %v4643
        %v5180 = vunpack.c.l.b16 %v4644
        %v5181 = vunpack.c.l.b16 %v4645
        %v5182 = vunpack.c.l.b16 %v4646
        %v5183 = vunpack.c.l.b16 %v4647
        %v5184 = vunpack.c.l.b16 %v4648
        %v5185 = vunpack.c.l.b16 %v4649
        %v5186 = vunpack.c.l.b16 %v4650
        %v5187 = vunpack.c.l.b16 %v4651
        %v5188 = vunpack.c.l.b16 %v4652
        %v5189 = vunpack.c.l.b16 %v4653
        %v5190 = vunpack.c.l.b16 %v4654
        %v5191 = vunpack.c.l.b16 %v4655
        %v5192 = vunpack.c.l.b16 %v4656
        %v5193 = vunpack.c.l.b16 %v4657
        %v5194 = vunpack.c.l.b16 %v4658
        %v5195 = vunpack.c.l.b16 %v4659
        %v5196 = vunpack.c.l.b16 %v4660
        %v5197 = vunpack.c.l.b16 %v4661
        %v5198 = vunpack.c.l.b16 %v4662
        %v5199 = vunpack.c.l.b16 %v4663
        %v5200 = vunpack.c.l.b16 %v4664
        %v5201 = vunpack.c.l.b16 %v4665
        %v5202 = vunpack.c.l.b16 %v4666
        %v5203 = vunpack.c.l.b16 %v4667
        %v5204 = vunpack.c.l.b16 %v4668
        %v5205 = vunpack.c.l.b16 %v4669
        %v5206 = vunpack.c.l.b16 %v4670
        %v5207 = vunpack.c.l.b16 %v4671
        %v5208 = vunpack.c.l.b16 %v4672
        %v5209 = vunpack.c.l.b16 %v4673
        %v5210 = vunpack.c.l.b16 %v4674
        %v5211 = vunpack.c.l.b16 %v4675
        %v5212 = vunpack.c.l.b16 %v4676
        %v5213 = vunpack.c.l.b16 %v4677
        %v5214 = vunpack.c.l.b16 %v4678
        %v5215 = vunpack.c.l.b16 %v4679
        %v5216 = vunpack.c.l.b16 %v4680
        %v5217 = vunpack.c.l.b16 %v4681
        %v5218 = vunpack.c.l.b16 %v4682
        %v5219 = vunpack.c.l.b16 %v4683
        %v5220 = vunpack.c.l.b16 %v4684
        %v5221 = vunpack.c.l.b16 %v4685
        %v5222 = vunpack.c.l.b16 %v4686
        %v5223 = vunpack.c.l.b16 %v4687
        %v5224 = vunpack.c.l.b16 %v4688
        %v5225 = vunpack.c.l.b16 %v4689
        %v5226 = vunpack.c.l.b16 %v4690
        %v5227 = vunpack.c.l.b16 %v4691
        %v5228 = vunpack.c.l.b16 %v4692
        %v5229 = vunpack.c.l.b16 %v4693
        %v5230 = vunpack.c.l.b16 %v4694
        %v5231 = vunpack.c.l.b16 %v4695
        %v5232 = vunpack.c.l.b16 %v4696
        %v5233 = vunpack.c.l.b16 %v4697
        %v5234 = vunpack.c.l.b16 %v4698
        %v5235 = vpack.c.b16 %v4980, %v4979
        %v5236 = vpack.c.b16 %v4982, %v4981
        %v5237 = vpack.c.b16 %v4984, %v4983
        %v5238 = vpack.c.b16 %v4986, %v4985
        %v5239 = vpack.c.b16 %v4988, %v4987
        %v5240 = vpack.c.b16 %v4990, %v4989
        %v5241 = vpack.c.b16 %v4992, %v4991
        %v5242 = vpack.c.b16 %v4994, %v4993
        %v5243 = vpack.c.b16 %v4996, %v4995
        %v5244 = vpack.c.b16 %v4998, %v4997
        %v5245 = vpack.c.b16 %v5000, %v4999
        %v5246 = vpack.c.b16 %v5002, %v5001
        %v5247 = vpack.c.b16 %v5004, %v5003
        %v5248 = vpack.c.b16 %v5006, %v5005
        %v5249 = vpack.c.b16 %v5008, %v5007
        %v5250 = vpack.c.b16 %v5010, %v5009
        %v5251 = vpack.c.b16 %v5012, %v5011
        %v5252 = vpack.c.b16 %v5014, %v5013
        %v5253 = vpack.c.b16 %v5016, %v5015
        %v5254 = vpack.c.b16 %v5018, %v5017
        %v5255 = vpack.c.b16 %v5020, %v5019
        %v5256 = vpack.c.b16 %v5022, %v5021
        %v5257 = vpack.c.b16 %v5024, %v5023
        %v5258 = vpack.c.b16 %v5026, %v5025
        %v5259 = vpack.c.b16 %v5028, %v5027
        %v5260 = vpack.c.b16 %v5030, %v5029
        %v5261 = vpack.c.b16 %v5032, %v5031
        %v5262 = vpack.c.b16 %v5034, %v5033
        %v5263 = vpack.c.b16 %v5036, %v5035
        %v5264 = vpack.c.b16 %v5038, %v5037
        %v5265 = vpack.c.b16 %v5040, %v5039
        %v5266 = vpack.c.b16 %v5042, %v5041
        %v5267 = vpack.c.b16 %v5044, %v5043
        %v5268 = vpack.c.b16 %v5046, %v5045
        %v5269 = vpack.c.b16 %v5048, %v5047
        %v5270 = vpack.c.b16 %v5050, %v5049
        %v5271 = vpack.c.b16 %v5052, %v5051
        %v5272 = vpack.c.b16 %v5054, %v5053
        %v5273 = vpack.c.b16 %v5056, %v5055
        %v5274 = vpack.c.b16 %v5058, %v5057
        %v5275 = vpack.c.b16 %v5060, %v5059
        %v5276 = vpack.c.b16 %v5062, %v5061
        %v5277 = vpack.c.b16 %v5064, %v5063
        %v5278 = vpack.c.b16 %v5066, %v5065
        %v5279 = vpack.c.b16 %v5068, %v5067
        %v5280 = vpack.c.b16 %v5070, %v5069
        %v5281 = vpack.c.b16 %v5072, %v5071
        %v5282 = vpack.c.b16 %v5074, %v5073
        %v5283 = vpack.c.b16 %v5076, %v5075
        %v5284 = vpack.c.b16 %v5078, %v5077
        %v5285 = vpack.c.b16 %v5080, %v5079
        %v5286 = vpack.c.b16 %v5082, %v5081
        %v5287 = vpack.c.b16 %v5084, %v5083
        %v5288 = vpack.c.b16 %v5086, %v5085
        %v5289 = vpack.c.b16 %v5088, %v5087
        %v5290 = vpack.c.b16 %v5090, %v5089
        %v5291 = vpack.c.b16 %v5092, %v5091
        %v5292 = vpack.c.b16 %v5094, %v5093
        %v5293 = vpack.c.b16 %v5096, %v5095
        %v5294 = vpack.c.b16 %v5098, %v5097
        %v5295 = vpack.c.b16 %v5100, %v5099
        %v5296 = vpack.c.b16 %v5102, %v5101
        %v5297 = vpack.c.b16 %v5104, %v5103
        %v5298 = vpack.c.b16 %v5106, %v5105
        %v5299 = vpack.c.b16 %v5108, %v5107
        %v5300 = vpack.c.b16 %v5110, %v5109
        %v5301 = vpack.c.b16 %v5112, %v5111
        %v5302 = vpack.c.b16 %v5114, %v5113
        %v5303 = vpack.c.b16 %v5116, %v5115
        %v5304 = vpack.c.b16 %v5118, %v5117
        %v5305 = vpack.c.b16 %v5120, %v5119
        %v5306 = vpack.c.b16 %v5122, %v5121
        %v5307 = vpack.c.b16 %v5124, %v5123
        %v5308 = vpack.c.b16 %v5126, %v5125
        %v5309 = vpack.c.b16 %v5128, %v5127
        %v5310 = vpack.c.b16 %v5130, %v5129
        %v5311 = vpack.c.b16 %v5132, %v5131
        %v5312 = vpack.c.b16 %v5134, %v5133
        %v5313 = vpack.c.b16 %v5136, %v5135
        %v5314 = vpack.c.b16 %v5138, %v5137
        %v5315 = vpack.c.b16 %v5140, %v5139
        %v5316 = vpack.c.b16 %v5142, %v5141
        %v5317 = vpack.c.b16 %v5144, %v5143
        %v5318 = vpack.c.b16 %v5146, %v5145
        %v5319 = vpack.c.b16 %v5148, %v5147
        %v5320 = vpack.c.b16 %v5150, %v5149
        %v5321 = vpack.c.b16 %v5152, %v5151
        %v5322 = vpack.c.b16 %v5154, %v5153
        %v5323 = vpack.c.b16 %v5156, %v5155
        %v5324 = vpack.c.b16 %v5158, %v5157
        %v5325 = vpack.c.b16 %v5160, %v5159
        %v5326 = vpack.c.b16 %v5162, %v5161
        %v5327 = vpack.c.b16 %v5164, %v5163
        %v5328 = vpack.c.b16 %v5166, %v5165
        %v5329 = vpack.c.b16 %v5168, %v5167
        %v5330 = vpack.c.b16 %v5170, %v5169
        %v5331 = vpack.c.b16 %v5172, %v5171
        %v5332 = vpack.c.b16 %v5174, %v5173
        %v5333 = vpack.c.b16 %v5176, %v5175
        %v5334 = vpack.c.b16 %v5178, %v5177
        %v5335 = vpack.c.b16 %v5180, %v5179
        %v5336 = vpack.c.b16 %v5182, %v5181
        %v5337 = vpack.c.b16 %v5184, %v5183
        %v5338 = vpack.c.b16 %v5186, %v5185
        %v5339 = vpack.c.b16 %v5188, %v5187
        %v5340 = vpack.c.b16 %v5190, %v5189
        %v5341 = vpack.c.b16 %v5192, %v5191
        %v5342 = vpack.c.b16 %v5194, %v5193
        %v5343 = vpack.c.b16 %v5196, %v5195
        %v5344 = vpack.c.b16 %v5198, %v5197
        %v5345 = vpack.c.b16 %v5200, %v5199
        %v5346 = vpack.c.b16 %v5202, %v5201
        %v5347 = vpack.c.b16 %v5204, %v5203
        %v5348 = vpack.c.b16 %v5206, %v5205
        %v5349 = vpack.c.b16 %v5208, %v5207
        %v5350 = vpack.c.b16 %v5210, %v5209
        %v5351 = vpack.c.b16 %v5212, %v5211
        %v5352 = vpack.c.b16 %v5214, %v5213
        %v5353 = vpack.c.b16 %v5216, %v5215
        %v5354 = vpack.c.b16 %v5218, %v5217
        %v5355 = vpack.c.b16 %v5220, %v5219
        %v5356 = vpack.c.b16 %v5222, %v5221
        %v5357 = vpack.c.b16 %v5224, %v5223
        %v5358 = vpack.c.b16 %v5226, %v5225
        %v5359 = vpack.c.b16 %v5228, %v5227
        %v5360 = vpack.c.b16 %v5230, %v5229
        %v5361 = vpack.c.b16 %v5232, %v5231
        %v5362 = vpack.c.b16 %v5234, %v5233
        %5491 = vmatprep.subr.bf16.mxu0 0
        %5492 = vmatpush1.bf16.msra.mxu0 %v5235
        %5493 = vmatprep.subr.bf16.mxu0 0
        %5494 = vmatpush1.bf16.msra.mxu0 %v5236
        %5495 = vmatprep.subr.bf16.mxu0 0
        %5496 = vmatpush1.bf16.msra.mxu0 %v5237
        %5497 = vmatprep.subr.bf16.mxu0 0
        %5498 = vmatpush1.bf16.msra.mxu0 %v5238
        %5499 = vmatprep.subr.bf16.mxu0 0
        %5500 = vmatpush1.bf16.msra.mxu0 %v5239
        %5501 = vmatprep.subr.bf16.mxu0 0
        %5502 = vmatpush1.bf16.msra.mxu0 %v5240
        %5503 = vmatprep.subr.bf16.mxu0 0
        %5504 = vmatpush1.bf16.msra.mxu0 %v5241
        %5505 = vmatprep.subr.bf16.mxu0 0
        %5506 = vmatpush1.bf16.msra.mxu0 %v5242
        %5507 = vmatprep.subr.bf16.mxu0 0
        %5508 = vmatpush1.bf16.msra.mxu0 %v5243
        %5509 = vmatprep.subr.bf16.mxu0 0
        %5510 = vmatpush1.bf16.msra.mxu0 %v5244
        %5511 = vmatprep.subr.bf16.mxu0 0
        %5512 = vmatpush1.bf16.msra.mxu0 %v5245
        %5513 = vmatprep.subr.bf16.mxu0 0
        %5514 = vmatpush1.bf16.msra.mxu0 %v5246
        %5515 = vmatprep.subr.bf16.mxu0 0
        %5516 = vmatpush1.bf16.msra.mxu0 %v5247
        %5517 = vmatprep.subr.bf16.mxu0 0
        %5518 = vmatpush1.bf16.msra.mxu0 %v5248
        %5519 = vmatprep.subr.bf16.mxu0 0
        %5520 = vmatpush1.bf16.msra.mxu0 %v5249
        %5521 = vmatprep.subr.bf16.mxu0 0
        %5522 = vmatpush1.bf16.msra.mxu0 %v5250
        %5523 = vmatprep.mubr.bf16.mxu0 %v4700
        %5524 = vmatmul.mubr.bf16.gmra.mrb[0].mxu0 %v4699
        %v5525 = vpop.f32.mrb[0].mxu0
        %v5526 = vadd.f32 %v4721, %v5525
        %v5527 = vpop.f32.mrb[0].mxu0
        %v5528 = vpop.f32.mrb[0].mxu0
        %v5529 = vpop.f32.mrb[0].mxu0
        %5530 = vdwg.mxu0
        %5531 = vmatprep.subr.bf16.mxu0 0
        %5532 = vmatpush1.bf16.msra.mxu0 %v5251
        %5533 = vmatprep.subr.bf16.mxu0 0
        %5534 = vmatpush1.bf16.msra.mxu0 %v5252
        %5535 = vmatprep.subr.bf16.mxu0 0
        %5536 = vmatpush1.bf16.msra.mxu0 %v5253
        %5537 = vmatprep.subr.bf16.mxu0 0
        %5538 = vmatpush1.bf16.msra.mxu0 %v5254
        %5539 = vmatprep.subr.bf16.mxu0 0
        %5540 = vmatpush1.bf16.msra.mxu0 %v5255
        %5541 = vmatprep.subr.bf16.mxu0 0
        %5542 = vmatpush1.bf16.msra.mxu0 %v5256
        %5543 = vmatprep.subr.bf16.mxu0 0
        %5544 = vmatpush1.bf16.msra.mxu0 %v5257
        %5545 = vmatprep.subr.bf16.mxu0 0
        %5546 = vmatpush1.bf16.msra.mxu0 %v5258
        %5547 = vmatprep.subr.bf16.mxu0 0
        %5548 = vmatpush1.bf16.msra.mxu0 %v5259
        %5549 = vmatprep.subr.bf16.mxu0 0
        %5550 = vmatpush1.bf16.msra.mxu0 %v5260
        %5551 = vmatprep.subr.bf16.mxu0 0
        %5552 = vmatpush1.bf16.msra.mxu0 %v5261
        %5553 = vmatprep.subr.bf16.mxu0 0
        %5554 = vmatpush1.bf16.msra.mxu0 %v5262
        %5555 = vmatprep.subr.bf16.mxu0 0
        %5556 = vmatpush1.bf16.msra.mxu0 %v5263
        %5557 = vmatprep.subr.bf16.mxu0 0
        %5558 = vmatpush1.bf16.msra.mxu0 %v5264
        %5559 = vmatprep.subr.bf16.mxu0 0
        %5560 = vmatpush1.bf16.msra.mxu0 %v5265
        %5561 = vmatprep.subr.bf16.mxu0 0
        %5562 = vmatpush1.bf16.msra.mxu0 %v5266
        %5563 = vmatprep.mubr.bf16.mxu0 %v4702
        %5564 = vmatmul.mubr.bf16.gmra.mrb[0].mxu0 %v4701
        %v5565 = vpop.f32.mrb[0].mxu0
        %v5566 = vadd.f32 %v5526, %v5565
        %v5567 = vpop.f32.mrb[0].mxu0
        %v5568 = vpop.f32.mrb[0].mxu0
        %v5569 = vpop.f32.mrb[0].mxu0
        %5570 = vdwg.mxu0
        %5571 = vmatprep.subr.bf16.mxu0 0
        %5572 = vmatpush1.bf16.msra.mxu0 %v5267
        %5573 = vmatprep.subr.bf16.mxu0 0
        %5574 = vmatpush1.bf16.msra.mxu0 %v5268
        %5575 = vmatprep.subr.bf16.mxu0 0
        %5576 = vmatpush1.bf16.msra.mxu0 %v5269
        %5577 = vmatprep.subr.bf16.mxu0 0
        %5578 = vmatpush1.bf16.msra.mxu0 %v5270
        %5579 = vmatprep.subr.bf16.mxu0 0
        %5580 = vmatpush1.bf16.msra.mxu0 %v5271
        %5581 = vmatprep.subr.bf16.mxu0 0
        %5582 = vmatpush1.bf16.msra.mxu0 %v5272
        %5583 = vmatprep.subr.bf16.mxu0 0
        %5584 = vmatpush1.bf16.msra.mxu0 %v5273
        %5585 = vmatprep.subr.bf16.mxu0 0
        %5586 = vmatpush1.bf16.msra.mxu0 %v5274
        %5587 = vmatprep.subr.bf16.mxu0 0
        %5588 = vmatpush1.bf16.msra.mxu0 %v5275
        %5589 = vmatprep.subr.bf16.mxu0 0
        %5590 = vmatpush1.bf16.msra.mxu0 %v5276
        %5591 = vmatprep.subr.bf16.mxu0 0
        %5592 = vmatpush1.bf16.msra.mxu0 %v5277
        %5593 = vmatprep.subr.bf16.mxu0 0
        %5594 = vmatpush1.bf16.msra.mxu0 %v5278
        %5595 = vmatprep.subr.bf16.mxu0 0
        %5596 = vmatpush1.bf16.msra.mxu0 %v5279
        %5597 = vmatprep.subr.bf16.mxu0 0
        %5598 = vmatpush1.bf16.msra.mxu0 %v5280
        %5599 = vmatprep.subr.bf16.mxu0 0
        %5600 = vmatpush1.bf16.msra.mxu0 %v5281
        %5601 = vmatprep.subr.bf16.mxu0 0
        %5602 = vmatpush1.bf16.msra.mxu0 %v5282
        %5603 = vmatprep.mubr.bf16.mxu0 %v4704
        %5604 = vmatmul.mubr.bf16.gmra.mrb[0].mxu0 %v4703
        %v5605 = vpop.f32.mrb[0].mxu0
        %v5606 = vadd.f32 %v5566, %v5605
        %v5607 = vpop.f32.mrb[0].mxu0
        %v5608 = vpop.f32.mrb[0].mxu0
        %v5609 = vpop.f32.mrb[0].mxu0
        %5610 = vdwg.mxu0
        %5611 = vmatprep.subr.bf16.mxu0 0
        %5612 = vmatpush1.bf16.msra.mxu0 %v5283
        %5613 = vmatprep.subr.bf16.mxu0 0
        %5614 = vmatpush1.bf16.msra.mxu0 %v5284
        %5615 = vmatprep.subr.bf16.mxu0 0
        %5616 = vmatpush1.bf16.msra.mxu0 %v5285
        %5617 = vmatprep.subr.bf16.mxu0 0
        %5618 = vmatpush1.bf16.msra.mxu0 %v5286
        %5619 = vmatprep.subr.bf16.mxu0 0
        %5620 = vmatpush1.bf16.msra.mxu0 %v5287
        %5621 = vmatprep.subr.bf16.mxu0 0
        %5622 = vmatpush1.bf16.msra.mxu0 %v5288
        %5623 = vmatprep.subr.bf16.mxu0 0
        %5624 = vmatpush1.bf16.msra.mxu0 %v5289
        %5625 = vmatprep.subr.bf16.mxu0 0
        %5626 = vmatpush1.bf16.msra.mxu0 %v5290
        %5627 = vmatprep.subr.bf16.mxu0 0
        %5628 = vmatpush1.bf16.msra.mxu0 %v5291
        %5629 = vmatprep.subr.bf16.mxu0 0
        %5630 = vmatpush1.bf16.msra.mxu0 %v5292
        %5631 = vmatprep.subr.bf16.mxu0 0
        %5632 = vmatpush1.bf16.msra.mxu0 %v5293
        %5633 = vmatprep.subr.bf16.mxu0 0
        %5634 = vmatpush1.bf16.msra.mxu0 %v5294
        %5635 = vmatprep.subr.bf16.mxu0 0
        %5636 = vmatpush1.bf16.msra.mxu0 %v5295
        %5637 = vmatprep.subr.bf16.mxu0 0
        %5638 = vmatpush1.bf16.msra.mxu0 %v5296
        %5639 = vmatprep.subr.bf16.mxu0 0
        %5640 = vmatpush1.bf16.msra.mxu0 %v5297
        %5641 = vmatprep.subr.bf16.mxu0 0
        %5642 = vmatpush1.bf16.msra.mxu0 %v5298
        %5643 = vmatprep.mubr.bf16.mxu0 %v4706
        %5644 = vmatmul.mubr.bf16.gmra.mrb[0].mxu0 %v4705
        %v5645 = vpop.f32.mrb[0].mxu0
        %v5646 = vadd.f32 %v5606, %v5645
        %v5647 = vpop.f32.mrb[0].mxu0
        %v5648 = vpop.f32.mrb[0].mxu0
        %v5649 = vpop.f32.mrb[0].mxu0
        %5650 = vdwg.mxu0
        %5651 = vmatprep.subr.bf16.mxu0 0
        %5652 = vmatpush1.bf16.msra.mxu0 %v5299
        %5653 = vmatprep.subr.bf16.mxu0 0
        %5654 = vmatpush1.bf16.msra.mxu0 %v5300
        %5655 = vmatprep.subr.bf16.mxu0 0
        %5656 = vmatpush1.bf16.msra.mxu0 %v5301
        %5657 = vmatprep.subr.bf16.mxu0 0
        %5658 = vmatpush1.bf16.msra.mxu0 %v5302
        %5659 = vmatprep.subr.bf16.mxu0 0
        %5660 = vmatpush1.bf16.msra.mxu0 %v5303
        %5661 = vmatprep.subr.bf16.mxu0 0
        %5662 = vmatpush1.bf16.msra.mxu0 %v5304
        %5663 = vmatprep.subr.bf16.mxu0 0
        %5664 = vmatpush1.bf16.msra.mxu0 %v5305
        %5665 = vmatprep.subr.bf16.mxu0 0
        %5666 = vmatpush1.bf16.msra.mxu0 %v5306
        %5667 = vmatprep.subr.bf16.mxu0 0
        %5668 = vmatpush1.bf16.msra.mxu0 %v5307
        %5669 = vmatprep.subr.bf16.mxu0 0
        %5670 = vmatpush1.bf16.msra.mxu0 %v5308
        %5671 = vmatprep.subr.bf16.mxu0 0
        %5672 = vmatpush1.bf16.msra.mxu0 %v5309
        %5673 = vmatprep.subr.bf16.mxu0 0
        %5674 = vmatpush1.bf16.msra.mxu0 %v5310
        %5675 = vmatprep.subr.bf16.mxu0 0
        %5676 = vmatpush1.bf16.msra.mxu0 %v5311
        %5677 = vmatprep.subr.bf16.mxu0 0
        %5678 = vmatpush1.bf16.msra.mxu0 %v5312
        %5679 = vmatprep.subr.bf16.mxu0 0
        %5680 = vmatpush1.bf16.msra.mxu0 %v5313
        %5681 = vmatprep.subr.bf16.mxu0 0
        %5682 = vmatpush1.bf16.msra.mxu0 %v5314
        %5683 = vmatprep.mubr.bf16.mxu0 %v4708
        %5684 = vmatmul.mubr.bf16.gmra.mrb[0].mxu0 %v4707
        %v5685 = vpop.f32.mrb[0].mxu0
        %v5686 = vadd.f32 %v5646, %v5685
        %v5687 = vpop.f32.mrb[0].mxu0
        %v5688 = vpop.f32.mrb[0].mxu0
        %v5689 = vpop.f32.mrb[0].mxu0
        %5690 = vdwg.mxu0
        %5691 = vmatprep.subr.bf16.mxu0 0
        %5692 = vmatpush1.bf16.msra.mxu0 %v5315
        %5693 = vmatprep.subr.bf16.mxu0 0
        %5694 = vmatpush1.bf16.msra.mxu0 %v5316
        %5695 = vmatprep.subr.bf16.mxu0 0
        %5696 = vmatpush1.bf16.msra.mxu0 %v5317
        %5697 = vmatprep.subr.bf16.mxu0 0
        %5698 = vmatpush1.bf16.msra.mxu0 %v5318
        %5699 = vmatprep.subr.bf16.mxu0 0
        %5700 = vmatpush1.bf16.msra.mxu0 %v5319
        %5701 = vmatprep.subr.bf16.mxu0 0
        %5702 = vmatpush1.bf16.msra.mxu0 %v5320
        %5703 = vmatprep.subr.bf16.mxu0 0
        %5704 = vmatpush1.bf16.msra.mxu0 %v5321
        %5705 = vmatprep.subr.bf16.mxu0 0
        %5706 = vmatpush1.bf16.msra.mxu0 %v5322
        %5707 = vmatprep.subr.bf16.mxu0 0
        %5708 = vmatpush1.bf16.msra.mxu0 %v5323
        %5709 = vmatprep.subr.bf16.mxu0 0
        %5710 = vmatpush1.bf16.msra.mxu0 %v5324
        %5711 = vmatprep.subr.bf16.mxu0 0
        %5712 = vmatpush1.bf16.msra.mxu0 %v5325
        %5713 = vmatprep.subr.bf16.mxu0 0
        %5714 = vmatpush1.bf16.msra.mxu0 %v5326
        %5715 = vmatprep.subr.bf16.mxu0 0
        %5716 = vmatpush1.bf16.msra.mxu0 %v5327
        %5717 = vmatprep.subr.bf16.mxu0 0
        %5718 = vmatpush1.bf16.msra.mxu0 %v5328
        %5719 = vmatprep.subr.bf16.mxu0 0
        %5720 = vmatpush1.bf16.msra.mxu0 %v5329
        %5721 = vmatprep.subr.bf16.mxu0 0
        %5722 = vmatpush1.bf16.msra.mxu0 %v5330
        %5723 = vmatprep.mubr.bf16.mxu0 %v4710
        %5724 = vmatmul.mubr.bf16.gmra.mrb[0].mxu0 %v4709
        %v5725 = vpop.f32.mrb[0].mxu0
        %v5726 = vadd.f32 %v5686, %v5725
        %v5727 = vpop.f32.mrb[0].mxu0
        %v5728 = vpop.f32.mrb[0].mxu0
        %v5729 = vpop.f32.mrb[0].mxu0
        %5730 = vdwg.mxu0
        %5731 = vmatprep.subr.bf16.mxu0 0
        %5732 = vmatpush1.bf16.msra.mxu0 %v5331
        %5733 = vmatprep.subr.bf16.mxu0 0
        %5734 = vmatpush1.bf16.msra.mxu0 %v5332
        %5735 = vmatprep.subr.bf16.mxu0 0
        %5736 = vmatpush1.bf16.msra.mxu0 %v5333
        %5737 = vmatprep.subr.bf16.mxu0 0
        %5738 = vmatpush1.bf16.msra.mxu0 %v5334
        %5739 = vmatprep.subr.bf16.mxu0 0
        %5740 = vmatpush1.bf16.msra.mxu0 %v5335
        %5741 = vmatprep.subr.bf16.mxu0 0
        %5742 = vmatpush1.bf16.msra.mxu0 %v5336
        %5743 = vmatprep.subr.bf16.mxu0 0
        %5744 = vmatpush1.bf16.msra.mxu0 %v5337
        %5745 = vmatprep.subr.bf16.mxu0 0
        %5746 = vmatpush1.bf16.msra.mxu0 %v5338
        %5747 = vmatprep.subr.bf16.mxu0 0
        %5748 = vmatpush1.bf16.msra.mxu0 %v5339
        %5749 = vmatprep.subr.bf16.mxu0 0
        %5750 = vmatpush1.bf16.msra.mxu0 %v5340
        %5751 = vmatprep.subr.bf16.mxu0 0
        %5752 = vmatpush1.bf16.msra.mxu0 %v5341
        %5753 = vmatprep.subr.bf16.mxu0 0
        %5754 = vmatpush1.bf16.msra.mxu0 %v5342
        %5755 = vmatprep.subr.bf16.mxu0 0
        %5756 = vmatpush1.bf16.msra.mxu0 %v5343
        %5757 = vmatprep.subr.bf16.mxu0 0
        %5758 = vmatpush1.bf16.msra.mxu0 %v5344
        %5759 = vmatprep.subr.bf16.mxu0 0
        %5760 = vmatpush1.bf16.msra.mxu0 %v5345
        %5761 = vmatprep.subr.bf16.mxu0 0
        %5762 = vmatpush1.bf16.msra.mxu0 %v5346
        %5763 = vmatprep.mubr.bf16.mxu0 %v4712
        %5764 = vmatmul.mubr.bf16.gmra.mrb[0].mxu0 %v4711
        %v5765 = vpop.f32.mrb[0].mxu0
        %v5766 = vadd.f32 %v5726, %v5765
        %v5767 = vpop.f32.mrb[0].mxu0
        %v5768 = vpop.f32.mrb[0].mxu0
        %v5769 = vpop.f32.mrb[0].mxu0
        %5770 = vdwg.mxu0
        %5771 = vmatprep.subr.bf16.mxu0 0
        %5772 = vmatpush1.bf16.msra.mxu0 %v5347
        %5773 = vmatprep.subr.bf16.mxu0 0
        %5774 = vmatpush1.bf16.msra.mxu0 %v5348
        %5775 = vmatprep.subr.bf16.mxu0 0
        %5776 = vmatpush1.bf16.msra.mxu0 %v5349
        %5777 = vmatprep.subr.bf16.mxu0 0
        %5778 = vmatpush1.bf16.msra.mxu0 %v5350
        %5779 = vmatprep.subr.bf16.mxu0 0
        %5780 = vmatpush1.bf16.msra.mxu0 %v5351
        %5781 = vmatprep.subr.bf16.mxu0 0
        %5782 = vmatpush1.bf16.msra.mxu0 %v5352
        %5783 = vmatprep.subr.bf16.mxu0 0
        %5784 = vmatpush1.bf16.msra.mxu0 %v5353
        %5785 = vmatprep.subr.bf16.mxu0 0
        %5786 = vmatpush1.bf16.msra.mxu0 %v5354
        %5787 = vmatprep.subr.bf16.mxu0 0
        %5788 = vmatpush1.bf16.msra.mxu0 %v5355
        %5789 = vmatprep.subr.bf16.mxu0 0
        %5790 = vmatpush1.bf16.msra.mxu0 %v5356
        %5791 = vmatprep.subr.bf16.mxu0 0
        %5792 = vmatpush1.bf16.msra.mxu0 %v5357
        %5793 = vmatprep.subr.bf16.mxu0 0
        %5794 = vmatpush1.bf16.msra.mxu0 %v5358
        %5795 = vmatprep.subr.bf16.mxu0 0
        %5796 = vmatpush1.bf16.msra.mxu0 %v5359
        %5797 = vmatprep.subr.bf16.mxu0 0
        %5798 = vmatpush1.bf16.msra.mxu0 %v5360
        %5799 = vmatprep.subr.bf16.mxu0 0
        %5800 = vmatpush1.bf16.msra.mxu0 %v5361
        %5801 = vmatprep.subr.bf16.mxu0 0
        %5802 = vmatpush1.bf16.msra.mxu0 %v5362
        %5803 = vmatprep.mubr.bf16.mxu0 %v4714
        %5804 = vmatmul.mubr.bf16.gmra.mrb[0].mxu0 %v4713
        %v5805 = vpop.f32.mrb[0].mxu0
        %v5806 = vadd.f32 %v5766, %v5805
        %v5807 = vpop.f32.mrb[0].mxu0
        %v5808 = vpop.f32.mrb[0].mxu0
        %v5809 = vpop.f32.mrb[0].mxu0
        %5810 = vdwg.mxu0
        %v5811 = vadd.f32 %v3815, %v5806
        %s5812 = scalar_lea.vmem %s7, 1
        %v5813 = vld [vmem:[%s5812] sm:$0x1]
        %s5814 = scalar_lea.vmem %s8, 1
        %v5815 = vld [vmem:[%s5814] sm:$0x1]
        %v5816 = vsel %vm569, %v5811, 0.0
        %5817 = vadd.xlane.f32.xlu0 %v5816
        %v5818 = vpop.xlane.xlu0 %5817
        %v5819 = vmul.f32 %v5818, %v1145
        %v5820 = vsub.f32 %v5811, %v5819
        %v5821 = vmul.f32 %v5820, %v5820
        %v5822 = vsel %vm569, %v5821, 0.0
        %5823 = vadd.xlane.f32.xlu0 %v5822
        %v5824 = vpop.xlane.xlu0 %5823
        %v5825 = vmul.f32 %v5824, %v1145
        %v5826 = vadd.f32 %v5825, 1e-05
        %v5827 = vrsqrt.pop %v5826
        %v5828 = vmul.f32 %v5820, %v5827
        %v5830 = vlaneseq
        %v5831 = vshrl.u32 %v5830, 7
        %v5832 = vsub.s32 0, %v5831
        %v5833 = vrot.slane %v5813, %v5832
        %v5835 = vmul.f32 %v5828, %v5833
        %v5837 = vlaneseq
        %v5838 = vshrl.u32 %v5837, 7
        %v5839 = vsub.s32 0, %v5838
        %v5840 = vrot.slane %v5815, %v5839
        %v5842 = vadd.f32 %v5835, %v5840
        %v5843 = vsel %vm569, %v5842, 0.0
        %v5844 = vrot.slane %v5843, 4
        %v5845 = vadd.f32 %v5843, %v5844
        %v5846 = vrot.slane %v5845, 2
        %v5847 = vadd.f32 %v5845, %v5846
        %v5848 = vrot.slane %v5847, 1
        %v5849 = vadd.f32 %v5847, %v5848
        %v5850 = vrcp.pop 8.0
        %v5851 = vmul.f32 %v5849, %v5850
        %v5852 = vld [vmem:[%s13] sm:$0xf]
        %v5853 = vld [vmem:[%s13 + $0x4] sm:$0xf]
        %v5854 = vld [vmem:[%s13 + $0x8] sm:$0xf]
        %v5855 = vld [vmem:[%s13 + $0xc] sm:$0xf]
        %v5856 = vpack.c.bf16 %v5851, %v5851
        %v5857 = vld [vmem:[%s14] sm:$0x1]
        %v5862 = vunpack.c.l.b16 %v5852
        %v5863 = vunpack.c.l.b16 %v5853
        %v5864 = vunpack.c.l.b16 %v5854
        %v5865 = vunpack.c.l.b16 %v5855
        %v5866 = vpack.c.b16 %v5863, %v5862
        %v5867 = vpack.c.b16 %v5865, %v5864
        %v5871 = vsel %vm569, %v5856, 0
        %5873 = vmatprep.subr.bf16.mxu0 0
        %5874 = vmatpush1.bf16.msra.mxu0 %v5866
        %5875 = vmatprep.subr.bf16.mxu0 0
        %5876 = vmatpush1.bf16.msra.mxu0 %v5867
        %5877 = vmatprep.subr.bf16.mxu0 0
        %5878 = vmatpush1.bf16.msra.mxu0 0
        %5879 = vmatprep.subr.bf16.mxu0 0
        %5880 = vmatpush1.bf16.msra.mxu0 0
        %5881 = vmatprep.subr.bf16.mxu0 0
        %5882 = vmatpush1.bf16.msra.mxu0 0
        %5883 = vmatprep.subr.bf16.mxu0 0
        %5884 = vmatpush1.bf16.msra.mxu0 0
        %5885 = vmatprep.subr.bf16.mxu0 0
        %5886 = vmatpush1.bf16.msra.mxu0 0
        %5887 = vmatprep.subr.bf16.mxu0 0
        %5888 = vmatpush1.bf16.msra.mxu0 0
        %5889 = vmatprep.subr.bf16.mxu0 0
        %5890 = vmatpush1.bf16.msra.mxu0 0
        %5891 = vmatprep.subr.bf16.mxu0 0
        %5892 = vmatpush1.bf16.msra.mxu0 0
        %5893 = vmatprep.subr.bf16.mxu0 0
        %5894 = vmatpush1.bf16.msra.mxu0 0
        %5895 = vmatprep.subr.bf16.mxu0 0
        %5896 = vmatpush1.bf16.msra.mxu0 0
        %5897 = vmatprep.subr.bf16.mxu0 0
        %5898 = vmatpush1.bf16.msra.mxu0 0
        %5899 = vmatprep.subr.bf16.mxu0 0
        %5900 = vmatpush1.bf16.msra.mxu0 0
        %5901 = vmatprep.subr.bf16.mxu0 0
        %5902 = vmatpush1.bf16.msra.mxu0 0
        %5903 = vmatprep.subr.bf16.mxu0 0
        %5904 = vmatpush1.bf16.msra.mxu0 0
        %5905 = vmatprep.mubr.bf16.mxu0 0
        %5906 = vmatmul.mubr.bf16.gmra.mrb[0].mxu0 %v5871
        %v5907 = vpop.f32.mrb[0].mxu0
        %v5908 = vadd.f32 %v5857, %v5907
        %v5909 = vpop.f32.mrb[0].mxu0
        %v5910 = vpop.f32.mrb[0].mxu0
        %v5911 = vpop.f32.mrb[0].mxu0
        %5912 = vdwg.mxu0
        %v5913 = vmax.f32 %v5908, 0.0
        %v5914 = vld [vmem:[%s15] sm:$0xf]
        %v5915 = vld [vmem:[%s15 + $0x4] sm:$0xf]
        %v5916 = vld [vmem:[%s15 + $0x8] sm:$0xf]
        %v5917 = vld [vmem:[%s15 + $0xc] sm:$0xf]
        %v5918 = vld [vmem:[%s15 + $0x10] sm:$0xf]
        %v5919 = vld [vmem:[%s15 + $0x14] sm:$0xf]
        %v5920 = vld [vmem:[%s15 + $0x18] sm:$0xf]
        %v5921 = vld [vmem:[%s15 + $0x1c] sm:$0xf]
        %v5922 = vpack.c.bf16 %v5913, %v5913
        %v5923 = vld [vmem:[%s16] sm:$0x1]
        %v5932 = vunpack.c.l.b16 %v5914
        %v5933 = vunpack.c.l.b16 %v5915
        %v5934 = vunpack.c.l.b16 %v5916
        %v5935 = vunpack.c.l.b16 %v5917
        %v5936 = vunpack.c.l.b16 %v5918
        %v5937 = vunpack.c.l.b16 %v5919
        %v5938 = vunpack.c.l.b16 %v5920
        %v5939 = vunpack.c.l.b16 %v5921
        %v5940 = vpack.c.b16 %v5933, %v5932
        %v5941 = vpack.c.b16 %v5935, %v5934
        %v5942 = vpack.c.b16 %v5937, %v5936
        %v5943 = vpack.c.b16 %v5939, %v5938
        %vm5948 = vcmask 523264
        %v5950 = vsel %vm5948, %v5922, 0
        %5952 = vmatprep.subr.bf16.mxu0 0
        %5953 = vmatpush1.bf16.msra.mxu0 %v5940
        %5954 = vmatprep.subr.bf16.mxu0 0
        %5955 = vmatpush1.bf16.msra.mxu0 %v5941
        %5956 = vmatprep.subr.bf16.mxu0 0
        %5957 = vmatpush1.bf16.msra.mxu0 %v5942
        %5958 = vmatprep.subr.bf16.mxu0 0
        %5959 = vmatpush1.bf16.msra.mxu0 %v5943
        %5960 = vmatprep.subr.bf16.mxu0 0
        %5961 = vmatpush1.bf16.msra.mxu0 0
        %5962 = vmatprep.subr.bf16.mxu0 0
        %5963 = vmatpush1.bf16.msra.mxu0 0
        %5964 = vmatprep.subr.bf16.mxu0 0
        %5965 = vmatpush1.bf16.msra.mxu0 0
        %5966 = vmatprep.subr.bf16.mxu0 0
        %5967 = vmatpush1.bf16.msra.mxu0 0
        %5968 = vmatprep.subr.bf16.mxu0 0
        %5969 = vmatpush1.bf16.msra.mxu0 0
        %5970 = vmatprep.subr.bf16.mxu0 0
        %5971 = vmatpush1.bf16.msra.mxu0 0
        %5972 = vmatprep.subr.bf16.mxu0 0
        %5973 = vmatpush1.bf16.msra.mxu0 0
        %5974 = vmatprep.subr.bf16.mxu0 0
        %5975 = vmatpush1.bf16.msra.mxu0 0
        %5976 = vmatprep.subr.bf16.mxu0 0
        %5977 = vmatpush1.bf16.msra.mxu0 0
        %5978 = vmatprep.subr.bf16.mxu0 0
        %5979 = vmatpush1.bf16.msra.mxu0 0
        %5980 = vmatprep.subr.bf16.mxu0 0
        %5981 = vmatpush1.bf16.msra.mxu0 0
        %5982 = vmatprep.subr.bf16.mxu0 0
        %5983 = vmatpush1.bf16.msra.mxu0 0
        %5984 = vmatprep.mubr.bf16.mxu0 0
        %5985 = vmatmul.mubr.bf16.gmra.mrb[0].mxu0 %v5950
        %v5986 = vpop.f32.mrb[0].mxu0
        %v5987 = vadd.f32 %v5923, %v5986
        %v5988 = vpop.f32.mrb[0].mxu0
        %v5989 = vpop.f32.mrb[0].mxu0
        %v5990 = vpop.f32.mrb[0].mxu0
        %5991 = vdwg.mxu0
        %vm5992 = vcmask 32768
        %5993 = vst.msk [vmem:[%s538] sm:$0x1] %vm5992, %v5987
        %s5994 = sand.u32 %s401, 1
        %s5995 = scalar_lea.sflag [#allocation3], %s5994
        %s5996 = sand.u32 %s401, 1
        %s5997 = scalar_lea.vmem [#allocation2], %s5996
        // Predicated region
        $region89: #{tpu_custom_call.1} parent=87 // pred_check
          %p5998 = pneg %p411
        $region90: #{tpu_custom_call.1} parent=87 // pred_check_branch
          %6000 = sbr.rel (%p5998) target = $region92
        $region91: #{tpu_custom_call.1} parent=87 // pred_region
          %s6002 = ssub.s32 16, 16
          %6003 = vsyncadd %s5995, %s6002
          %s6004 = smul.addr %s31, 16
          %s6005 = scalar_lea.hbm %s17, %s6004
          %s6007 = sshll.u32 %s5997, 4
          %s6008 = int_to_ptr.vmem [resolvable:$true] %s6007
          %6010 = dma.vmem_to_hbm [thread:$0]  %s6008, 16, %s6005, %s5995
        $region92: #{tpu_custom_call.1} parent=87 // pred_fallthru
          _
      $region88: #{tpu_custom_call.1} parent=5 // pred_fallthru
        _
      %p6011 = scmp.le.s32.totalorder 2, %s26
      // Predicated region
      $region93: #{tpu_custom_call.1} parent=5 // pred_check
        %p6012 = pneg %p6011
      $region94: #{tpu_custom_call.1} parent=5 // pred_check_branch
        %6014 = sbr.rel (%p6012) target = $region96
      $region95: #{tpu_custom_call.1} parent=5 // pred_region
        %s6015 = ssub.s32 %s26, 2
        // Predicated region
        $region97: #{tpu_custom_call.1} parent=95 // pred_check
          %p6016 = pneg %p417
        $region98: #{tpu_custom_call.1} parent=95 // pred_check_branch
          %6018 = sbr.rel (%p6016) target = $region100
        $region99: #{tpu_custom_call.1} parent=95 // pred_region
          %s6019 = sand.u32 %s402, 1
          %s6020 = scalar_lea.sflag [#allocation3], %s6019
          %s6021 = sand.u32 %s402, 1
          %s6022 = scalar_lea.vmem [#allocation2], %s6021
          %6023 = dma.done %s6020, 16
        $region100: #{tpu_custom_call.1} parent=95 // pred_fallthru
          _
      $region96: #{tpu_custom_call.1} parent=5 // pred_fallthru
        _
    $region6: #{tpu_custom_call.1} parent=1 // loop_footer
      %s30 = sadd.s32 1, %s26
    $region7: #{tpu_custom_call.1} parent=1 // loop_footer_branch
      %25 = sbr.rel target = $region3
    $region8: #{tpu_custom_call.1} parent=1 // loop_exit
      _
    %6024 = vsyncpa [#allocation3], 1
    %s6025 = scalar_lea.sflag [#allocation3], 1
    %6026 = vsyncpa %s6025, 1

</llo_original>
